<compile_context>
chip_gen: v7x
topology: tpu7x:2x2x1
jax: 0.10.0
libtpu: 0.0.40
codegen_flags: <defaults>
</compile_context>

<pallas_src>
import numpy as np

import jax
import jax.numpy as jnp
from jax.experimental import pallas as pl
from jax.experimental.pallas import tpu as pltpu

# ---------------- small synthetic config (shapes implied by Qwen2Config) -------------
VOCAB = 128
HIDDEN = 128
NUM_HEADS = 4
NUM_KV_HEADS = 2
HEAD_DIM = HIDDEN // NUM_HEADS          # 32
Q_SIZE = NUM_HEADS * HEAD_DIM           # 128
KV_SIZE = NUM_KV_HEADS * HEAD_DIM       # 64
QKV_TOTAL = Q_SIZE + 2 * KV_SIZE        # 256
INTERMEDIATE = 256
NUM_LAYERS = 2
RMS_EPS = 1e-6
ROPE_THETA = 1e6                        # getattr(config, 'rope_theta', 1000000)
SEQ = 16
DTYPE = jnp.float32


# ================================ fused Pallas kernel ================================

def _qwen2_model_kernel(ids_ref, embed_ref, cos_ref, sin_ref, rot_ref,
                        in_ln_ref, qkv_w_ref, qkv_b_ref, o_w_ref, post_ln_ref,
                        gate_up_w_ref, down_w_ref, final_ln_ref, out_ref):
    """Whole model in one grid step: embed gather + all layers + final RMSNorm."""
    T = out_ref.shape[0]

    def _rms(x, w):
        var = jnp.mean(x * x, axis=-1, keepdims=True)
        return x * jax.lax.rsqrt(var + RMS_EPS) * w

    # ---- embed_tokens: lane-dense one-hot matmul gather (table resident in VMEM) ----
    onehot = (jax.lax.broadcasted_iota(jnp.int32, (T, VOCAB), 1)
              == ids_ref[...]).astype(jnp.bfloat16)
    hidden = jnp.dot(onehot, embed_ref[...], preferred_element_type=jnp.float32)

    # constants read once, reused by every layer
    cos = cos_ref[...]                                  # [T, QKV_TOTAL] f32
    sin = sin_ref[...]
    rot = rot_ref[...].astype(jnp.float32)              # signed permutation (+-1 / 0)
    causal = (jax.lax.broadcasted_iota(jnp.int32, (T, T), 1)
              <= jax.lax.broadcasted_iota(jnp.int32, (T, T), 0))

    residual = jnp.zeros_like(hidden)
    group = NUM_HEADS // NUM_KV_HEADS

    for l in range(NUM_LAYERS):                          # unrolled; weights from VMEM
        # ---- input_layernorm with fused residual add (residual==0 on layer 0) ----
        residual = residual + hidden
        h1 = _rms(residual, in_ln_ref[l])

        # ---- qkv_proj (bias=True; attention scale pre-folded into q columns) ----
        qkv = (jnp.dot(h1.astype(jnp.bfloat16), qkv_w_ref[l],
                       preferred_element_type=jnp.float32)
               + qkv_b_ref[l])

        # ---- merged NeoX rotate-half RoPE over the whole qkv slab (v untouched) ----
        qkv = qkv * cos + jnp.dot(qkv, rot,
                                  preferred_element_type=jnp.float32) * sin
        q = qkv[:, :Q_SIZE]
        k = qkv[:, Q_SIZE:Q_SIZE + KV_SIZE]
        v = qkv[:, Q_SIZE + KV_SIZE:]

        # ---- causal GQA attention; o_proj folded per head -> lane-dense [T,128] ----
        o_w_l = o_w_ref[l]                               # [Q_SIZE, HIDDEN] bf16
        attn_o = jnp.zeros((T, HIDDEN), jnp.float32)
        for h in range(NUM_HEADS):
            g = h // group
            qh = q[:, h * HEAD_DIM:(h + 1) * HEAD_DIM]
            kg = k[:, g * HEAD_DIM:(g + 1) * HEAD_DIM]
            vg = v[:, g * HEAD_DIM:(g + 1) * HEAD_DIM]
            s = jax.lax.dot_general(qh, kg, (((1,), (1,)), ((), ())),
                                    preferred_element_type=jnp.float32)
            s = jnp.where(causal, s, -jnp.inf)
            m = jnp.max(s, axis=-1, keepdims=True)
            p = jnp.exp(s - m)
            p = p * pl.reciprocal(jnp.sum(p, axis=-1, keepdims=True), approx=True)
            o_h = jnp.dot(p, vg, preferred_element_type=jnp.float32)
            attn_o = attn_o + jnp.dot(
                o_h.astype(jnp.bfloat16),
                o_w_l[h * HEAD_DIM:(h + 1) * HEAD_DIM, :],
                preferred_element_type=jnp.float32)

        # ---- o_proj residual add + post_attention_layernorm ----
        residual = residual + attn_o
        h2 = _rms(residual, post_ln_ref[l])

        # ---- MLP: gate_up_proj -> SiLU*up -> down_proj (all bias=False) ----
        gu = jnp.dot(h2.astype(jnp.bfloat16), gate_up_w_ref[l],
                     preferred_element_type=jnp.float32)
        gate = gu[:, :INTERMEDIATE]
        up = gu[:, INTERMEDIATE:]
        act = gate * jax.nn.sigmoid(gate) * up
        hidden = jnp.dot(act.astype(jnp.bfloat16), down_w_ref[l],
                         preferred_element_type=jnp.float32)

    # ---- final RMSNorm: hidden_states, _ = norm(hidden_states, residual) ----
    out_ref[...] = _rms(hidden + residual, final_ln_ref[...]).astype(out_ref.dtype)


# ================================ host-side helpers ==================================

def _rope_rotation_matrix():
    """[QKV_TOTAL, QKV_TOTAL] signed permutation: rotate-half on the q and k blocks,
    zero on the v block (cos=1/sin=0 there), so one dot rotates the whole qkv slab."""
    P = np.zeros((QKV_TOTAL, QKV_TOTAL), np.float32)
    half = HEAD_DIM // 2

    def fill(base, n_heads):
        for h in range(n_heads):
            b = base + h * HEAD_DIM
            for j in range(half):
                P[b + half + j, b + j] = -1.0     # out1 = x1*cos - x2*sin
                P[b + j, b + half + j] = 1.0      # out2 = x2*cos + x1*sin

    fill(0, NUM_HEADS)
    fill(Q_SIZE, NUM_KV_HEADS)
    return jnp.asarray(P, jnp.bfloat16)               # +-1 / 0 are exact in bf16


def _rope_tables(positions):
    """cos/sin extended to the full [T, QKV_TOTAL] qkv layout (ones/zeros over V)."""
    half = HEAD_DIM // 2
    T = positions.shape[0]
    inv_freq = 1.0 / (ROPE_THETA ** (jnp.arange(half, dtype=jnp.float32) / half))
    freqs = positions.astype(jnp.float32)[:, None] * inv_freq[None, :]     # [T, half]
    cos1 = jnp.concatenate([jnp.cos(freqs)] * 2, axis=-1)                  # [T, D]
    sin1 = jnp.concatenate([jnp.sin(freqs)] * 2, axis=-1)
    cos_full = jnp.concatenate([jnp.tile(cos1, (1, NUM_HEADS)),
                                jnp.tile(cos1, (1, NUM_KV_HEADS)),
                                jnp.ones((T, KV_SIZE), jnp.float32)], axis=-1)
    sin_full = jnp.concatenate([jnp.tile(sin1, (1, NUM_HEADS)),
                                jnp.tile(sin1, (1, NUM_KV_HEADS)),
                                jnp.zeros((T, KV_SIZE), jnp.float32)], axis=-1)
    return cos_full, sin_full


@jax.jit
def model_forward(params, input_ids, positions):
    T = input_ids.shape[0]
    cos_full, sin_full = _rope_tables(positions)
    rot = _rope_rotation_matrix()

    ids2d = input_ids.reshape(T, 1).astype(jnp.int32)
    embed = params["embed"].astype(jnp.bfloat16)

    stack = lambda name: jnp.stack([lp[name] for lp in params["layers"]], axis=0)
    # fold the 1/sqrt(head_dim) attention scale into the q columns of qkv_proj
    scale_vec = jnp.concatenate([jnp.full((Q_SIZE,), HEAD_DIM ** -0.5, jnp.float32),
                                 jnp.ones((2 * KV_SIZE,), jnp.float32)])
    qkv_w = (stack("qkv_w") * scale_vec[None, None, :]).astype(jnp.bfloat16)
    qkv_b = (stack("qkv_b") * scale_vec[None, :]).reshape(NUM_LAYERS, 1, QKV_TOTAL)
    o_w = stack("o_w").astype(jnp.bfloat16)
    gate_up_w = stack("gate_up_w").astype(jnp.bfloat16)
    down_w = stack("down_w").astype(jnp.bfloat16)
    in_ln = stack("input_ln").reshape(NUM_LAYERS, 1, HIDDEN)
    post_ln = stack("post_ln").reshape(NUM_LAYERS, 1, HIDDEN)
    final_ln = params["final_ln"].reshape(1, HIDDEN)

    grid_spec = pltpu.PrefetchScalarGridSpec(
        num_scalar_prefetch=0,
        grid=(1,),
        in_specs=[
            pl.BlockSpec((T, 1), lambda i: (0, 0)),                                # ids
            pl.BlockSpec((VOCAB, HIDDEN), lambda i: (0, 0)),                       # embed
            pl.BlockSpec((T, QKV_TOTAL), lambda i: (0, 0)),                        # cos
            pl.BlockSpec((T, QKV_TOTAL), lambda i: (0, 0)),                        # sin
            pl.BlockSpec((QKV_TOTAL, QKV_TOTAL), lambda i: (0, 0)),                # rot
            pl.BlockSpec((NUM_LAYERS, 1, HIDDEN), lambda i: (0, 0, 0)),            # in_ln
            pl.BlockSpec((NUM_LAYERS, HIDDEN, QKV_TOTAL), lambda i: (0, 0, 0)),    # qkv_w
            pl.BlockSpec((NUM_LAYERS, 1, QKV_TOTAL), lambda i: (0, 0, 0)),         # qkv_b
            pl.BlockSpec((NUM_LAYERS, Q_SIZE, HIDDEN), lambda i: (0, 0, 0)),       # o_w
            pl.BlockSpec((NUM_LAYERS, 1, HIDDEN), lambda i: (0, 0, 0)),            # post_ln
            pl.BlockSpec((NUM_LAYERS, HIDDEN, 2 * INTERMEDIATE), lambda i: (0, 0, 0)),
            pl.BlockSpec((NUM_LAYERS, INTERMEDIATE, HIDDEN), lambda i: (0, 0, 0)),
            pl.BlockSpec((1, HIDDEN), lambda i: (0, 0)),                           # final_ln
        ],
        out_specs=pl.BlockSpec((T, HIDDEN), lambda i: (0, 0)),
    )

    return pl.pallas_call(
        _qwen2_model_kernel,
        out_shape=jax.ShapeDtypeStruct((T, HIDDEN), DTYPE),
        grid_spec=grid_spec,
        compiler_params=pltpu.CompilerParams(dimension_semantics=("arbitrary",)),
    )(ids2d, embed, cos_full, sin_full, rot,
      in_ln, qkv_w, qkv_b, o_w, post_ln, gate_up_w, down_w, final_ln)


# ================================ pure-JAX reference =================================

def _reference_forward(params, input_ids, positions):
    x = jnp.take(params["embed"], input_ids, axis=0).astype(jnp.float32)
    half = HEAD_DIM // 2
    inv_freq = 1.0 / (ROPE_THETA ** (jnp.arange(half, dtype=jnp.float32) / half))
    freqs = positions.astype(jnp.float32)[:, None] * inv_freq[None, :]
    cos, sin = jnp.cos(freqs), jnp.sin(freqs)

    def rms(v, w):
        return v * jax.lax.rsqrt(jnp.mean(v * v, axis=-1, keepdims=True) + RMS_EPS) * w

    def rope(v, nh):
        v = v.reshape(-1, nh, HEAD_DIM)
        x1, x2 = v[..., :half], v[..., half:]
        c, s_ = cos[:, None, :], sin[:, None, :]
        out = jnp.concatenate([x1 * c - x2 * s_, x2 * c + x1 * s_], axis=-1)
        return out.reshape(-1, nh * HEAD_DIM)

    residual = None
    hidden = x
    for lp in params["layers"]:
        if residual is None:
            residual = hidden
            h = rms(hidden, lp["input_ln"])
        else:
            residual = residual + hidden
            h = rms(residual, lp["input_ln"])
        qkv = h @ lp["qkv_w"] + lp["qkv_b"]
        q = qkv[:, :Q_SIZE]
        k = qkv[:, Q_SIZE:Q_SIZE + KV_SIZE]
        v = qkv[:, Q_SIZE + KV_SIZE:]
        q, k = rope(q, NUM_HEADS), rope(k, NUM_KV_HEADS)
        T = q.shape[0]
        qh = q.reshape(T, NUM_HEADS, HEAD_DIM).transpose(1, 0, 2)
        kh = k.reshape(T, NUM_KV_HEADS, HEAD_DIM).transpose(1, 0, 2)
        vh = v.reshape(T, NUM_KV_HEADS, HEAD_DIM).transpose(1, 0, 2)
        group = NUM_HEADS // NUM_KV_HEADS
        kh = jnp.repeat(kh, group, axis=0)
        vh = jnp.repeat(vh, group, axis=0)
        s = jnp.einsum("hqd,hkd->hqk", qh, kh) * (HEAD_DIM ** -0.5)
        mask = jnp.tril(jnp.ones((T, T), bool))
        s = jnp.where(mask[None], s, -jnp.inf)
        p = jax.nn.softmax(s, axis=-1)
        o = jnp.einsum("hqk,hkd->hqd", p, vh).transpose(1, 0, 2).reshape(T, -1)
        residual = residual + o @ lp["o_w"]
        h = rms(residual, lp["post_ln"])
        gu = h @ lp["gate_up_w"]
        g_, u_ = gu[:, :INTERMEDIATE], gu[:, INTERMEDIATE:]
        hidden = (g_ * jax.nn.sigmoid(g_) * u_) @ lp["down_w"]
    return rms(hidden + residual, params["final_ln"]).astype(DTYPE)


# ================================ params & main ======================================

def init_params(key):
    def w(k, shape, scale=0.02):
        vals = jax.random.normal(k, shape, jnp.float32) * scale
        # keep parameters exactly bf16-representable so the bf16 kernel path and the
        # f32 reference see identical weight values
        return vals.astype(jnp.bfloat16).astype(DTYPE)

    n_rand_per_layer = 5
    keys = jax.random.split(key, 1 + NUM_LAYERS * n_rand_per_layer)
    params = {"embed": w(keys[0], (VOCAB, HIDDEN)),
              "final_ln": jnp.ones((HIDDEN,), DTYPE),
              "layers": []}
    for l in range(NUM_LAYERS):
        kq, kb, ko, kg, kd = keys[1 + l * n_rand_per_layer: 1 + (l + 1) * n_rand_per_layer]
        params["layers"].append({
            "input_ln": jnp.ones((HIDDEN,), DTYPE),
            "qkv_w": w(kq, (HIDDEN, QKV_TOTAL)),
            "qkv_b": w(kb, (QKV_TOTAL,)),
            "o_w": w(ko, (Q_SIZE, HIDDEN)),
            "post_ln": jnp.ones((HIDDEN,), DTYPE),
            "gate_up_w": w(kg, (HIDDEN, 2 * INTERMEDIATE)),
            "down_w": w(kd, (INTERMEDIATE, HIDDEN)),
        })
    return params


if __name__ == "__main__":
    root = jax.random.PRNGKey(0)
    kparams, kids = jax.random.split(root)
    params = init_params(kparams)

    input_ids = jax.random.randint(kids, (SEQ,), 0, VOCAB, dtype=jnp.int32)
    positions = jnp.arange(SEQ, dtype=jnp.int32)

    out = model_forward(params, input_ids, positions)
    out = jax.block_until_ready(out)

    assert out.shape == (SEQ, HIDDEN), out.shape
    assert bool(jnp.all(jnp.isfinite(out)))

    # correctness check vs a pure-JAX f32 reference; tolerance covers bf16 MXU operands
    # (activations rounded to bf16 at each weight matmul) and the approx reciprocal.
    with jax.default_matmul_precision("highest"):
        ref = _reference_forward(params, input_ids, positions)
    max_err = float(jnp.max(jnp.abs(out - ref)))
    assert max_err < 5e-2, f"max abs error vs reference: {max_err}"

    print("KERNEL_OK")
</pallas_src>

<mosaic_0001>
module attributes {stable_mosaic.version = 11 : i64} {
  func.func @_qwen2_model_kernel(%arg0: i32, %arg1: memref<16x1xi32, #tpu.memory_space<vmem>>, %arg2: memref<128x128xbf16, #tpu.memory_space<vmem>>, %arg3: memref<16x256xf32, #tpu.memory_space<vmem>>, %arg4: memref<16x256xf32, #tpu.memory_space<vmem>>, %arg5: memref<256x256xbf16, #tpu.memory_space<vmem>>, %arg6: memref<2x1x128xf32, #tpu.memory_space<vmem>>, %arg7: memref<2x128x256xbf16, #tpu.memory_space<vmem>>, %arg8: memref<2x1x256xf32, #tpu.memory_space<vmem>>, %arg9: memref<2x128x128xbf16, #tpu.memory_space<vmem>>, %arg10: memref<2x1x128xf32, #tpu.memory_space<vmem>>, %arg11: memref<2x128x512xbf16, #tpu.memory_space<vmem>>, %arg12: memref<2x256x128xbf16, #tpu.memory_space<vmem>>, %arg13: memref<1x128xf32, #tpu.memory_space<vmem>>, %arg14: memref<16x128xf32, #tpu.memory_space<vmem>>) attributes {dimension_semantics = [#tpu.dimension_semantics<arbitrary>], iteration_bounds = array<i64: 1>, scalar_prefetch = 0 : i64, scratch_operands = 0 : i64, tpu.core_type = #tpu.core_type<tc>, window_params = [{pipeline_mode = #tpu.pipeline_mode<synchronous>, transform_indices = @transform_0, window_bounds = array<i64: 16, 1>}, {pipeline_mode = #tpu.pipeline_mode<synchronous>, transform_indices = @transform_1, window_bounds = array<i64: 128, 128>}, {pipeline_mode = #tpu.pipeline_mode<synchronous>, transform_indices = @transform_2, window_bounds = array<i64: 16, 256>}, {pipeline_mode = #tpu.pipeline_mode<synchronous>, transform_indices = @transform_3, window_bounds = array<i64: 16, 256>}, {pipeline_mode = #tpu.pipeline_mode<synchronous>, transform_indices = @transform_4, window_bounds = array<i64: 256, 256>}, {pipeline_mode = #tpu.pipeline_mode<synchronous>, transform_indices = @transform_5, window_bounds = array<i64: 2, 1, 128>}, {pipeline_mode = #tpu.pipeline_mode<synchronous>, transform_indices = @transform_6, window_bounds = array<i64: 2, 128, 256>}, {pipeline_mode = #tpu.pipeline_mode<synchronous>, transform_indices = @transform_7, window_bounds = array<i64: 2, 1, 256>}, {pipeline_mode = #tpu.pipeline_mode<synchronous>, transform_indices = @transform_8, window_bounds = array<i64: 2, 128, 128>}, {pipeline_mode = #tpu.pipeline_mode<synchronous>, transform_indices = @transform_9, window_bounds = array<i64: 2, 1, 128>}, {pipeline_mode = #tpu.pipeline_mode<synchronous>, transform_indices = @transform_10, window_bounds = array<i64: 2, 128, 512>}, {pipeline_mode = #tpu.pipeline_mode<synchronous>, transform_indices = @transform_11, window_bounds = array<i64: 2, 256, 128>}, {pipeline_mode = #tpu.pipeline_mode<synchronous>, transform_indices = @transform_12, window_bounds = array<i64: 1, 128>}, {pipeline_mode = #tpu.pipeline_mode<synchronous>, transform_indices = @transform_13, window_bounds = array<i64: 16, 128>}]} {
    %0 = tpu.iota {dimensions = array<i32: 1>} : vector<16x128xi32>
    %c0 = arith.constant 0 : index
    %c0_0 = arith.constant 0 : index
    %1 = vector.load %arg1[%c0, %c0_0] : memref<16x1xi32, #tpu.memory_space<vmem>>, vector<16x1xi32>
    %2 = vector.broadcast %1 : vector<16x1xi32> to vector<16x128xi32>
    %3 = arith.cmpi eq, %0, %2 : vector<16x128xi32>
    %4 = arith.extui %3 : vector<16x128xi1> to vector<16x128xi32>
    %5 = arith.sitofp %4 : vector<16x128xi32> to vector<16x128xf32>
    %6 = arith.truncf %5 : vector<16x128xf32> to vector<16x128xbf16>
    %c0_1 = arith.constant 0 : index
    %c0_2 = arith.constant 0 : index
    %7 = vector.load %arg2[%c0_1, %c0_2] : memref<128x128xbf16, #tpu.memory_space<vmem>>, vector<128x128xbf16>
    %cst = arith.constant dense<0.000000e+00> : vector<16x128xf32>
    %8 = tpu.matmul %6, %7, %cst {dimension_numbers = #tpu.dot_dimension_numbers<[1], [0], [0], [1], [0, 0, 1, 1], [], []>} : vector<16x128xbf16>, vector<128x128xbf16>, vector<16x128xf32> -> vector<16x128xf32>
    %c0_3 = arith.constant 0 : index
    %c0_4 = arith.constant 0 : index
    %9 = vector.load %arg3[%c0_3, %c0_4] : memref<16x256xf32, #tpu.memory_space<vmem>>, vector<16x256xf32>
    %c0_5 = arith.constant 0 : index
    %c0_6 = arith.constant 0 : index
    %10 = vector.load %arg4[%c0_5, %c0_6] : memref<16x256xf32, #tpu.memory_space<vmem>>, vector<16x256xf32>
    %c0_7 = arith.constant 0 : index
    %c0_8 = arith.constant 0 : index
    %11 = vector.load %arg5[%c0_7, %c0_8] : memref<256x256xbf16, #tpu.memory_space<vmem>>, vector<256x256xbf16>
    %12 = arith.extf %11 : vector<256x256xbf16> to vector<256x256xf32>
    %13 = tpu.iota {dimensions = array<i32: 1>} : vector<16x16xi32>
    %14 = tpu.iota {dimensions = array<i32: 0>} : vector<16x16xi32>
    %15 = arith.cmpi sle, %13, %14 : vector<16x16xi32>
    %cst_9 = arith.constant 0.000000e+00 : f32
    %16 = vector.broadcast %cst_9 : f32 to vector<16x128xf32>
    %17 = arith.addf %16, %8 : vector<16x128xf32>
    %c0_10 = arith.constant 0 : index
    %c0_11 = arith.constant 0 : index
    %c0_12 = arith.constant 0 : index
    %18 = vector.load %arg6[%c0_10, %c0_11, %c0_12] : memref<2x1x128xf32, #tpu.memory_space<vmem>>, vector<1x1x128xf32>
    %19 = vector.shape_cast %18 : vector<1x1x128xf32> to vector<1x128xf32>
    %20 = arith.mulf %17, %17 : vector<16x128xf32>
    %cst_13 = arith.constant dense<0.000000e+00> : vector<16xf32>
    %21 = vector.multi_reduction <add>, %20, %cst_13 [1] : vector<16x128xf32> to vector<16xf32>
    %22 = vector.shape_cast %21 : vector<16xf32> to vector<16x1xf32>
    %cst_14 = arith.constant 1.280000e+02 : f32
    %23 = vector.broadcast %cst_14 : f32 to vector<16x1xf32>
    %24 = arith.divf %22, %23 : vector<16x1xf32>
    %cst_15 = arith.constant 9.99999997E-7 : f32
    %25 = vector.broadcast %cst_15 : f32 to vector<16x1xf32>
    %26 = arith.addf %24, %25 : vector<16x1xf32>
    %27 = math.rsqrt %26 : vector<16x1xf32>
    %28 = vector.broadcast %27 : vector<16x1xf32> to vector<16x128xf32>
    %29 = arith.mulf %17, %28 : vector<16x128xf32>
    %30 = vector.broadcast %19 : vector<1x128xf32> to vector<16x128xf32>
    %31 = arith.mulf %29, %30 : vector<16x128xf32>
    %32 = arith.truncf %31 : vector<16x128xf32> to vector<16x128xbf16>
    %c0_16 = arith.constant 0 : index
    %c0_17 = arith.constant 0 : index
    %c0_18 = arith.constant 0 : index
    %33 = vector.load %arg7[%c0_16, %c0_17, %c0_18] : memref<2x128x256xbf16, #tpu.memory_space<vmem>>, vector<1x128x256xbf16>
    %34 = vector.shape_cast %33 : vector<1x128x256xbf16> to vector<128x256xbf16>
    %cst_19 = arith.constant dense<0.000000e+00> : vector<16x256xf32>
    %35 = tpu.matmul %32, %34, %cst_19 {dimension_numbers = #tpu.dot_dimension_numbers<[1], [0], [0], [1], [0, 0, 1, 1], [], []>} : vector<16x128xbf16>, vector<128x256xbf16>, vector<16x256xf32> -> vector<16x256xf32>
    %c0_20 = arith.constant 0 : index
    %c0_21 = arith.constant 0 : index
    %c0_22 = arith.constant 0 : index
    %36 = vector.load %arg8[%c0_20, %c0_21, %c0_22] : memref<2x1x256xf32, #tpu.memory_space<vmem>>, vector<1x1x256xf32>
    %37 = vector.shape_cast %36 : vector<1x1x256xf32> to vector<1x256xf32>
    %38 = vector.broadcast %37 : vector<1x256xf32> to vector<16x256xf32>
    %39 = arith.addf %35, %38 : vector<16x256xf32>
    %40 = arith.mulf %39, %9 : vector<16x256xf32>
    %cst_23 = arith.constant dense<0.000000e+00> : vector<16x256xf32>
    %41 = tpu.matmul %39, %12, %cst_23 {dimension_numbers = #tpu.dot_dimension_numbers<[1], [0], [0], [1], [0, 0, 1, 1], [], []>} : vector<16x256xf32>, vector<256x256xf32>, vector<16x256xf32> -> vector<16x256xf32>
    %42 = arith.mulf %41, %10 : vector<16x256xf32>
    %43 = arith.addf %40, %42 : vector<16x256xf32>
    %44 = vector.extract_strided_slice %43 {offsets = [0, 0], sizes = [16, 128], strides = [1, 1]} : vector<16x256xf32> to vector<16x128xf32>
    %45 = vector.extract_strided_slice %43 {offsets = [0, 128], sizes = [16, 64], strides = [1, 1]} : vector<16x256xf32> to vector<16x64xf32>
    %46 = vector.extract_strided_slice %43 {offsets = [0, 192], sizes = [16, 64], strides = [1, 1]} : vector<16x256xf32> to vector<16x64xf32>
    %c0_24 = arith.constant 0 : index
    %c0_25 = arith.constant 0 : index
    %c0_26 = arith.constant 0 : index
    %47 = vector.load %arg9[%c0_24, %c0_25, %c0_26] : memref<2x128x128xbf16, #tpu.memory_space<vmem>>, vector<1x128x128xbf16>
    %48 = vector.shape_cast %47 : vector<1x128x128xbf16> to vector<128x128xbf16>
    %cst_27 = arith.constant 0.000000e+00 : f32
    %49 = vector.broadcast %cst_27 : f32 to vector<16x128xf32>
    %50 = vector.extract_strided_slice %44 {offsets = [0, 0], sizes = [16, 32], strides = [1, 1]} : vector<16x128xf32> to vector<16x32xf32>
    %51 = vector.extract_strided_slice %45 {offsets = [0, 0], sizes = [16, 32], strides = [1, 1]} : vector<16x64xf32> to vector<16x32xf32>
    %52 = vector.extract_strided_slice %46 {offsets = [0, 0], sizes = [16, 32], strides = [1, 1]} : vector<16x64xf32> to vector<16x32xf32>
    %cst_28 = arith.constant dense<0.000000e+00> : vector<16x16xf32>
    %53 = tpu.matmul %50, %51, %cst_28 {dimension_numbers = #tpu.dot_dimension_numbers<[1], [1], [0], [0], [0, 0, 1, 0], [], []>} : vector<16x32xf32>, vector<16x32xf32>, vector<16x16xf32> -> vector<16x16xf32>
    %cst_29 = arith.constant 0xFF800000 : f32
    %54 = vector.broadcast %cst_29 : f32 to vector<16x16xf32>
    %55 = arith.select %15, %53, %54 : vector<16x16xi1>, vector<16x16xf32>
    %cst_30 = arith.constant dense<0xFF800000> : vector<16xf32>
    %56 = vector.multi_reduction <maximumf>, %55, %cst_30 [1] : vector<16x16xf32> to vector<16xf32>
    %57 = vector.shape_cast %56 : vector<16xf32> to vector<16x1xf32>
    %58 = vector.broadcast %57 : vector<16x1xf32> to vector<16x16xf32>
    %59 = arith.subf %55, %58 : vector<16x16xf32>
    %60 = math.exp %59 : vector<16x16xf32>
    %cst_31 = arith.constant dense<0.000000e+00> : vector<16xf32>
    %61 = vector.multi_reduction <add>, %60, %cst_31 [1] : vector<16x16xf32> to vector<16xf32>
    %62 = vector.shape_cast %61 : vector<16xf32> to vector<16x1xf32>
    %63 = tpu.reciprocal %62 {approx = true} : vector<16x1xf32> -> vector<16x1xf32>
    %64 = vector.broadcast %63 : vector<16x1xf32> to vector<16x16xf32>
    %65 = arith.mulf %60, %64 : vector<16x16xf32>
    %cst_32 = arith.constant dense<0.000000e+00> : vector<16x32xf32>
    %66 = tpu.matmul %65, %52, %cst_32 {dimension_numbers = #tpu.dot_dimension_numbers<[1], [0], [0], [1], [0, 0, 1, 1], [], []>} : vector<16x16xf32>, vector<16x32xf32>, vector<16x32xf32> -> vector<16x32xf32>
    %67 = arith.truncf %66 : vector<16x32xf32> to vector<16x32xbf16>
    %68 = vector.extract_strided_slice %48 {offsets = [0, 0], sizes = [32, 128], strides = [1, 1]} : vector<128x128xbf16> to vector<32x128xbf16>
    %cst_33 = arith.constant dense<0.000000e+00> : vector<16x128xf32>
    %69 = tpu.matmul %67, %68, %cst_33 {dimension_numbers = #tpu.dot_dimension_numbers<[1], [0], [0], [1], [0, 0, 1, 1], [], []>} : vector<16x32xbf16>, vector<32x128xbf16>, vector<16x128xf32> -> vector<16x128xf32>
    %70 = arith.addf %49, %69 : vector<16x128xf32>
    %71 = vector.extract_strided_slice %44 {offsets = [0, 32], sizes = [16, 32], strides = [1, 1]} : vector<16x128xf32> to vector<16x32xf32>
    %72 = vector.extract_strided_slice %45 {offsets = [0, 0], sizes = [16, 32], strides = [1, 1]} : vector<16x64xf32> to vector<16x32xf32>
    %73 = vector.extract_strided_slice %46 {offsets = [0, 0], sizes = [16, 32], strides = [1, 1]} : vector<16x64xf32> to vector<16x32xf32>
    %cst_34 = arith.constant dense<0.000000e+00> : vector<16x16xf32>
    %74 = tpu.matmul %71, %72, %cst_34 {dimension_numbers = #tpu.dot_dimension_numbers<[1], [1], [0], [0], [0, 0, 1, 0], [], []>} : vector<16x32xf32>, vector<16x32xf32>, vector<16x16xf32> -> vector<16x16xf32>
    %cst_35 = arith.constant 0xFF800000 : f32
    %75 = vector.broadcast %cst_35 : f32 to vector<16x16xf32>
    %76 = arith.select %15, %74, %75 : vector<16x16xi1>, vector<16x16xf32>
    %cst_36 = arith.constant dense<0xFF800000> : vector<16xf32>
    %77 = vector.multi_reduction <maximumf>, %76, %cst_36 [1] : vector<16x16xf32> to vector<16xf32>
    %78 = vector.shape_cast %77 : vector<16xf32> to vector<16x1xf32>
    %79 = vector.broadcast %78 : vector<16x1xf32> to vector<16x16xf32>
    %80 = arith.subf %76, %79 : vector<16x16xf32>
    %81 = math.exp %80 : vector<16x16xf32>
    %cst_37 = arith.constant dense<0.000000e+00> : vector<16xf32>
    %82 = vector.multi_reduction <add>, %81, %cst_37 [1] : vector<16x16xf32> to vector<16xf32>
    %83 = vector.shape_cast %82 : vector<16xf32> to vector<16x1xf32>
    %84 = tpu.reciprocal %83 {approx = true} : vector<16x1xf32> -> vector<16x1xf32>
    %85 = vector.broadcast %84 : vector<16x1xf32> to vector<16x16xf32>
    %86 = arith.mulf %81, %85 : vector<16x16xf32>
    %cst_38 = arith.constant dense<0.000000e+00> : vector<16x32xf32>
    %87 = tpu.matmul %86, %73, %cst_38 {dimension_numbers = #tpu.dot_dimension_numbers<[1], [0], [0], [1], [0, 0, 1, 1], [], []>} : vector<16x16xf32>, vector<16x32xf32>, vector<16x32xf32> -> vector<16x32xf32>
    %88 = arith.truncf %87 : vector<16x32xf32> to vector<16x32xbf16>
    %89 = vector.extract_strided_slice %48 {offsets = [32, 0], sizes = [32, 128], strides = [1, 1]} : vector<128x128xbf16> to vector<32x128xbf16>
    %cst_39 = arith.constant dense<0.000000e+00> : vector<16x128xf32>
    %90 = tpu.matmul %88, %89, %cst_39 {dimension_numbers = #tpu.dot_dimension_numbers<[1], [0], [0], [1], [0, 0, 1, 1], [], []>} : vector<16x32xbf16>, vector<32x128xbf16>, vector<16x128xf32> -> vector<16x128xf32>
    %91 = arith.addf %70, %90 : vector<16x128xf32>
    %92 = vector.extract_strided_slice %44 {offsets = [0, 64], sizes = [16, 32], strides = [1, 1]} : vector<16x128xf32> to vector<16x32xf32>
    %93 = vector.extract_strided_slice %45 {offsets = [0, 32], sizes = [16, 32], strides = [1, 1]} : vector<16x64xf32> to vector<16x32xf32>
    %94 = vector.extract_strided_slice %46 {offsets = [0, 32], sizes = [16, 32], strides = [1, 1]} : vector<16x64xf32> to vector<16x32xf32>
    %cst_40 = arith.constant dense<0.000000e+00> : vector<16x16xf32>
    %95 = tpu.matmul %92, %93, %cst_40 {dimension_numbers = #tpu.dot_dimension_numbers<[1], [1], [0], [0], [0, 0, 1, 0], [], []>} : vector<16x32xf32>, vector<16x32xf32>, vector<16x16xf32> -> vector<16x16xf32>
    %cst_41 = arith.constant 0xFF800000 : f32
    %96 = vector.broadcast %cst_41 : f32 to vector<16x16xf32>
    %97 = arith.select %15, %95, %96 : vector<16x16xi1>, vector<16x16xf32>
    %cst_42 = arith.constant dense<0xFF800000> : vector<16xf32>
    %98 = vector.multi_reduction <maximumf>, %97, %cst_42 [1] : vector<16x16xf32> to vector<16xf32>
    %99 = vector.shape_cast %98 : vector<16xf32> to vector<16x1xf32>
    %100 = vector.broadcast %99 : vector<16x1xf32> to vector<16x16xf32>
    %101 = arith.subf %97, %100 : vector<16x16xf32>
    %102 = math.exp %101 : vector<16x16xf32>
    %cst_43 = arith.constant dense<0.000000e+00> : vector<16xf32>
    %103 = vector.multi_reduction <add>, %102, %cst_43 [1] : vector<16x16xf32> to vector<16xf32>
    %104 = vector.shape_cast %103 : vector<16xf32> to vector<16x1xf32>
    %105 = tpu.reciprocal %104 {approx = true} : vector<16x1xf32> -> vector<16x1xf32>
    %106 = vector.broadcast %105 : vector<16x1xf32> to vector<16x16xf32>
    %107 = arith.mulf %102, %106 : vector<16x16xf32>
    %cst_44 = arith.constant dense<0.000000e+00> : vector<16x32xf32>
    %108 = tpu.matmul %107, %94, %cst_44 {dimension_numbers = #tpu.dot_dimension_numbers<[1], [0], [0], [1], [0, 0, 1, 1], [], []>} : vector<16x16xf32>, vector<16x32xf32>, vector<16x32xf32> -> vector<16x32xf32>
    %109 = arith.truncf %108 : vector<16x32xf32> to vector<16x32xbf16>
    %110 = vector.extract_strided_slice %48 {offsets = [64, 0], sizes = [32, 128], strides = [1, 1]} : vector<128x128xbf16> to vector<32x128xbf16>
    %cst_45 = arith.constant dense<0.000000e+00> : vector<16x128xf32>
    %111 = tpu.matmul %109, %110, %cst_45 {dimension_numbers = #tpu.dot_dimension_numbers<[1], [0], [0], [1], [0, 0, 1, 1], [], []>} : vector<16x32xbf16>, vector<32x128xbf16>, vector<16x128xf32> -> vector<16x128xf32>
    %112 = arith.addf %91, %111 : vector<16x128xf32>
    %113 = vector.extract_strided_slice %44 {offsets = [0, 96], sizes = [16, 32], strides = [1, 1]} : vector<16x128xf32> to vector<16x32xf32>
    %114 = vector.extract_strided_slice %45 {offsets = [0, 32], sizes = [16, 32], strides = [1, 1]} : vector<16x64xf32> to vector<16x32xf32>
    %115 = vector.extract_strided_slice %46 {offsets = [0, 32], sizes = [16, 32], strides = [1, 1]} : vector<16x64xf32> to vector<16x32xf32>
    %cst_46 = arith.constant dense<0.000000e+00> : vector<16x16xf32>
    %116 = tpu.matmul %113, %114, %cst_46 {dimension_numbers = #tpu.dot_dimension_numbers<[1], [1], [0], [0], [0, 0, 1, 0], [], []>} : vector<16x32xf32>, vector<16x32xf32>, vector<16x16xf32> -> vector<16x16xf32>
    %cst_47 = arith.constant 0xFF800000 : f32
    %117 = vector.broadcast %cst_47 : f32 to vector<16x16xf32>
    %118 = arith.select %15, %116, %117 : vector<16x16xi1>, vector<16x16xf32>
    %cst_48 = arith.constant dense<0xFF800000> : vector<16xf32>
    %119 = vector.multi_reduction <maximumf>, %118, %cst_48 [1] : vector<16x16xf32> to vector<16xf32>
    %120 = vector.shape_cast %119 : vector<16xf32> to vector<16x1xf32>
    %121 = vector.broadcast %120 : vector<16x1xf32> to vector<16x16xf32>
    %122 = arith.subf %118, %121 : vector<16x16xf32>
    %123 = math.exp %122 : vector<16x16xf32>
    %cst_49 = arith.constant dense<0.000000e+00> : vector<16xf32>
    %124 = vector.multi_reduction <add>, %123, %cst_49 [1] : vector<16x16xf32> to vector<16xf32>
    %125 = vector.shape_cast %124 : vector<16xf32> to vector<16x1xf32>
    %126 = tpu.reciprocal %125 {approx = true} : vector<16x1xf32> -> vector<16x1xf32>
    %127 = vector.broadcast %126 : vector<16x1xf32> to vector<16x16xf32>
    %128 = arith.mulf %123, %127 : vector<16x16xf32>
    %cst_50 = arith.constant dense<0.000000e+00> : vector<16x32xf32>
    %129 = tpu.matmul %128, %115, %cst_50 {dimension_numbers = #tpu.dot_dimension_numbers<[1], [0], [0], [1], [0, 0, 1, 1], [], []>} : vector<16x16xf32>, vector<16x32xf32>, vector<16x32xf32> -> vector<16x32xf32>
    %130 = arith.truncf %129 : vector<16x32xf32> to vector<16x32xbf16>
    %131 = vector.extract_strided_slice %48 {offsets = [96, 0], sizes = [32, 128], strides = [1, 1]} : vector<128x128xbf16> to vector<32x128xbf16>
    %cst_51 = arith.constant dense<0.000000e+00> : vector<16x128xf32>
    %132 = tpu.matmul %130, %131, %cst_51 {dimension_numbers = #tpu.dot_dimension_numbers<[1], [0], [0], [1], [0, 0, 1, 1], [], []>} : vector<16x32xbf16>, vector<32x128xbf16>, vector<16x128xf32> -> vector<16x128xf32>
    %133 = arith.addf %112, %132 : vector<16x128xf32>
    %134 = arith.addf %17, %133 : vector<16x128xf32>
    %c0_52 = arith.constant 0 : index
    %c0_53 = arith.constant 0 : index
    %c0_54 = arith.constant 0 : index
    %135 = vector.load %arg10[%c0_52, %c0_53, %c0_54] : memref<2x1x128xf32, #tpu.memory_space<vmem>>, vector<1x1x128xf32>
    %136 = vector.shape_cast %135 : vector<1x1x128xf32> to vector<1x128xf32>
    %137 = arith.mulf %134, %134 : vector<16x128xf32>
    %cst_55 = arith.constant dense<0.000000e+00> : vector<16xf32>
    %138 = vector.multi_reduction <add>, %137, %cst_55 [1] : vector<16x128xf32> to vector<16xf32>
    %139 = vector.shape_cast %138 : vector<16xf32> to vector<16x1xf32>
    %cst_56 = arith.constant 1.280000e+02 : f32
    %140 = vector.broadcast %cst_56 : f32 to vector<16x1xf32>
    %141 = arith.divf %139, %140 : vector<16x1xf32>
    %cst_57 = arith.constant 9.99999997E-7 : f32
    %142 = vector.broadcast %cst_57 : f32 to vector<16x1xf32>
    %143 = arith.addf %141, %142 : vector<16x1xf32>
    %144 = math.rsqrt %143 : vector<16x1xf32>
    %145 = vector.broadcast %144 : vector<16x1xf32> to vector<16x128xf32>
    %146 = arith.mulf %134, %145 : vector<16x128xf32>
    %147 = vector.broadcast %136 : vector<1x128xf32> to vector<16x128xf32>
    %148 = arith.mulf %146, %147 : vector<16x128xf32>
    %149 = arith.truncf %148 : vector<16x128xf32> to vector<16x128xbf16>
    %c0_58 = arith.constant 0 : index
    %c0_59 = arith.constant 0 : index
    %c0_60 = arith.constant 0 : index
    %150 = vector.load %arg11[%c0_58, %c0_59, %c0_60] : memref<2x128x512xbf16, #tpu.memory_space<vmem>>, vector<1x128x512xbf16>
    %151 = vector.shape_cast %150 : vector<1x128x512xbf16> to vector<128x512xbf16>
    %cst_61 = arith.constant dense<0.000000e+00> : vector<16x512xf32>
    %152 = tpu.matmul %149, %151, %cst_61 {dimension_numbers = #tpu.dot_dimension_numbers<[1], [0], [0], [1], [0, 0, 1, 1], [], []>} : vector<16x128xbf16>, vector<128x512xbf16>, vector<16x512xf32> -> vector<16x512xf32>
    %153 = vector.extract_strided_slice %152 {offsets = [0, 0], sizes = [16, 256], strides = [1, 1]} : vector<16x512xf32> to vector<16x256xf32>
    %154 = vector.extract_strided_slice %152 {offsets = [0, 256], sizes = [16, 256], strides = [1, 1]} : vector<16x512xf32> to vector<16x256xf32>
    %155 = arith.negf %153 : vector<16x256xf32>
    %156 = math.exp %155 : vector<16x256xf32>
    %cst_62 = arith.constant 1.000000e+00 : f32
    %157 = vector.broadcast %cst_62 : f32 to vector<16x256xf32>
    %158 = arith.addf %157, %156 : vector<16x256xf32>
    %159 = arith.divf %157, %158 : vector<16x256xf32>
    %160 = arith.mulf %153, %159 : vector<16x256xf32>
    %161 = arith.mulf %160, %154 : vector<16x256xf32>
    %162 = arith.truncf %161 : vector<16x256xf32> to vector<16x256xbf16>
    %c0_63 = arith.constant 0 : index
    %c0_64 = arith.constant 0 : index
    %c0_65 = arith.constant 0 : index
    %163 = vector.load %arg12[%c0_63, %c0_64, %c0_65] : memref<2x256x128xbf16, #tpu.memory_space<vmem>>, vector<1x256x128xbf16>
    %164 = vector.shape_cast %163 : vector<1x256x128xbf16> to vector<256x128xbf16>
    %cst_66 = arith.constant dense<0.000000e+00> : vector<16x128xf32>
    %165 = tpu.matmul %162, %164, %cst_66 {dimension_numbers = #tpu.dot_dimension_numbers<[1], [0], [0], [1], [0, 0, 1, 1], [], []>} : vector<16x256xbf16>, vector<256x128xbf16>, vector<16x128xf32> -> vector<16x128xf32>
    %166 = arith.addf %134, %165 : vector<16x128xf32>
    %c1 = arith.constant 1 : index
    %c0_67 = arith.constant 0 : index
    %c0_68 = arith.constant 0 : index
    %167 = vector.load %arg6[%c1, %c0_67, %c0_68] : memref<2x1x128xf32, #tpu.memory_space<vmem>>, vector<1x1x128xf32>
    %168 = vector.shape_cast %167 : vector<1x1x128xf32> to vector<1x128xf32>
    %169 = arith.mulf %166, %166 : vector<16x128xf32>
    %cst_69 = arith.constant dense<0.000000e+00> : vector<16xf32>
    %170 = vector.multi_reduction <add>, %169, %cst_69 [1] : vector<16x128xf32> to vector<16xf32>
    %171 = vector.shape_cast %170 : vector<16xf32> to vector<16x1xf32>
    %cst_70 = arith.constant 1.280000e+02 : f32
    %172 = vector.broadcast %cst_70 : f32 to vector<16x1xf32>
    %173 = arith.divf %171, %172 : vector<16x1xf32>
    %cst_71 = arith.constant 9.99999997E-7 : f32
    %174 = vector.broadcast %cst_71 : f32 to vector<16x1xf32>
    %175 = arith.addf %173, %174 : vector<16x1xf32>
    %176 = math.rsqrt %175 : vector<16x1xf32>
    %177 = vector.broadcast %176 : vector<16x1xf32> to vector<16x128xf32>
    %178 = arith.mulf %166, %177 : vector<16x128xf32>
    %179 = vector.broadcast %168 : vector<1x128xf32> to vector<16x128xf32>
    %180 = arith.mulf %178, %179 : vector<16x128xf32>
    %181 = arith.truncf %180 : vector<16x128xf32> to vector<16x128xbf16>
    %c1_72 = arith.constant 1 : index
    %c0_73 = arith.constant 0 : index
    %c0_74 = arith.constant 0 : index
    %182 = vector.load %arg7[%c1_72, %c0_73, %c0_74] : memref<2x128x256xbf16, #tpu.memory_space<vmem>>, vector<1x128x256xbf16>
    %183 = vector.shape_cast %182 : vector<1x128x256xbf16> to vector<128x256xbf16>
    %cst_75 = arith.constant dense<0.000000e+00> : vector<16x256xf32>
    %184 = tpu.matmul %181, %183, %cst_75 {dimension_numbers = #tpu.dot_dimension_numbers<[1], [0], [0], [1], [0, 0, 1, 1], [], []>} : vector<16x128xbf16>, vector<128x256xbf16>, vector<16x256xf32> -> vector<16x256xf32>
    %c1_76 = arith.constant 1 : index
    %c0_77 = arith.constant 0 : index
    %c0_78 = arith.constant 0 : index
    %185 = vector.load %arg8[%c1_76, %c0_77, %c0_78] : memref<2x1x256xf32, #tpu.memory_space<vmem>>, vector<1x1x256xf32>
    %186 = vector.shape_cast %185 : vector<1x1x256xf32> to vector<1x256xf32>
    %187 = vector.broadcast %186 : vector<1x256xf32> to vector<16x256xf32>
    %188 = arith.addf %184, %187 : vector<16x256xf32>
    %189 = arith.mulf %188, %9 : vector<16x256xf32>
    %cst_79 = arith.constant dense<0.000000e+00> : vector<16x256xf32>
    %190 = tpu.matmul %188, %12, %cst_79 {dimension_numbers = #tpu.dot_dimension_numbers<[1], [0], [0], [1], [0, 0, 1, 1], [], []>} : vector<16x256xf32>, vector<256x256xf32>, vector<16x256xf32> -> vector<16x256xf32>
    %191 = arith.mulf %190, %10 : vector<16x256xf32>
    %192 = arith.addf %189, %191 : vector<16x256xf32>
    %193 = vector.extract_strided_slice %192 {offsets = [0, 0], sizes = [16, 128], strides = [1, 1]} : vector<16x256xf32> to vector<16x128xf32>
    %194 = vector.extract_strided_slice %192 {offsets = [0, 128], sizes = [16, 64], strides = [1, 1]} : vector<16x256xf32> to vector<16x64xf32>
    %195 = vector.extract_strided_slice %192 {offsets = [0, 192], sizes = [16, 64], strides = [1, 1]} : vector<16x256xf32> to vector<16x64xf32>
    %c1_80 = arith.constant 1 : index
    %c0_81 = arith.constant 0 : index
    %c0_82 = arith.constant 0 : index
    %196 = vector.load %arg9[%c1_80, %c0_81, %c0_82] : memref<2x128x128xbf16, #tpu.memory_space<vmem>>, vector<1x128x128xbf16>
    %197 = vector.shape_cast %196 : vector<1x128x128xbf16> to vector<128x128xbf16>
    %cst_83 = arith.constant 0.000000e+00 : f32
    %198 = vector.broadcast %cst_83 : f32 to vector<16x128xf32>
    %199 = vector.extract_strided_slice %193 {offsets = [0, 0], sizes = [16, 32], strides = [1, 1]} : vector<16x128xf32> to vector<16x32xf32>
    %200 = vector.extract_strided_slice %194 {offsets = [0, 0], sizes = [16, 32], strides = [1, 1]} : vector<16x64xf32> to vector<16x32xf32>
    %201 = vector.extract_strided_slice %195 {offsets = [0, 0], sizes = [16, 32], strides = [1, 1]} : vector<16x64xf32> to vector<16x32xf32>
    %cst_84 = arith.constant dense<0.000000e+00> : vector<16x16xf32>
    %202 = tpu.matmul %199, %200, %cst_84 {dimension_numbers = #tpu.dot_dimension_numbers<[1], [1], [0], [0], [0, 0, 1, 0], [], []>} : vector<16x32xf32>, vector<16x32xf32>, vector<16x16xf32> -> vector<16x16xf32>
    %cst_85 = arith.constant 0xFF800000 : f32
    %203 = vector.broadcast %cst_85 : f32 to vector<16x16xf32>
    %204 = arith.select %15, %202, %203 : vector<16x16xi1>, vector<16x16xf32>
    %cst_86 = arith.constant dense<0xFF800000> : vector<16xf32>
    %205 = vector.multi_reduction <maximumf>, %204, %cst_86 [1] : vector<16x16xf32> to vector<16xf32>
    %206 = vector.shape_cast %205 : vector<16xf32> to vector<16x1xf32>
    %207 = vector.broadcast %206 : vector<16x1xf32> to vector<16x16xf32>
    %208 = arith.subf %204, %207 : vector<16x16xf32>
    %209 = math.exp %208 : vector<16x16xf32>
    %cst_87 = arith.constant dense<0.000000e+00> : vector<16xf32>
    %210 = vector.multi_reduction <add>, %209, %cst_87 [1] : vector<16x16xf32> to vector<16xf32>
    %211 = vector.shape_cast %210 : vector<16xf32> to vector<16x1xf32>
    %212 = tpu.reciprocal %211 {approx = true} : vector<16x1xf32> -> vector<16x1xf32>
    %213 = vector.broadcast %212 : vector<16x1xf32> to vector<16x16xf32>
    %214 = arith.mulf %209, %213 : vector<16x16xf32>
    %cst_88 = arith.constant dense<0.000000e+00> : vector<16x32xf32>
    %215 = tpu.matmul %214, %201, %cst_88 {dimension_numbers = #tpu.dot_dimension_numbers<[1], [0], [0], [1], [0, 0, 1, 1], [], []>} : vector<16x16xf32>, vector<16x32xf32>, vector<16x32xf32> -> vector<16x32xf32>
    %216 = arith.truncf %215 : vector<16x32xf32> to vector<16x32xbf16>
    %217 = vector.extract_strided_slice %197 {offsets = [0, 0], sizes = [32, 128], strides = [1, 1]} : vector<128x128xbf16> to vector<32x128xbf16>
    %cst_89 = arith.constant dense<0.000000e+00> : vector<16x128xf32>
    %218 = tpu.matmul %216, %217, %cst_89 {dimension_numbers = #tpu.dot_dimension_numbers<[1], [0], [0], [1], [0, 0, 1, 1], [], []>} : vector<16x32xbf16>, vector<32x128xbf16>, vector<16x128xf32> -> vector<16x128xf32>
    %219 = arith.addf %198, %218 : vector<16x128xf32>
    %220 = vector.extract_strided_slice %193 {offsets = [0, 32], sizes = [16, 32], strides = [1, 1]} : vector<16x128xf32> to vector<16x32xf32>
    %221 = vector.extract_strided_slice %194 {offsets = [0, 0], sizes = [16, 32], strides = [1, 1]} : vector<16x64xf32> to vector<16x32xf32>
    %222 = vector.extract_strided_slice %195 {offsets = [0, 0], sizes = [16, 32], strides = [1, 1]} : vector<16x64xf32> to vector<16x32xf32>
    %cst_90 = arith.constant dense<0.000000e+00> : vector<16x16xf32>
    %223 = tpu.matmul %220, %221, %cst_90 {dimension_numbers = #tpu.dot_dimension_numbers<[1], [1], [0], [0], [0, 0, 1, 0], [], []>} : vector<16x32xf32>, vector<16x32xf32>, vector<16x16xf32> -> vector<16x16xf32>
    %cst_91 = arith.constant 0xFF800000 : f32
    %224 = vector.broadcast %cst_91 : f32 to vector<16x16xf32>
    %225 = arith.select %15, %223, %224 : vector<16x16xi1>, vector<16x16xf32>
    %cst_92 = arith.constant dense<0xFF800000> : vector<16xf32>
    %226 = vector.multi_reduction <maximumf>, %225, %cst_92 [1] : vector<16x16xf32> to vector<16xf32>
    %227 = vector.shape_cast %226 : vector<16xf32> to vector<16x1xf32>
    %228 = vector.broadcast %227 : vector<16x1xf32> to vector<16x16xf32>
    %229 = arith.subf %225, %228 : vector<16x16xf32>
    %230 = math.exp %229 : vector<16x16xf32>
    %cst_93 = arith.constant dense<0.000000e+00> : vector<16xf32>
    %231 = vector.multi_reduction <add>, %230, %cst_93 [1] : vector<16x16xf32> to vector<16xf32>
    %232 = vector.shape_cast %231 : vector<16xf32> to vector<16x1xf32>
    %233 = tpu.reciprocal %232 {approx = true} : vector<16x1xf32> -> vector<16x1xf32>
    %234 = vector.broadcast %233 : vector<16x1xf32> to vector<16x16xf32>
    %235 = arith.mulf %230, %234 : vector<16x16xf32>
    %cst_94 = arith.constant dense<0.000000e+00> : vector<16x32xf32>
    %236 = tpu.matmul %235, %222, %cst_94 {dimension_numbers = #tpu.dot_dimension_numbers<[1], [0], [0], [1], [0, 0, 1, 1], [], []>} : vector<16x16xf32>, vector<16x32xf32>, vector<16x32xf32> -> vector<16x32xf32>
    %237 = arith.truncf %236 : vector<16x32xf32> to vector<16x32xbf16>
    %238 = vector.extract_strided_slice %197 {offsets = [32, 0], sizes = [32, 128], strides = [1, 1]} : vector<128x128xbf16> to vector<32x128xbf16>
    %cst_95 = arith.constant dense<0.000000e+00> : vector<16x128xf32>
    %239 = tpu.matmul %237, %238, %cst_95 {dimension_numbers = #tpu.dot_dimension_numbers<[1], [0], [0], [1], [0, 0, 1, 1], [], []>} : vector<16x32xbf16>, vector<32x128xbf16>, vector<16x128xf32> -> vector<16x128xf32>
    %240 = arith.addf %219, %239 : vector<16x128xf32>
    %241 = vector.extract_strided_slice %193 {offsets = [0, 64], sizes = [16, 32], strides = [1, 1]} : vector<16x128xf32> to vector<16x32xf32>
    %242 = vector.extract_strided_slice %194 {offsets = [0, 32], sizes = [16, 32], strides = [1, 1]} : vector<16x64xf32> to vector<16x32xf32>
    %243 = vector.extract_strided_slice %195 {offsets = [0, 32], sizes = [16, 32], strides = [1, 1]} : vector<16x64xf32> to vector<16x32xf32>
    %cst_96 = arith.constant dense<0.000000e+00> : vector<16x16xf32>
    %244 = tpu.matmul %241, %242, %cst_96 {dimension_numbers = #tpu.dot_dimension_numbers<[1], [1], [0], [0], [0, 0, 1, 0], [], []>} : vector<16x32xf32>, vector<16x32xf32>, vector<16x16xf32> -> vector<16x16xf32>
    %cst_97 = arith.constant 0xFF800000 : f32
    %245 = vector.broadcast %cst_97 : f32 to vector<16x16xf32>
    %246 = arith.select %15, %244, %245 : vector<16x16xi1>, vector<16x16xf32>
    %cst_98 = arith.constant dense<0xFF800000> : vector<16xf32>
    %247 = vector.multi_reduction <maximumf>, %246, %cst_98 [1] : vector<16x16xf32> to vector<16xf32>
    %248 = vector.shape_cast %247 : vector<16xf32> to vector<16x1xf32>
    %249 = vector.broadcast %248 : vector<16x1xf32> to vector<16x16xf32>
    %250 = arith.subf %246, %249 : vector<16x16xf32>
    %251 = math.exp %250 : vector<16x16xf32>
    %cst_99 = arith.constant dense<0.000000e+00> : vector<16xf32>
    %252 = vector.multi_reduction <add>, %251, %cst_99 [1] : vector<16x16xf32> to vector<16xf32>
    %253 = vector.shape_cast %252 : vector<16xf32> to vector<16x1xf32>
    %254 = tpu.reciprocal %253 {approx = true} : vector<16x1xf32> -> vector<16x1xf32>
    %255 = vector.broadcast %254 : vector<16x1xf32> to vector<16x16xf32>
    %256 = arith.mulf %251, %255 : vector<16x16xf32>
    %cst_100 = arith.constant dense<0.000000e+00> : vector<16x32xf32>
    %257 = tpu.matmul %256, %243, %cst_100 {dimension_numbers = #tpu.dot_dimension_numbers<[1], [0], [0], [1], [0, 0, 1, 1], [], []>} : vector<16x16xf32>, vector<16x32xf32>, vector<16x32xf32> -> vector<16x32xf32>
    %258 = arith.truncf %257 : vector<16x32xf32> to vector<16x32xbf16>
    %259 = vector.extract_strided_slice %197 {offsets = [64, 0], sizes = [32, 128], strides = [1, 1]} : vector<128x128xbf16> to vector<32x128xbf16>
    %cst_101 = arith.constant dense<0.000000e+00> : vector<16x128xf32>
    %260 = tpu.matmul %258, %259, %cst_101 {dimension_numbers = #tpu.dot_dimension_numbers<[1], [0], [0], [1], [0, 0, 1, 1], [], []>} : vector<16x32xbf16>, vector<32x128xbf16>, vector<16x128xf32> -> vector<16x128xf32>
    %261 = arith.addf %240, %260 : vector<16x128xf32>
    %262 = vector.extract_strided_slice %193 {offsets = [0, 96], sizes = [16, 32], strides = [1, 1]} : vector<16x128xf32> to vector<16x32xf32>
    %263 = vector.extract_strided_slice %194 {offsets = [0, 32], sizes = [16, 32], strides = [1, 1]} : vector<16x64xf32> to vector<16x32xf32>
    %264 = vector.extract_strided_slice %195 {offsets = [0, 32], sizes = [16, 32], strides = [1, 1]} : vector<16x64xf32> to vector<16x32xf32>
    %cst_102 = arith.constant dense<0.000000e+00> : vector<16x16xf32>
    %265 = tpu.matmul %262, %263, %cst_102 {dimension_numbers = #tpu.dot_dimension_numbers<[1], [1], [0], [0], [0, 0, 1, 0], [], []>} : vector<16x32xf32>, vector<16x32xf32>, vector<16x16xf32> -> vector<16x16xf32>
    %cst_103 = arith.constant 0xFF800000 : f32
    %266 = vector.broadcast %cst_103 : f32 to vector<16x16xf32>
    %267 = arith.select %15, %265, %266 : vector<16x16xi1>, vector<16x16xf32>
    %cst_104 = arith.constant dense<0xFF800000> : vector<16xf32>
    %268 = vector.multi_reduction <maximumf>, %267, %cst_104 [1] : vector<16x16xf32> to vector<16xf32>
    %269 = vector.shape_cast %268 : vector<16xf32> to vector<16x1xf32>
    %270 = vector.broadcast %269 : vector<16x1xf32> to vector<16x16xf32>
    %271 = arith.subf %267, %270 : vector<16x16xf32>
    %272 = math.exp %271 : vector<16x16xf32>
    %cst_105 = arith.constant dense<0.000000e+00> : vector<16xf32>
    %273 = vector.multi_reduction <add>, %272, %cst_105 [1] : vector<16x16xf32> to vector<16xf32>
    %274 = vector.shape_cast %273 : vector<16xf32> to vector<16x1xf32>
    %275 = tpu.reciprocal %274 {approx = true} : vector<16x1xf32> -> vector<16x1xf32>
    %276 = vector.broadcast %275 : vector<16x1xf32> to vector<16x16xf32>
    %277 = arith.mulf %272, %276 : vector<16x16xf32>
    %cst_106 = arith.constant dense<0.000000e+00> : vector<16x32xf32>
    %278 = tpu.matmul %277, %264, %cst_106 {dimension_numbers = #tpu.dot_dimension_numbers<[1], [0], [0], [1], [0, 0, 1, 1], [], []>} : vector<16x16xf32>, vector<16x32xf32>, vector<16x32xf32> -> vector<16x32xf32>
    %279 = arith.truncf %278 : vector<16x32xf32> to vector<16x32xbf16>
    %280 = vector.extract_strided_slice %197 {offsets = [96, 0], sizes = [32, 128], strides = [1, 1]} : vector<128x128xbf16> to vector<32x128xbf16>
    %cst_107 = arith.constant dense<0.000000e+00> : vector<16x128xf32>
    %281 = tpu.matmul %279, %280, %cst_107 {dimension_numbers = #tpu.dot_dimension_numbers<[1], [0], [0], [1], [0, 0, 1, 1], [], []>} : vector<16x32xbf16>, vector<32x128xbf16>, vector<16x128xf32> -> vector<16x128xf32>
    %282 = arith.addf %261, %281 : vector<16x128xf32>
    %283 = arith.addf %166, %282 : vector<16x128xf32>
    %c1_108 = arith.constant 1 : index
    %c0_109 = arith.constant 0 : index
    %c0_110 = arith.constant 0 : index
    %284 = vector.load %arg10[%c1_108, %c0_109, %c0_110] : memref<2x1x128xf32, #tpu.memory_space<vmem>>, vector<1x1x128xf32>
    %285 = vector.shape_cast %284 : vector<1x1x128xf32> to vector<1x128xf32>
    %286 = arith.mulf %283, %283 : vector<16x128xf32>
    %cst_111 = arith.constant dense<0.000000e+00> : vector<16xf32>
    %287 = vector.multi_reduction <add>, %286, %cst_111 [1] : vector<16x128xf32> to vector<16xf32>
    %288 = vector.shape_cast %287 : vector<16xf32> to vector<16x1xf32>
    %cst_112 = arith.constant 1.280000e+02 : f32
    %289 = vector.broadcast %cst_112 : f32 to vector<16x1xf32>
    %290 = arith.divf %288, %289 : vector<16x1xf32>
    %cst_113 = arith.constant 9.99999997E-7 : f32
    %291 = vector.broadcast %cst_113 : f32 to vector<16x1xf32>
    %292 = arith.addf %290, %291 : vector<16x1xf32>
    %293 = math.rsqrt %292 : vector<16x1xf32>
    %294 = vector.broadcast %293 : vector<16x1xf32> to vector<16x128xf32>
    %295 = arith.mulf %283, %294 : vector<16x128xf32>
    %296 = vector.broadcast %285 : vector<1x128xf32> to vector<16x128xf32>
    %297 = arith.mulf %295, %296 : vector<16x128xf32>
    %298 = arith.truncf %297 : vector<16x128xf32> to vector<16x128xbf16>
    %c1_114 = arith.constant 1 : index
    %c0_115 = arith.constant 0 : index
    %c0_116 = arith.constant 0 : index
    %299 = vector.load %arg11[%c1_114, %c0_115, %c0_116] : memref<2x128x512xbf16, #tpu.memory_space<vmem>>, vector<1x128x512xbf16>
    %300 = vector.shape_cast %299 : vector<1x128x512xbf16> to vector<128x512xbf16>
    %cst_117 = arith.constant dense<0.000000e+00> : vector<16x512xf32>
    %301 = tpu.matmul %298, %300, %cst_117 {dimension_numbers = #tpu.dot_dimension_numbers<[1], [0], [0], [1], [0, 0, 1, 1], [], []>} : vector<16x128xbf16>, vector<128x512xbf16>, vector<16x512xf32> -> vector<16x512xf32>
    %302 = vector.extract_strided_slice %301 {offsets = [0, 0], sizes = [16, 256], strides = [1, 1]} : vector<16x512xf32> to vector<16x256xf32>
    %303 = vector.extract_strided_slice %301 {offsets = [0, 256], sizes = [16, 256], strides = [1, 1]} : vector<16x512xf32> to vector<16x256xf32>
    %304 = arith.negf %302 : vector<16x256xf32>
    %305 = math.exp %304 : vector<16x256xf32>
    %cst_118 = arith.constant 1.000000e+00 : f32
    %306 = vector.broadcast %cst_118 : f32 to vector<16x256xf32>
    %307 = arith.addf %306, %305 : vector<16x256xf32>
    %308 = arith.divf %306, %307 : vector<16x256xf32>
    %309 = arith.mulf %302, %308 : vector<16x256xf32>
    %310 = arith.mulf %309, %303 : vector<16x256xf32>
    %311 = arith.truncf %310 : vector<16x256xf32> to vector<16x256xbf16>
    %c1_119 = arith.constant 1 : index
    %c0_120 = arith.constant 0 : index
    %c0_121 = arith.constant 0 : index
    %312 = vector.load %arg12[%c1_119, %c0_120, %c0_121] : memref<2x256x128xbf16, #tpu.memory_space<vmem>>, vector<1x256x128xbf16>
    %313 = vector.shape_cast %312 : vector<1x256x128xbf16> to vector<256x128xbf16>
    %cst_122 = arith.constant dense<0.000000e+00> : vector<16x128xf32>
    %314 = tpu.matmul %311, %313, %cst_122 {dimension_numbers = #tpu.dot_dimension_numbers<[1], [0], [0], [1], [0, 0, 1, 1], [], []>} : vector<16x256xbf16>, vector<256x128xbf16>, vector<16x128xf32> -> vector<16x128xf32>
    %315 = arith.addf %314, %283 : vector<16x128xf32>
    %c0_123 = arith.constant 0 : index
    %c0_124 = arith.constant 0 : index
    %316 = vector.load %arg13[%c0_123, %c0_124] : memref<1x128xf32, #tpu.memory_space<vmem>>, vector<1x128xf32>
    %317 = arith.mulf %315, %315 : vector<16x128xf32>
    %cst_125 = arith.constant dense<0.000000e+00> : vector<16xf32>
    %318 = vector.multi_reduction <add>, %317, %cst_125 [1] : vector<16x128xf32> to vector<16xf32>
    %319 = vector.shape_cast %318 : vector<16xf32> to vector<16x1xf32>
    %cst_126 = arith.constant 1.280000e+02 : f32
    %320 = vector.broadcast %cst_126 : f32 to vector<16x1xf32>
    %321 = arith.divf %319, %320 : vector<16x1xf32>
    %cst_127 = arith.constant 9.99999997E-7 : f32
    %322 = vector.broadcast %cst_127 : f32 to vector<16x1xf32>
    %323 = arith.addf %321, %322 : vector<16x1xf32>
    %324 = math.rsqrt %323 : vector<16x1xf32>
    %325 = vector.broadcast %324 : vector<16x1xf32> to vector<16x128xf32>
    %326 = arith.mulf %315, %325 : vector<16x128xf32>
    %327 = vector.broadcast %316 : vector<1x128xf32> to vector<16x128xf32>
    %328 = arith.mulf %326, %327 : vector<16x128xf32>
    %c0_128 = arith.constant 0 : index
    %c0_129 = arith.constant 0 : index
    %329 = vector.load %arg14[%c0_128, %c0_129] : memref<16x128xf32, #tpu.memory_space<vmem>>, vector<16x128xf32>
    tpu.vector_store %arg14[%c0_128, %c0_129], %328 {strides = array<i32>} : memref<16x128xf32, #tpu.memory_space<vmem>>, vector<16x128xf32>,
    return
  }
  func.func @transform_0(%arg0: i32) -> (i32, i32) {
    %c0_i32 = arith.constant 0 : i32
    %c0_i32_0 = arith.constant 0 : i32
    %c0_i32_1 = arith.constant 0 : i32
    return %c0_i32, %c0_i32_0 : i32, i32
  }
  func.func @transform_1(%arg0: i32) -> (i32, i32) {
    %c0_i32 = arith.constant 0 : i32
    %c0_i32_0 = arith.constant 0 : i32
    %c0_i32_1 = arith.constant 0 : i32
    return %c0_i32, %c0_i32_0 : i32, i32
  }
  func.func @transform_2(%arg0: i32) -> (i32, i32) {
    %c0_i32 = arith.constant 0 : i32
    %c0_i32_0 = arith.constant 0 : i32
    %c0_i32_1 = arith.constant 0 : i32
    return %c0_i32, %c0_i32_0 : i32, i32
  }
  func.func @transform_3(%arg0: i32) -> (i32, i32) {
    %c0_i32 = arith.constant 0 : i32
    %c0_i32_0 = arith.constant 0 : i32
    %c0_i32_1 = arith.constant 0 : i32
    return %c0_i32, %c0_i32_0 : i32, i32
  }
  func.func @transform_4(%arg0: i32) -> (i32, i32) {
    %c0_i32 = arith.constant 0 : i32
    %c0_i32_0 = arith.constant 0 : i32
    %c0_i32_1 = arith.constant 0 : i32
    return %c0_i32, %c0_i32_0 : i32, i32
  }
  func.func @transform_5(%arg0: i32) -> (i32, i32, i32) {
    %c0_i32 = arith.constant 0 : i32
    %c0_i32_0 = arith.constant 0 : i32
    %c0_i32_1 = arith.constant 0 : i32
    %c0_i32_2 = arith.constant 0 : i32
    return %c0_i32, %c0_i32_0, %c0_i32_1 : i32, i32, i32
  }
  func.func @transform_6(%arg0: i32) -> (i32, i32, i32) {
    %c0_i32 = arith.constant 0 : i32
    %c0_i32_0 = arith.constant 0 : i32
    %c0_i32_1 = arith.constant 0 : i32
    %c0_i32_2 = arith.constant 0 : i32
    return %c0_i32, %c0_i32_0, %c0_i32_1 : i32, i32, i32
  }
  func.func @transform_7(%arg0: i32) -> (i32, i32, i32) {
    %c0_i32 = arith.constant 0 : i32
    %c0_i32_0 = arith.constant 0 : i32
    %c0_i32_1 = arith.constant 0 : i32
    %c0_i32_2 = arith.constant 0 : i32
    return %c0_i32, %c0_i32_0, %c0_i32_1 : i32, i32, i32
  }
  func.func @transform_8(%arg0: i32) -> (i32, i32, i32) {
    %c0_i32 = arith.constant 0 : i32
    %c0_i32_0 = arith.constant 0 : i32
    %c0_i32_1 = arith.constant 0 : i32
    %c0_i32_2 = arith.constant 0 : i32
    return %c0_i32, %c0_i32_0, %c0_i32_1 : i32, i32, i32
  }
  func.func @transform_9(%arg0: i32) -> (i32, i32, i32) {
    %c0_i32 = arith.constant 0 : i32
    %c0_i32_0 = arith.constant 0 : i32
    %c0_i32_1 = arith.constant 0 : i32
    %c0_i32_2 = arith.constant 0 : i32
    return %c0_i32, %c0_i32_0, %c0_i32_1 : i32, i32, i32
  }
  func.func @transform_10(%arg0: i32) -> (i32, i32, i32) {
    %c0_i32 = arith.constant 0 : i32
    %c0_i32_0 = arith.constant 0 : i32
    %c0_i32_1 = arith.constant 0 : i32
    %c0_i32_2 = arith.constant 0 : i32
    return %c0_i32, %c0_i32_0, %c0_i32_1 : i32, i32, i32
  }
  func.func @transform_11(%arg0: i32) -> (i32, i32, i32) {
    %c0_i32 = arith.constant 0 : i32
    %c0_i32_0 = arith.constant 0 : i32
    %c0_i32_1 = arith.constant 0 : i32
    %c0_i32_2 = arith.constant 0 : i32
    return %c0_i32, %c0_i32_0, %c0_i32_1 : i32, i32, i32
  }
  func.func @transform_12(%arg0: i32) -> (i32, i32) {
    %c0_i32 = arith.constant 0 : i32
    %c0_i32_0 = arith.constant 0 : i32
    %c0_i32_1 = arith.constant 0 : i32
    return %c0_i32, %c0_i32_0 : i32, i32
  }
  func.func @transform_13(%arg0: i32) -> (i32, i32) {
    %c0_i32 = arith.constant 0 : i32
    %c0_i32_0 = arith.constant 0 : i32
    %c0_i32_1 = arith.constant 0 : i32
    return %c0_i32, %c0_i32_0 : i32, i32
  }
}

</mosaic_0001>

<llo_original>
// kernel: tile.39
$region0: #{tile.39}
  %s0 = inlined_call_operand.vmem [shape: f32[16,2,32], index: 0, kind: input, shape index: {}]
  %s1 = inlined_call_operand.vmem [shape: f32[16,64], index: 1, kind: output, shape index: {}]
  $region1: #{tile.39} parent=0
    #allocation0 [shape = 'u8[65536]{0}', space=vmem, size = 0x10000, scoped, tag = 'scoped mem for input reshape']
    %s3 = sshllo.u32 0, 2
    %s4 = smul.addr 2, 15
    %s5 = scalar_lea.vmem %s0, %s4
    %v6 = vld [vmem:[%s5] sm:%s3]
    %s7 = scalar_lea.vmem [#allocation0], 120
    %8 = vst [vmem:[%s7] sm:%s3] %v6
    %s9 = smul.addr 2, 14
    %s10 = scalar_lea.vmem %s0, %s9
    %v11 = vld [vmem:[%s10] sm:%s3]
    %s12 = scalar_lea.vmem [#allocation0], 112
    %13 = vst [vmem:[%s12] sm:%s3] %v11
    %s14 = smul.addr 2, 13
    %s15 = scalar_lea.vmem %s0, %s14
    %v16 = vld [vmem:[%s15] sm:%s3]
    %s17 = scalar_lea.vmem [#allocation0], 104
    %18 = vst [vmem:[%s17] sm:%s3] %v16
    %s19 = smul.addr 2, 12
    %s20 = scalar_lea.vmem %s0, %s19
    %v21 = vld [vmem:[%s20] sm:%s3]
    %s22 = scalar_lea.vmem [#allocation0], 96
    %23 = vst [vmem:[%s22] sm:%s3] %v21
    %s24 = smul.addr 2, 11
    %s25 = scalar_lea.vmem %s0, %s24
    %v26 = vld [vmem:[%s25] sm:%s3]
    %s27 = scalar_lea.vmem [#allocation0], 88
    %28 = vst [vmem:[%s27] sm:%s3] %v26
    %s29 = smul.addr 2, 10
    %s30 = scalar_lea.vmem %s0, %s29
    %v31 = vld [vmem:[%s30] sm:%s3]
    %s32 = scalar_lea.vmem [#allocation0], 80
    %33 = vst [vmem:[%s32] sm:%s3] %v31
    %s34 = smul.addr 2, 9
    %s35 = scalar_lea.vmem %s0, %s34
    %v36 = vld [vmem:[%s35] sm:%s3]
    %s37 = scalar_lea.vmem [#allocation0], 72
    %38 = vst [vmem:[%s37] sm:%s3] %v36
    %s39 = smul.addr 2, 8
    %s40 = scalar_lea.vmem %s0, %s39
    %v41 = vld [vmem:[%s40] sm:%s3]
    %s42 = scalar_lea.vmem [#allocation0], 64
    %43 = vst [vmem:[%s42] sm:%s3] %v41
    %s44 = smul.addr 2, 7
    %s45 = scalar_lea.vmem %s0, %s44
    %v46 = vld [vmem:[%s45] sm:%s3]
    %s47 = scalar_lea.vmem [#allocation0], 56
    %48 = vst [vmem:[%s47] sm:%s3] %v46
    %s49 = smul.addr 2, 6
    %s50 = scalar_lea.vmem %s0, %s49
    %v51 = vld [vmem:[%s50] sm:%s3]
    %s52 = scalar_lea.vmem [#allocation0], 48
    %53 = vst [vmem:[%s52] sm:%s3] %v51
    %s54 = smul.addr 2, 5
    %s55 = scalar_lea.vmem %s0, %s54
    %v56 = vld [vmem:[%s55] sm:%s3]
    %s57 = scalar_lea.vmem [#allocation0], 40
    %58 = vst [vmem:[%s57] sm:%s3] %v56
    %s59 = smul.addr 2, 4
    %s60 = scalar_lea.vmem %s0, %s59
    %v61 = vld [vmem:[%s60] sm:%s3]
    %s62 = scalar_lea.vmem [#allocation0], 32
    %63 = vst [vmem:[%s62] sm:%s3] %v61
    %s64 = smul.addr 2, 3
    %s65 = scalar_lea.vmem %s0, %s64
    %v66 = vld [vmem:[%s65] sm:%s3]
    %s67 = scalar_lea.vmem [#allocation0], 24
    %68 = vst [vmem:[%s67] sm:%s3] %v66
    %s69 = smul.addr 2, 2
    %s70 = scalar_lea.vmem %s0, %s69
    %v71 = vld [vmem:[%s70] sm:%s3]
    %s72 = scalar_lea.vmem [#allocation0], 16
    %73 = vst [vmem:[%s72] sm:%s3] %v71
    %s74 = scalar_lea.vmem %s0, 2
    %v75 = vld [vmem:[%s74] sm:%s3]
    %s76 = scalar_lea.vmem [#allocation0], 8
    %77 = vst [vmem:[%s76] sm:%s3] %v75
    %v78 = vld [vmem:[%s0] sm:%s3]
    %79 = vst [vmem:[#allocation0] sm:%s3] %v78
    %v80 = vld [vmem:[#allocation0] ss:$8 sm:$0xf]
    %v81 = vld [vmem:[#allocation0] ss:$8 sm:$0xf0]
    %vm82 = vcmask 1047556
    %v83 = vsel %vm82, %v81, %v80
    %vm84 = vcmask 261120
    %85 = vst.msk [vmem:[%s1] sm:$0xff] %vm84, %v83
    %s86 = scalar_lea.vmem [#allocation0], 64
    %v87 = vld [vmem:[%s86] ss:$8 sm:$0xf]
    %s88 = scalar_lea.vmem [#allocation0], 64
    %v89 = vld [vmem:[%s88] ss:$8 sm:$0xf0]
    %vm90 = vcmask 1047556
    %v91 = vsel %vm90, %v89, %v87
    %vm92 = vcmask 261120
    %s93 = scalar_lea.vmem %s1, 8
    %94 = vst.msk [vmem:[%s93] sm:$0xff] %vm92, %v91
    %s95 = scalar_lea.vmem [#allocation0], 1
    %v96 = vld [vmem:[%s95] ss:$8 sm:$0xf]
    %s97 = scalar_lea.vmem [#allocation0], 1
    %v98 = vld [vmem:[%s97] ss:$8 sm:$0xf0]
    %vm99 = vcmask 1047556
    %v100 = vsel %vm99, %v98, %v96
    %101 = vrot.lane.b32.xlu0 %v100, 32
    %v102 = vpop.permute.xlu0 %101
    %vm103 = vcmask 523520
    %104 = vst.msk [vmem:[%s1] sm:$0xff] %vm103, %v102
    %s105 = scalar_lea.vmem [#allocation0], 65
    %v106 = vld [vmem:[%s105] ss:$8 sm:$0xf]
    %s107 = scalar_lea.vmem [#allocation0], 65
    %v108 = vld [vmem:[%s107] ss:$8 sm:$0xf0]
    %vm109 = vcmask 1047556
    %v110 = vsel %vm109, %v108, %v106
    %111 = vrot.lane.b32.xlu0 %v110, 32
    %v112 = vpop.permute.xlu0 %111
    %vm113 = vcmask 523520
    %s114 = scalar_lea.vmem %s1, 8
    %115 = vst.msk [vmem:[%s114] sm:$0xff] %vm113, %v112

// kernel: tile.34
$region0: #{tile.34}
  %s0 = inlined_call_operand.vmem [shape: f32[16,4,32], index: 0, kind: input, shape index: {}]
  %s1 = inlined_call_operand.vmem [shape: f32[16,128], index: 1, kind: output, shape index: {}]
  $region1: #{tile.34} parent=0
    #allocation0 [shape = 'u8[65536]{0}', space=vmem, size = 0x10000, scoped, tag = 'scoped mem for input reshape']
    %s3 = sshllo.u32 0, 4
    %s4 = smul.addr 4, 15
    %s5 = scalar_lea.vmem %s0, %s4
    %v6 = vld [vmem:[%s5] sm:%s3]
    %s7 = scalar_lea.vmem [#allocation0], 120
    %8 = vst [vmem:[%s7] sm:%s3] %v6
    %s9 = smul.addr 4, 14
    %s10 = scalar_lea.vmem %s0, %s9
    %v11 = vld [vmem:[%s10] sm:%s3]
    %s12 = scalar_lea.vmem [#allocation0], 112
    %13 = vst [vmem:[%s12] sm:%s3] %v11
    %s14 = smul.addr 4, 13
    %s15 = scalar_lea.vmem %s0, %s14
    %v16 = vld [vmem:[%s15] sm:%s3]
    %s17 = scalar_lea.vmem [#allocation0], 104
    %18 = vst [vmem:[%s17] sm:%s3] %v16
    %s19 = smul.addr 4, 12
    %s20 = scalar_lea.vmem %s0, %s19
    %v21 = vld [vmem:[%s20] sm:%s3]
    %s22 = scalar_lea.vmem [#allocation0], 96
    %23 = vst [vmem:[%s22] sm:%s3] %v21
    %s24 = smul.addr 4, 11
    %s25 = scalar_lea.vmem %s0, %s24
    %v26 = vld [vmem:[%s25] sm:%s3]
    %s27 = scalar_lea.vmem [#allocation0], 88
    %28 = vst [vmem:[%s27] sm:%s3] %v26
    %s29 = smul.addr 4, 10
    %s30 = scalar_lea.vmem %s0, %s29
    %v31 = vld [vmem:[%s30] sm:%s3]
    %s32 = scalar_lea.vmem [#allocation0], 80
    %33 = vst [vmem:[%s32] sm:%s3] %v31
    %s34 = smul.addr 4, 9
    %s35 = scalar_lea.vmem %s0, %s34
    %v36 = vld [vmem:[%s35] sm:%s3]
    %s37 = scalar_lea.vmem [#allocation0], 72
    %38 = vst [vmem:[%s37] sm:%s3] %v36
    %s39 = smul.addr 4, 8
    %s40 = scalar_lea.vmem %s0, %s39
    %v41 = vld [vmem:[%s40] sm:%s3]
    %s42 = scalar_lea.vmem [#allocation0], 64
    %43 = vst [vmem:[%s42] sm:%s3] %v41
    %s44 = smul.addr 4, 7
    %s45 = scalar_lea.vmem %s0, %s44
    %v46 = vld [vmem:[%s45] sm:%s3]
    %s47 = scalar_lea.vmem [#allocation0], 56
    %48 = vst [vmem:[%s47] sm:%s3] %v46
    %s49 = smul.addr 4, 6
    %s50 = scalar_lea.vmem %s0, %s49
    %v51 = vld [vmem:[%s50] sm:%s3]
    %s52 = scalar_lea.vmem [#allocation0], 48
    %53 = vst [vmem:[%s52] sm:%s3] %v51
    %s54 = smul.addr 4, 5
    %s55 = scalar_lea.vmem %s0, %s54
    %v56 = vld [vmem:[%s55] sm:%s3]
    %s57 = scalar_lea.vmem [#allocation0], 40
    %58 = vst [vmem:[%s57] sm:%s3] %v56
    %s59 = smul.addr 4, 4
    %s60 = scalar_lea.vmem %s0, %s59
    %v61 = vld [vmem:[%s60] sm:%s3]
    %s62 = scalar_lea.vmem [#allocation0], 32
    %63 = vst [vmem:[%s62] sm:%s3] %v61
    %s64 = smul.addr 4, 3
    %s65 = scalar_lea.vmem %s0, %s64
    %v66 = vld [vmem:[%s65] sm:%s3]
    %s67 = scalar_lea.vmem [#allocation0], 24
    %68 = vst [vmem:[%s67] sm:%s3] %v66
    %s69 = smul.addr 4, 2
    %s70 = scalar_lea.vmem %s0, %s69
    %v71 = vld [vmem:[%s70] sm:%s3]
    %s72 = scalar_lea.vmem [#allocation0], 16
    %73 = vst [vmem:[%s72] sm:%s3] %v71
    %s74 = scalar_lea.vmem %s0, 4
    %v75 = vld [vmem:[%s74] sm:%s3]
    %s76 = scalar_lea.vmem [#allocation0], 8
    %77 = vst [vmem:[%s76] sm:%s3] %v75
    %v78 = vld [vmem:[%s0] sm:%s3]
    %79 = vst [vmem:[#allocation0] sm:%s3] %v78
    %v80 = vld [vmem:[#allocation0] ss:$8 sm:$0xf]
    %v81 = vld [vmem:[#allocation0] ss:$8 sm:$0xf0]
    %vm82 = vcmask 1047556
    %v83 = vsel %vm82, %v81, %v80
    %vm84 = vcmask 261120
    %85 = vst.msk [vmem:[%s1] sm:$0xff] %vm84, %v83
    %s86 = scalar_lea.vmem [#allocation0], 64
    %v87 = vld [vmem:[%s86] ss:$8 sm:$0xf]
    %s88 = scalar_lea.vmem [#allocation0], 64
    %v89 = vld [vmem:[%s88] ss:$8 sm:$0xf0]
    %vm90 = vcmask 1047556
    %v91 = vsel %vm90, %v89, %v87
    %vm92 = vcmask 261120
    %s93 = scalar_lea.vmem %s1, 8
    %94 = vst.msk [vmem:[%s93] sm:$0xff] %vm92, %v91
    %s95 = scalar_lea.vmem [#allocation0], 3
    %v96 = vld [vmem:[%s95] ss:$8 sm:$0xf]
    %s97 = scalar_lea.vmem [#allocation0], 3
    %v98 = vld [vmem:[%s97] ss:$8 sm:$0xf0]
    %vm99 = vcmask 1047556
    %v100 = vsel %vm99, %v98, %v96
    %101 = vrot.lane.b32.xlu0 %v100, 96
    %v102 = vpop.permute.xlu0 %101
    %vm103 = vcmask 1048320
    %104 = vst.msk [vmem:[%s1] sm:$0xff] %vm103, %v102
    %s105 = scalar_lea.vmem [#allocation0], 67
    %v106 = vld [vmem:[%s105] ss:$8 sm:$0xf]
    %s107 = scalar_lea.vmem [#allocation0], 67
    %v108 = vld [vmem:[%s107] ss:$8 sm:$0xf0]
    %vm109 = vcmask 1047556
    %v110 = vsel %vm109, %v108, %v106
    %111 = vrot.lane.b32.xlu0 %v110, 96
    %v112 = vpop.permute.xlu0 %111
    %vm113 = vcmask 1048320
    %s114 = scalar_lea.vmem %s1, 8
    %115 = vst.msk [vmem:[%s114] sm:$0xff] %vm113, %v112
    %s116 = scalar_lea.vmem [#allocation0], 2
    %v117 = vld [vmem:[%s116] ss:$8 sm:$0xf]
    %s118 = scalar_lea.vmem [#allocation0], 2
    %v119 = vld [vmem:[%s118] ss:$8 sm:$0xf0]
    %vm120 = vcmask 1047556
    %v121 = vsel %vm120, %v119, %v117
    %122 = vrot.lane.b32.xlu0 %v121, 64
    %v123 = vpop.permute.xlu0 %122
    %vm124 = vcmask 785920
    %125 = vst.msk [vmem:[%s1] sm:$0xff] %vm124, %v123
    %s126 = scalar_lea.vmem [#allocation0], 66
    %v127 = vld [vmem:[%s126] ss:$8 sm:$0xf]
    %s128 = scalar_lea.vmem [#allocation0], 66
    %v129 = vld [vmem:[%s128] ss:$8 sm:$0xf0]
    %vm130 = vcmask 1047556
    %v131 = vsel %vm130, %v129, %v127
    %132 = vrot.lane.b32.xlu0 %v131, 64
    %v133 = vpop.permute.xlu0 %132
    %vm134 = vcmask 785920
    %s135 = scalar_lea.vmem %s1, 8
    %136 = vst.msk [vmem:[%s135] sm:$0xff] %vm134, %v133
    %s137 = scalar_lea.vmem [#allocation0], 1
    %v138 = vld [vmem:[%s137] ss:$8 sm:$0xf]
    %s139 = scalar_lea.vmem [#allocation0], 1
    %v140 = vld [vmem:[%s139] ss:$8 sm:$0xf0]
    %vm141 = vcmask 1047556
    %v142 = vsel %vm141, %v140, %v138
    %143 = vrot.lane.b32.xlu0 %v142, 32
    %v144 = vpop.permute.xlu0 %143
    %vm145 = vcmask 523520
    %146 = vst.msk [vmem:[%s1] sm:$0xff] %vm145, %v144
    %s147 = scalar_lea.vmem [#allocation0], 65
    %v148 = vld [vmem:[%s147] ss:$8 sm:$0xf]
    %s149 = scalar_lea.vmem [#allocation0], 65
    %v150 = vld [vmem:[%s149] ss:$8 sm:$0xf0]
    %vm151 = vcmask 1047556
    %v152 = vsel %vm151, %v150, %v148
    %153 = vrot.lane.b32.xlu0 %v152, 32
    %v154 = vpop.permute.xlu0 %153
    %vm155 = vcmask 523520
    %s156 = scalar_lea.vmem %s1, 8
    %157 = vst.msk [vmem:[%s156] sm:$0xff] %vm155, %v154

// kernel: model_forward.1
$region0: #{model_forward.1}
  #allocation0 [shape = 'u32[]', space=smem, size = 0x4, offset = 0x4, fixed_abs, tag = 'smem constant byte address 0x4 - core index']
  #allocation1 [shape = 'u32[144,128]{1,0:T(1,128)}', space=vmem, size = 0x12000, scoped, tag = 'internal scratch']
  %s0 = inlined_call_operand.vmem [shape: s32[16,1], index: 0, kind: input, shape index: {}]
  %s1 = inlined_call_operand.vmem [shape: bf16[128,128], index: 1, kind: input, shape index: {}]
  %s2 = inlined_call_operand.vmem [shape: f32[16,256], index: 2, kind: input, shape index: {}]
  %s3 = inlined_call_operand.vmem [shape: f32[16,256], index: 3, kind: input, shape index: {}]
  %s4 = inlined_call_operand.vmem [shape: bf16[256,256], index: 4, kind: input, shape index: {}]
  %s5 = inlined_call_operand.vmem [shape: f32[2,1,128], index: 5, kind: input, shape index: {}]
  %s6 = inlined_call_operand.vmem [shape: bf16[2,128,256], index: 6, kind: input, shape index: {}]
  %s7 = inlined_call_operand.vmem [shape: f32[2,1,256], index: 7, kind: input, shape index: {}]
  %s8 = inlined_call_operand.vmem [shape: bf16[2,128,128], index: 8, kind: input, shape index: {}]
  %s9 = inlined_call_operand.vmem [shape: f32[2,1,128], index: 9, kind: input, shape index: {}]
  %s10 = inlined_call_operand.vmem [shape: bf16[2,128,512], index: 10, kind: input, shape index: {}]
  %s11 = inlined_call_operand.vmem [shape: bf16[2,256,128], index: 11, kind: input, shape index: {}]
  %s12 = inlined_call_operand.vmem [shape: f32[1,128], index: 12, kind: input, shape index: {}]
  %s13 = inlined_call_operand.hbm [shape: f32[16,128], index: 13, kind: output, shape index: {}]
  %s14 = sld [smem:[#allocation0]]
  $region62: #{model_forward.1} parent=0
    _
  %s16 = ssub.s32 1, %s14
  %s17 = scalar_select 0, %s16, %s14
  $region1: #{model_forward.1} parent=0
    #allocation2 [shape = 'u8[8192]{0}', space=vmem, size = 0x2000, scoped, tag = 'output window, operand 0, single buffered']
    #allocation3 [shape = 's32[1]{0}', space=sflag, size = 0x4, scoped, tag = 'scoped memory for model_forward.1']
    %18 = vsyncpa [#allocation3], 0
    // Predicated region
    $region2: #{model_forward.1} parent=1 // pred_check
      _
    $region3: #{model_forward.1} parent=1 // pred_check_branch
      %20 = sbr.rel (0) target = $region5
    $region4: #{model_forward.1} parent=1 // pred_region
      _
    $region5: #{model_forward.1} parent=1 // pred_fallthru
      _
    // Predicated region
    $region6: #{model_forward.1} parent=1 // pred_check
      _
    $region7: #{model_forward.1} parent=1 // pred_check_branch
      %22 = sbr.rel (0) target = $region9
    $region8: #{model_forward.1} parent=1 // pred_region
      _
    $region9: #{model_forward.1} parent=1 // pred_fallthru
      _
    // Predicated region
    $region10: #{model_forward.1} parent=1 // pred_check
      _
    $region11: #{model_forward.1} parent=1 // pred_check_branch
      %24 = sbr.rel (0) target = $region13
    $region12: #{model_forward.1} parent=1 // pred_region
      _
    $region13: #{model_forward.1} parent=1 // pred_fallthru
      _
    // Predicated region
    $region14: #{model_forward.1} parent=1 // pred_check
      _
    $region15: #{model_forward.1} parent=1 // pred_check_branch
      %26 = sbr.rel (0) target = $region17
    $region16: #{model_forward.1} parent=1 // pred_region
      _
    $region17: #{model_forward.1} parent=1 // pred_fallthru
      _
    // Predicated region
    $region18: #{model_forward.1} parent=1 // pred_check
      _
    $region19: #{model_forward.1} parent=1 // pred_check_branch
      %28 = sbr.rel (0) target = $region21
    $region20: #{model_forward.1} parent=1 // pred_region
      _
    $region21: #{model_forward.1} parent=1 // pred_fallthru
      _
    // Predicated region
    $region22: #{model_forward.1} parent=1 // pred_check
      _
    $region23: #{model_forward.1} parent=1 // pred_check_branch
      %30 = sbr.rel (0) target = $region25
    $region24: #{model_forward.1} parent=1 // pred_region
      _
    $region25: #{model_forward.1} parent=1 // pred_fallthru
      _
    // Predicated region
    $region26: #{model_forward.1} parent=1 // pred_check
      _
    $region27: #{model_forward.1} parent=1 // pred_check_branch
      %32 = sbr.rel (0) target = $region29
    $region28: #{model_forward.1} parent=1 // pred_region
      _
    $region29: #{model_forward.1} parent=1 // pred_fallthru
      _
    // Predicated region
    $region30: #{model_forward.1} parent=1 // pred_check
      _
    $region31: #{model_forward.1} parent=1 // pred_check_branch
      %34 = sbr.rel (0) target = $region33
    $region32: #{model_forward.1} parent=1 // pred_region
      _
    $region33: #{model_forward.1} parent=1 // pred_fallthru
      _
    // Predicated region
    $region34: #{model_forward.1} parent=1 // pred_check
      _
    $region35: #{model_forward.1} parent=1 // pred_check_branch
      %36 = sbr.rel (0) target = $region37
    $region36: #{model_forward.1} parent=1 // pred_region
      _
    $region37: #{model_forward.1} parent=1 // pred_fallthru
      _
    // Predicated region
    $region38: #{model_forward.1} parent=1 // pred_check
      _
    $region39: #{model_forward.1} parent=1 // pred_check_branch
      %38 = sbr.rel (0) target = $region41
    $region40: #{model_forward.1} parent=1 // pred_region
      _
    $region41: #{model_forward.1} parent=1 // pred_fallthru
      _
    // Predicated region
    $region42: #{model_forward.1} parent=1 // pred_check
      _
    $region43: #{model_forward.1} parent=1 // pred_check_branch
      %40 = sbr.rel (0) target = $region45
    $region44: #{model_forward.1} parent=1 // pred_region
      _
    $region45: #{model_forward.1} parent=1 // pred_fallthru
      _
    // Predicated region
    $region46: #{model_forward.1} parent=1 // pred_check
      _
    $region47: #{model_forward.1} parent=1 // pred_check_branch
      %42 = sbr.rel (0) target = $region49
    $region48: #{model_forward.1} parent=1 // pred_region
      _
    $region49: #{model_forward.1} parent=1 // pred_fallthru
      _
    // Predicated region
    $region50: #{model_forward.1} parent=1 // pred_check
      _
    $region51: #{model_forward.1} parent=1 // pred_check_branch
      %44 = sbr.rel (0) target = $region53
    $region52: #{model_forward.1} parent=1 // pred_region
      _
    $region53: #{model_forward.1} parent=1 // pred_fallthru
      _
    %v46 = vlaneseq
    %v47 = vand.u32 %v46, 127
    %v48 = vld [vmem:[%s0] sm:$0xff]
    %v49 = vld [vmem:[%s0 + $0x8] sm:$0xff]
    %50 = vset.pattern.permute.xlu0 0
    %51 = vperm.xlu0 %50, %v48
    %v52 = vpop.permute.xlu0 %51
    %53 = vset.pattern.permute.xlu0 0
    %54 = vperm.xlu0 %53, %v49
    %v55 = vpop.permute.xlu0 %54
    %vm56 = vcmp.eq.s32.totalorder %v47, %v52
    %vm57 = vcmp.eq.s32.totalorder %v47, %v55
    %v58 = vsel %vm56, 1, 0
    %v59 = vsel %vm57, 1, 0
    %v60 = vcvt.s32.f32 %v58
    %v61 = vcvt.s32.f32 %v59
    %v62 = vpack.c.bf16 %v61, %v60
    %v63 = vld [vmem:[%s1] sm:$0xf]
    %v64 = vld [vmem:[%s1 + $0x4] sm:$0xf]
    %v65 = vld [vmem:[%s1 + $0x8] sm:$0xf]
    %v66 = vld [vmem:[%s1 + $0xc] sm:$0xf]
    %v67 = vld [vmem:[%s1 + $0x10] sm:$0xf]
    %v68 = vld [vmem:[%s1 + $0x14] sm:$0xf]
    %v69 = vld [vmem:[%s1 + $0x18] sm:$0xf]
    %v70 = vld [vmem:[%s1 + $0x1c] sm:$0xf]
    %v71 = vld [vmem:[%s1 + $0x20] sm:$0xf]
    %v72 = vld [vmem:[%s1 + $0x24] sm:$0xf]
    %v73 = vld [vmem:[%s1 + $0x28] sm:$0xf]
    %v74 = vld [vmem:[%s1 + $0x2c] sm:$0xf]
    %v75 = vld [vmem:[%s1 + $0x30] sm:$0xf]
    %v76 = vld [vmem:[%s1 + $0x34] sm:$0xf]
    %v77 = vld [vmem:[%s1 + $0x38] sm:$0xf]
    %v78 = vld [vmem:[%s1 + $0x3c] sm:$0xf]
    %v79 = vld [vmem:[%s2] sm:$0xff]
    %v80 = vld [vmem:[%s2 + $0x8] sm:$0xff]
    %v81 = vld [vmem:[%s2 + $0x10] sm:$0xff]
    %v82 = vld [vmem:[%s2 + $0x18] sm:$0xff]
    %v83 = vld [vmem:[%s3] sm:$0xff]
    %v84 = vld [vmem:[%s3 + $0x8] sm:$0xff]
    %v85 = vld [vmem:[%s3 + $0x10] sm:$0xff]
    %v86 = vld [vmem:[%s3 + $0x18] sm:$0xff]
    %v87 = vld [vmem:[%s4] sm:$0xff]
    %v88 = vld [vmem:[%s4 + $0x8] sm:$0xff]
    %v89 = vld [vmem:[%s4 + $0x10] sm:$0xff]
    %v90 = vld [vmem:[%s4 + $0x18] sm:$0xff]
    %v91 = vld [vmem:[%s4 + $0x20] sm:$0xff]
    %v92 = vld [vmem:[%s4 + $0x28] sm:$0xff]
    %v93 = vld [vmem:[%s4 + $0x30] sm:$0xff]
    %v94 = vld [vmem:[%s4 + $0x38] sm:$0xff]
    %v95 = vld [vmem:[%s4 + $0x40] sm:$0xff]
    %v96 = vld [vmem:[%s4 + $0x48] sm:$0xff]
    %v97 = vld [vmem:[%s4 + $0x50] sm:$0xff]
    %v98 = vld [vmem:[%s4 + $0x58] sm:$0xff]
    %v99 = vld [vmem:[%s4 + $0x60] sm:$0xff]
    %v100 = vld [vmem:[%s4 + $0x68] sm:$0xff]
    %v101 = vld [vmem:[%s4 + $0x70] sm:$0xff]
    %v102 = vld [vmem:[%s4 + $0x78] sm:$0xff]
    %v103 = vld [vmem:[%s4 + $0x80] sm:$0xff]
    %v104 = vld [vmem:[%s4 + $0x88] sm:$0xff]
    %v105 = vld [vmem:[%s4 + $0x90] sm:$0xff]
    %v106 = vld [vmem:[%s4 + $0x98] sm:$0xff]
    %v107 = vld [vmem:[%s4 + $0xa0] sm:$0xff]
    %v108 = vld [vmem:[%s4 + $0xa8] sm:$0xff]
    %v109 = vld [vmem:[%s4 + $0xb0] sm:$0xff]
    %v110 = vld [vmem:[%s4 + $0xb8] sm:$0xff]
    %v111 = vld [vmem:[%s4 + $0xc0] sm:$0xff]
    %v112 = vld [vmem:[%s4 + $0xc8] sm:$0xff]
    %v113 = vld [vmem:[%s4 + $0xd0] sm:$0xff]
    %v114 = vld [vmem:[%s4 + $0xd8] sm:$0xff]
    %v115 = vld [vmem:[%s4 + $0xe0] sm:$0xff]
    %v116 = vld [vmem:[%s4 + $0xe8] sm:$0xff]
    %v117 = vld [vmem:[%s4 + $0xf0] sm:$0xff]
    %v118 = vld [vmem:[%s4 + $0xf8] sm:$0xff]
    %v119 = vunpack.c.l.bf16 %v87
    %v120 = vunpack.c.h.bf16 %v87
    %v121 = vunpack.c.l.bf16 %v88
    %v122 = vunpack.c.h.bf16 %v88
    %v123 = vunpack.c.l.bf16 %v89
    %v124 = vunpack.c.h.bf16 %v89
    %v125 = vunpack.c.l.bf16 %v90
    %v126 = vunpack.c.h.bf16 %v90
    %v127 = vunpack.c.l.bf16 %v91
    %v128 = vunpack.c.h.bf16 %v91
    %v129 = vunpack.c.l.bf16 %v92
    %v130 = vunpack.c.h.bf16 %v92
    %v131 = vunpack.c.l.bf16 %v93
    %v132 = vunpack.c.h.bf16 %v93
    %v133 = vunpack.c.l.bf16 %v94
    %v134 = vunpack.c.h.bf16 %v94
    %v135 = vunpack.c.l.bf16 %v95
    %v136 = vunpack.c.h.bf16 %v95
    %v137 = vunpack.c.l.bf16 %v96
    %v138 = vunpack.c.h.bf16 %v96
    %v139 = vunpack.c.l.bf16 %v97
    %v140 = vunpack.c.h.bf16 %v97
    %v141 = vunpack.c.l.bf16 %v98
    %v142 = vunpack.c.h.bf16 %v98
    %v143 = vunpack.c.l.bf16 %v99
    %v144 = vunpack.c.h.bf16 %v99
    %v145 = vunpack.c.l.bf16 %v100
    %v146 = vunpack.c.h.bf16 %v100
    %v147 = vunpack.c.l.bf16 %v101
    %v148 = vunpack.c.h.bf16 %v101
    %v149 = vunpack.c.l.bf16 %v102
    %v150 = vunpack.c.h.bf16 %v102
    %v151 = vunpack.c.l.bf16 %v103
    %v152 = vunpack.c.h.bf16 %v103
    %v153 = vunpack.c.l.bf16 %v104
    %v154 = vunpack.c.h.bf16 %v104
    %v155 = vunpack.c.l.bf16 %v105
    %v156 = vunpack.c.h.bf16 %v105
    %v157 = vunpack.c.l.bf16 %v106
    %v158 = vunpack.c.h.bf16 %v106
    %v159 = vunpack.c.l.bf16 %v107
    %v160 = vunpack.c.h.bf16 %v107
    %v161 = vunpack.c.l.bf16 %v108
    %v162 = vunpack.c.h.bf16 %v108
    %v163 = vunpack.c.l.bf16 %v109
    %v164 = vunpack.c.h.bf16 %v109
    %v165 = vunpack.c.l.bf16 %v110
    %v166 = vunpack.c.h.bf16 %v110
    %v167 = vunpack.c.l.bf16 %v111
    %v168 = vunpack.c.h.bf16 %v111
    %v169 = vunpack.c.l.bf16 %v112
    %v170 = vunpack.c.h.bf16 %v112
    %v171 = vunpack.c.l.bf16 %v113
    %v172 = vunpack.c.h.bf16 %v113
    %v173 = vunpack.c.l.bf16 %v114
    %v174 = vunpack.c.h.bf16 %v114
    %v175 = vunpack.c.l.bf16 %v115
    %v176 = vunpack.c.h.bf16 %v115
    %v177 = vunpack.c.l.bf16 %v116
    %v178 = vunpack.c.h.bf16 %v116
    %v179 = vunpack.c.l.bf16 %v117
    %v180 = vunpack.c.h.bf16 %v117
    %v181 = vunpack.c.l.bf16 %v118
    %v182 = vunpack.c.h.bf16 %v118
    %v183 = vlaneseq
    %v184 = vshrl.u32 %v183, 7
    %v185 = vadd.s32 %v184, 8
    %vm186 = vcmp.le.s32.totalorder %v47, %v184
    %vm187 = vcmp.le.s32.totalorder %v47, %v185
    %v204 = vunpack.c.l.b16 %v63
    %v205 = vunpack.c.l.b16 %v64
    %v206 = vunpack.c.l.b16 %v65
    %v207 = vunpack.c.l.b16 %v66
    %v208 = vunpack.c.l.b16 %v67
    %v209 = vunpack.c.l.b16 %v68
    %v210 = vunpack.c.l.b16 %v69
    %v211 = vunpack.c.l.b16 %v70
    %v212 = vunpack.c.l.b16 %v71
    %v213 = vunpack.c.l.b16 %v72
    %v214 = vunpack.c.l.b16 %v73
    %v215 = vunpack.c.l.b16 %v74
    %v216 = vunpack.c.l.b16 %v75
    %v217 = vunpack.c.l.b16 %v76
    %v218 = vunpack.c.l.b16 %v77
    %v219 = vunpack.c.l.b16 %v78
    %v220 = vpack.c.b16 %v205, %v204
    %v221 = vpack.c.b16 %v207, %v206
    %v222 = vpack.c.b16 %v209, %v208
    %v223 = vpack.c.b16 %v211, %v210
    %v224 = vpack.c.b16 %v213, %v212
    %v225 = vpack.c.b16 %v215, %v214
    %v226 = vpack.c.b16 %v217, %v216
    %v227 = vpack.c.b16 %v219, %v218
    %236 = vmatprep.subr.bf16.mxu0 0
    %237 = vmatpush1.bf16.msra.mxu0 %v220
    %238 = vmatprep.subr.bf16.mxu0 0
    %239 = vmatpush1.bf16.msra.mxu0 %v221
    %240 = vmatprep.subr.bf16.mxu0 0
    %241 = vmatpush1.bf16.msra.mxu0 %v222
    %242 = vmatprep.subr.bf16.mxu0 0
    %243 = vmatpush1.bf16.msra.mxu0 %v223
    %244 = vmatprep.subr.bf16.mxu0 0
    %245 = vmatpush1.bf16.msra.mxu0 %v224
    %246 = vmatprep.subr.bf16.mxu0 0
    %247 = vmatpush1.bf16.msra.mxu0 %v225
    %248 = vmatprep.subr.bf16.mxu0 0
    %249 = vmatpush1.bf16.msra.mxu0 %v226
    %250 = vmatprep.subr.bf16.mxu0 0
    %251 = vmatpush1.bf16.msra.mxu0 %v227
    %252 = vmatprep.subr.bf16.mxu0 0
    %253 = vmatpush1.bf16.msra.mxu0 0
    %254 = vmatprep.subr.bf16.mxu0 0
    %255 = vmatpush1.bf16.msra.mxu0 0
    %256 = vmatprep.subr.bf16.mxu0 0
    %257 = vmatpush1.bf16.msra.mxu0 0
    %258 = vmatprep.subr.bf16.mxu0 0
    %259 = vmatpush1.bf16.msra.mxu0 0
    %260 = vmatprep.subr.bf16.mxu0 0
    %261 = vmatpush1.bf16.msra.mxu0 0
    %262 = vmatprep.subr.bf16.mxu0 0
    %263 = vmatpush1.bf16.msra.mxu0 0
    %264 = vmatprep.subr.bf16.mxu0 0
    %265 = vmatpush1.bf16.msra.mxu0 0
    %266 = vmatprep.subr.bf16.mxu0 0
    %267 = vmatpush1.bf16.msra.mxu0 0
    %268 = vmatprep.mubr.bf16.mxu0 0
    %269 = vmatmul.mubr.bf16.gmra.mrb[0].mxu0 %v62
    %v270 = vpop.f32.mrb[0].mxu0
    %v271 = vadd.f32 0.0, %v270
    %v272 = vpop.f32.mrb[0].mxu0
    %v273 = vpop.f32.mrb[0].mxu0
    %v274 = vadd.f32 0.0, %v273
    %v275 = vpop.f32.mrb[0].mxu0
    %276 = vdwg.mxu0
    %v277 = vld [vmem:[%s5] sm:$0x1]
    %v278 = vmul.f32 %v271, %v271
    %v279 = vmul.f32 %v274, %v274
    %280 = vadd.xlane.f32.xlu0 %v278
    %v281 = vpop.xlane.xlu0 %280
    %282 = vadd.xlane.f32.xlu0 %v279
    %v283 = vpop.xlane.xlu0 %282
    %v284 = vrcp.pop 128.0
    %v285 = vmul.f32 %v281, %v284
    %v286 = vmul.f32 %v283, %v284
    %v287 = vadd.f32 %v285, 1e-06
    %v288 = vadd.f32 %v286, 1e-06
    %v289 = vrsqrt.pop %v287
    %v290 = vrsqrt.pop %v288
    %v291 = vmul.f32 %v271, %v289
    %v292 = vmul.f32 %v274, %v290
    %v294 = vlaneseq
    %v295 = vshrl.u32 %v294, 7
    %v296 = vsub.s32 0, %v295
    %v297 = vrot.slane %v277, %v296
    %v299 = vmul.f32 %v291, %v297
    %v300 = vmul.f32 %v292, %v297
    %v301 = vpack.c.bf16 %v300, %v299
    %v302 = vld [vmem:[%s6] sm:$0xff]
    %v303 = vld [vmem:[%s6 + $0x8] sm:$0xff]
    %v304 = vld [vmem:[%s6 + $0x10] sm:$0xff]
    %v305 = vld [vmem:[%s6 + $0x18] sm:$0xff]
    %v306 = vld [vmem:[%s6 + $0x20] sm:$0xff]
    %v307 = vld [vmem:[%s6 + $0x28] sm:$0xff]
    %v308 = vld [vmem:[%s6 + $0x30] sm:$0xff]
    %v309 = vld [vmem:[%s6 + $0x38] sm:$0xff]
    %v310 = vld [vmem:[%s6 + $0x40] sm:$0xff]
    %v311 = vld [vmem:[%s6 + $0x48] sm:$0xff]
    %v312 = vld [vmem:[%s6 + $0x50] sm:$0xff]
    %v313 = vld [vmem:[%s6 + $0x58] sm:$0xff]
    %v314 = vld [vmem:[%s6 + $0x60] sm:$0xff]
    %v315 = vld [vmem:[%s6 + $0x68] sm:$0xff]
    %v316 = vld [vmem:[%s6 + $0x70] sm:$0xff]
    %v317 = vld [vmem:[%s6 + $0x78] sm:$0xff]
    %v318 = vld [vmem:[%s7] sm:$0x3]
    %v320 = vlaneseq
    %v321 = vshrl.u32 %v320, 7
    %v322 = vsub.s32 0, %v321
    %v323 = vrot.slane %v318, %v322
    %v324 = vlaneseq
    %v325 = vshrl.u32 %v324, 7
    %v326 = vsub.s32 1, %v325
    %v327 = vrot.slane %v318, %v326
    %v346 = vunpack.c.l.b16 %v302
    %v347 = vunpack.c.h.b16 %v302
    %v348 = vunpack.c.l.b16 %v303
    %v349 = vunpack.c.h.b16 %v303
    %v350 = vunpack.c.l.b16 %v304
    %v351 = vunpack.c.h.b16 %v304
    %v352 = vunpack.c.l.b16 %v305
    %v353 = vunpack.c.h.b16 %v305
    %v354 = vunpack.c.l.b16 %v306
    %v355 = vunpack.c.h.b16 %v306
    %v356 = vunpack.c.l.b16 %v307
    %v357 = vunpack.c.h.b16 %v307
    %v358 = vunpack.c.l.b16 %v308
    %v359 = vunpack.c.h.b16 %v308
    %v360 = vunpack.c.l.b16 %v309
    %v361 = vunpack.c.h.b16 %v309
    %v362 = vunpack.c.l.b16 %v310
    %v363 = vunpack.c.h.b16 %v310
    %v364 = vunpack.c.l.b16 %v311
    %v365 = vunpack.c.h.b16 %v311
    %v366 = vunpack.c.l.b16 %v312
    %v367 = vunpack.c.h.b16 %v312
    %v368 = vunpack.c.l.b16 %v313
    %v369 = vunpack.c.h.b16 %v313
    %v370 = vunpack.c.l.b16 %v314
    %v371 = vunpack.c.h.b16 %v314
    %v372 = vunpack.c.l.b16 %v315
    %v373 = vunpack.c.h.b16 %v315
    %v374 = vunpack.c.l.b16 %v316
    %v375 = vunpack.c.h.b16 %v316
    %v376 = vunpack.c.l.b16 %v317
    %v377 = vunpack.c.h.b16 %v317
    %v378 = vpack.c.b16 %v348, %v346
    %v379 = vpack.c.b16 %v349, %v347
    %v380 = vpack.c.b16 %v352, %v350
    %v381 = vpack.c.b16 %v353, %v351
    %v382 = vpack.c.b16 %v356, %v354
    %v383 = vpack.c.b16 %v357, %v355
    %v384 = vpack.c.b16 %v360, %v358
    %v385 = vpack.c.b16 %v361, %v359
    %v386 = vpack.c.b16 %v364, %v362
    %v387 = vpack.c.b16 %v365, %v363
    %v388 = vpack.c.b16 %v368, %v366
    %v389 = vpack.c.b16 %v369, %v367
    %v390 = vpack.c.b16 %v372, %v370
    %v391 = vpack.c.b16 %v373, %v371
    %v392 = vpack.c.b16 %v376, %v374
    %v393 = vpack.c.b16 %v377, %v375
    %410 = vmatprep.subr.bf16.mxu0 %v379
    %411 = vmatpush1.bf16.msra.mxu0 %v378
    %412 = vmatprep.subr.bf16.mxu0 %v381
    %413 = vmatpush1.bf16.msra.mxu0 %v380
    %414 = vmatprep.subr.bf16.mxu0 %v383
    %415 = vmatpush1.bf16.msra.mxu0 %v382
    %416 = vmatprep.subr.bf16.mxu0 %v385
    %417 = vmatpush1.bf16.msra.mxu0 %v384
    %418 = vmatprep.subr.bf16.mxu0 %v387
    %419 = vmatpush1.bf16.msra.mxu0 %v386
    %420 = vmatprep.subr.bf16.mxu0 %v389
    %421 = vmatpush1.bf16.msra.mxu0 %v388
    %422 = vmatprep.subr.bf16.mxu0 %v391
    %423 = vmatpush1.bf16.msra.mxu0 %v390
    %424 = vmatprep.subr.bf16.mxu0 %v393
    %425 = vmatpush1.bf16.msra.mxu0 %v392
    %426 = vmatprep.subr.bf16.mxu0 0
    %427 = vmatpush1.bf16.msra.mxu0 0
    %428 = vmatprep.subr.bf16.mxu0 0
    %429 = vmatpush1.bf16.msra.mxu0 0
    %430 = vmatprep.subr.bf16.mxu0 0
    %431 = vmatpush1.bf16.msra.mxu0 0
    %432 = vmatprep.subr.bf16.mxu0 0
    %433 = vmatpush1.bf16.msra.mxu0 0
    %434 = vmatprep.subr.bf16.mxu0 0
    %435 = vmatpush1.bf16.msra.mxu0 0
    %436 = vmatprep.subr.bf16.mxu0 0
    %437 = vmatpush1.bf16.msra.mxu0 0
    %438 = vmatprep.subr.bf16.mxu0 0
    %439 = vmatpush1.bf16.msra.mxu0 0
    %440 = vmatprep.subr.bf16.mxu0 0
    %441 = vmatpush1.bf16.msra.mxu0 0
    %442 = vmatprep.mubr.bf16.mxu0 0
    %443 = vmatmul.mubr.bf16.gmra.mrb[0].mxu0 %v301
    %v444 = vpop.f32.mrb[0].mxu0
    %v445 = vadd.f32 %v323, %v444
    %v446 = vpop.f32.mrb[0].mxu0
    %v447 = vadd.f32 %v327, %v446
    %v448 = vpop.f32.mrb[0].mxu0
    %v449 = vadd.f32 %v323, %v448
    %v450 = vpop.f32.mrb[0].mxu0
    %v451 = vadd.f32 %v327, %v450
    %452 = vdwg.mxu0
    %v453 = vmul.f32 %v445, %v79
    %v454 = vmul.f32 %v447, %v80
    %v455 = vmul.f32 %v449, %v81
    %v456 = vmul.f32 %v451, %v82
    %457 = vmatprep.subr.mxu0 %v120
    %458 = vmatpush1.msra.mxu0 %v119
    %459 = vmatprep.subr.mxu0 %v122
    %460 = vmatpush1.msra.mxu0 %v121
    %461 = vmatprep.subr.mxu0 %v124
    %462 = vmatpush1.msra.mxu0 %v123
    %463 = vmatprep.subr.mxu0 %v126
    %464 = vmatpush1.msra.mxu0 %v125
    %465 = vmatprep.subr.mxu0 %v128
    %466 = vmatpush1.msra.mxu0 %v127
    %467 = vmatprep.subr.mxu0 %v130
    %468 = vmatpush1.msra.mxu0 %v129
    %469 = vmatprep.subr.mxu0 %v132
    %470 = vmatpush1.msra.mxu0 %v131
    %471 = vmatprep.subr.mxu0 %v134
    %472 = vmatpush1.msra.mxu0 %v133
    %473 = vmatprep.subr.mxu0 %v136
    %474 = vmatpush1.msra.mxu0 %v135
    %475 = vmatprep.subr.mxu0 %v138
    %476 = vmatpush1.msra.mxu0 %v137
    %477 = vmatprep.subr.mxu0 %v140
    %478 = vmatpush1.msra.mxu0 %v139
    %479 = vmatprep.subr.mxu0 %v142
    %480 = vmatpush1.msra.mxu0 %v141
    %481 = vmatprep.subr.mxu0 %v144
    %482 = vmatpush1.msra.mxu0 %v143
    %483 = vmatprep.subr.mxu0 %v146
    %484 = vmatpush1.msra.mxu0 %v145
    %485 = vmatprep.subr.mxu0 %v148
    %486 = vmatpush1.msra.mxu0 %v147
    %487 = vmatprep.subr.mxu0 %v150
    %488 = vmatpush1.msra.mxu0 %v149
    %489 = vmatprep.subr.mxu0 %v152
    %490 = vmatpush1.msra.mxu0 %v151
    %491 = vmatprep.subr.mxu0 %v154
    %492 = vmatpush1.msra.mxu0 %v153
    %493 = vmatprep.subr.mxu0 %v156
    %494 = vmatpush1.msra.mxu0 %v155
    %495 = vmatprep.subr.mxu0 %v158
    %496 = vmatpush1.msra.mxu0 %v157
    %497 = vmatprep.subr.mxu0 %v160
    %498 = vmatpush1.msra.mxu0 %v159
    %499 = vmatprep.subr.mxu0 %v162
    %500 = vmatpush1.msra.mxu0 %v161
    %501 = vmatprep.subr.mxu0 %v164
    %502 = vmatpush1.msra.mxu0 %v163
    %503 = vmatprep.subr.mxu0 %v166
    %504 = vmatpush1.msra.mxu0 %v165
    %505 = vmatprep.subr.mxu0 %v168
    %506 = vmatpush1.msra.mxu0 %v167
    %507 = vmatprep.subr.mxu0 %v170
    %508 = vmatpush1.msra.mxu0 %v169
    %509 = vmatprep.subr.mxu0 %v172
    %510 = vmatpush1.msra.mxu0 %v171
    %511 = vmatprep.subr.mxu0 %v174
    %512 = vmatpush1.msra.mxu0 %v173
    %513 = vmatprep.subr.mxu0 %v176
    %514 = vmatpush1.msra.mxu0 %v175
    %515 = vmatprep.subr.mxu0 %v178
    %516 = vmatpush1.msra.mxu0 %v177
    %517 = vmatprep.subr.mxu0 %v180
    %518 = vmatpush1.msra.mxu0 %v179
    %519 = vmatprep.subr.mxu0 %v182
    %520 = vmatpush1.msra.mxu0 %v181
    %521 = vmatprep.mubr.f32.mxu0 %v447
    %522 = vmatmul.mubr.f32.gmra.mrb[0].mxu0 %v445
    %v523 = vpop.f32.mrb[0].mxu0
    %v524 = vadd.f32 0.0, %v523
    %v525 = vpop.f32.mrb[0].mxu0
    %v526 = vadd.f32 0.0, %v525
    %527 = vmatprep.mubr.f32.mxu0 %v451
    %528 = vmatmul.mubr.f32.gmra.mrb[0].mxu0 %v449
    %v529 = vpop.f32.mrb[0].mxu0
    %v530 = vadd.f32 0.0, %v529
    %v531 = vpop.f32.mrb[0].mxu0
    %v532 = vadd.f32 0.0, %v531
    %533 = vdwg.mxu0
    %v534 = vmul.f32 %v524, %v83
    %v535 = vmul.f32 %v526, %v84
    %v536 = vmul.f32 %v530, %v85
    %v537 = vmul.f32 %v532, %v86
    %v538 = vadd.f32 %v453, %v534
    %v539 = vadd.f32 %v454, %v535
    %v540 = vadd.f32 %v455, %v536
    %v541 = vadd.f32 %v456, %v537
    %v542 = vld [vmem:[%s8] sm:$0xf]
    %v543 = vld [vmem:[%s8 + $0x4] sm:$0xf]
    %v544 = vld [vmem:[%s8 + $0x8] sm:$0xf]
    %v545 = vld [vmem:[%s8 + $0xc] sm:$0xf]
    %v546 = vld [vmem:[%s8 + $0x10] sm:$0xf]
    %v547 = vld [vmem:[%s8 + $0x14] sm:$0xf]
    %v548 = vld [vmem:[%s8 + $0x18] sm:$0xf]
    %v549 = vld [vmem:[%s8 + $0x1c] sm:$0xf]
    %v550 = vld [vmem:[%s8 + $0x20] sm:$0xf]
    %v551 = vld [vmem:[%s8 + $0x24] sm:$0xf]
    %v552 = vld [vmem:[%s8 + $0x28] sm:$0xf]
    %v553 = vld [vmem:[%s8 + $0x2c] sm:$0xf]
    %v554 = vld [vmem:[%s8 + $0x30] sm:$0xf]
    %v555 = vld [vmem:[%s8 + $0x34] sm:$0xf]
    %v556 = vld [vmem:[%s8 + $0x38] sm:$0xf]
    %v557 = vld [vmem:[%s8 + $0x3c] sm:$0xf]
    %vm558 = vcmask 261120
    %v560 = vsel %vm558, %v538, 0
    %v563 = vsel %vm558, %v540, 0
    %v566 = vsel %vm558, %v539, 0
    %v569 = vsel %vm558, %v541, 0
    %571 = vmatprep.subr.mxu0 0.0
    %572 = vmatpush1.xpose.msra.mxu0 %v566
    %573 = vmatprep.subr.mxu0 0.0
    %574 = vmatpush1.xpose.msra.mxu0 %v569
    %575 = vmatprep.subr.mxu0 0.0
    %576 = vmatpush1.xpose.msra.mxu0 0.0
    %577 = vmatprep.subr.mxu0 0.0
    %578 = vmatpush1.xpose.msra.mxu0 0.0
    %579 = vmatprep.subr.mxu0 0.0
    %580 = vmatpush1.xpose.msra.mxu0 0.0
    %581 = vmatprep.subr.mxu0 0.0
    %582 = vmatpush1.xpose.msra.mxu0 0.0
    %583 = vmatprep.subr.mxu0 0.0
    %584 = vmatpush1.xpose.msra.mxu0 0.0
    %585 = vmatprep.subr.mxu0 0.0
    %586 = vmatpush1.xpose.msra.mxu0 0.0
    %587 = vmatprep.subr.mxu0 0.0
    %588 = vmatpush1.xpose.msra.mxu0 0.0
    %589 = vmatprep.subr.mxu0 0.0
    %590 = vmatpush1.xpose.msra.mxu0 0.0
    %591 = vmatprep.subr.mxu0 0.0
    %592 = vmatpush1.xpose.msra.mxu0 0.0
    %593 = vmatprep.subr.mxu0 0.0
    %594 = vmatpush1.xpose.msra.mxu0 0.0
    %595 = vmatprep.subr.mxu0 0.0
    %596 = vmatpush1.xpose.msra.mxu0 0.0
    %597 = vmatprep.subr.mxu0 0.0
    %598 = vmatpush1.xpose.msra.mxu0 0.0
    %599 = vmatprep.subr.mxu0 0.0
    %600 = vmatpush1.xpose.msra.mxu0 0.0
    %601 = vmatprep.subr.mxu0 0.0
    %602 = vmatpush1.xpose.msra.mxu0 0.0
    %603 = vmatprep.subr.mxu0 0.0
    %604 = vmatpush1.xpose.msra.mxu0 0.0
    %605 = vmatprep.subr.mxu0 0.0
    %606 = vmatpush1.xpose.msra.mxu0 0.0
    %607 = vmatprep.subr.mxu0 0.0
    %608 = vmatpush1.xpose.msra.mxu0 0.0
    %609 = vmatprep.subr.mxu0 0.0
    %610 = vmatpush1.xpose.msra.mxu0 0.0
    %611 = vmatprep.subr.mxu0 0.0
    %612 = vmatpush1.xpose.msra.mxu0 0.0
    %613 = vmatprep.subr.mxu0 0.0
    %614 = vmatpush1.xpose.msra.mxu0 0.0
    %615 = vmatprep.subr.mxu0 0.0
    %616 = vmatpush1.xpose.msra.mxu0 0.0
    %617 = vmatprep.subr.mxu0 0.0
    %618 = vmatpush1.xpose.msra.mxu0 0.0
    %619 = vmatprep.subr.mxu0 0.0
    %620 = vmatpush1.xpose.msra.mxu0 0.0
    %621 = vmatprep.subr.mxu0 0.0
    %622 = vmatpush1.xpose.msra.mxu0 0.0
    %623 = vmatprep.subr.mxu0 0.0
    %624 = vmatpush1.xpose.msra.mxu0 0.0
    %625 = vmatprep.subr.mxu0 0.0
    %626 = vmatpush1.xpose.msra.mxu0 0.0
    %627 = vmatprep.subr.mxu0 0.0
    %628 = vmatpush1.xpose.msra.mxu0 0.0
    %629 = vmatprep.subr.mxu0 0.0
    %630 = vmatpush1.xpose.msra.mxu0 0.0
    %631 = vmatprep.subr.mxu0 0.0
    %632 = vmatpush1.xpose.msra.mxu0 0.0
    %633 = vmatprep.subr.mxu0 0.0
    %634 = vmatpush1.xpose.msra.mxu0 0.0
    %635 = vmatprep.mubr.f32.mxu0 0.0
    %636 = vmatmul.mubr.f32.gmra.mrb[0].mxu0 %v560
    %v637 = vpop.f32.mrb[0].mxu0
    %v638 = vadd.f32 0.0, %v637
    %v639 = vpop.f32.mrb[0].mxu0
    %640 = vmatprep.mubr.f32.mxu0 0.0
    %641 = vmatmul.mubr.f32.gmra.mrb[0].mxu0 %v563
    %v642 = vpop.f32.mrb[0].mxu0
    %v643 = vadd.f32 0.0, %v642
    %v644 = vpop.f32.mrb[0].mxu0
    %645 = vdwg.mxu0
    %v646 = vsel %vm186, %v638, -inf
    %v647 = vsel %vm187, %v643, -inf
    %vm648 = vcmask 130048
    %v649 = vsel %vm648, %v646, -inf
    %650 = vmax.xlane.f32.xlu0 %v649
    %v651 = vpop.xlane.xlu0 %650
    %v652 = vsel %vm648, %v647, -inf
    %653 = vmax.xlane.f32.xlu0 %v652
    %v654 = vpop.xlane.xlu0 %653
    %v655 = vsub.f32 %v646, %v651
    %v656 = vsub.f32 %v647, %v654
    %v657 = vmul.f32 %v655, 1.442695
    %v658 = vpow.pop %v657
    %v659 = vmul.f32 %v656, 1.442695
    %v660 = vpow.pop %v659
    %v661 = vsel %vm648, %v658, 0.0
    %662 = vadd.xlane.f32.xlu0 %v661
    %v663 = vpop.xlane.xlu0 %662
    %v664 = vsel %vm648, %v660, 0.0
    %665 = vadd.xlane.f32.xlu0 %v664
    %v666 = vpop.xlane.xlu0 %665
    %v667 = vrcp.pop %v663
    %v668 = vrcp.pop %v666
    %v669 = vmul.f32 %v658, %v667
    %v670 = vmul.f32 %v660, %v668
    %671 = vrot.lane.b32.xlu0 %v539, 64
    %v672 = vpop.permute.xlu0 %671
    %673 = vrot.lane.b32.xlu0 %v541, 64
    %v674 = vpop.permute.xlu0 %673
    %v678 = vsel %vm648, %v669, 0
    %v681 = vsel %vm648, %v670, 0
    %683 = vmatprep.subr.mxu0 0.0
    %684 = vmatpush1.msra.mxu0 %v672
    %685 = vmatprep.subr.mxu0 0.0
    %686 = vmatpush1.msra.mxu0 %v674
    %687 = vmatprep.subr.mxu0 0.0
    %688 = vmatpush1.msra.mxu0 0.0
    %689 = vmatprep.subr.mxu0 0.0
    %690 = vmatpush1.msra.mxu0 0.0
    %691 = vmatprep.subr.mxu0 0.0
    %692 = vmatpush1.msra.mxu0 0.0
    %693 = vmatprep.subr.mxu0 0.0
    %694 = vmatpush1.msra.mxu0 0.0
    %695 = vmatprep.subr.mxu0 0.0
    %696 = vmatpush1.msra.mxu0 0.0
    %697 = vmatprep.subr.mxu0 0.0
    %698 = vmatpush1.msra.mxu0 0.0
    %699 = vmatprep.subr.mxu0 0.0
    %700 = vmatpush1.msra.mxu0 0.0
    %701 = vmatprep.subr.mxu0 0.0
    %702 = vmatpush1.msra.mxu0 0.0
    %703 = vmatprep.subr.mxu0 0.0
    %704 = vmatpush1.msra.mxu0 0.0
    %705 = vmatprep.subr.mxu0 0.0
    %706 = vmatpush1.msra.mxu0 0.0
    %707 = vmatprep.subr.mxu0 0.0
    %708 = vmatpush1.msra.mxu0 0.0
    %709 = vmatprep.subr.mxu0 0.0
    %710 = vmatpush1.msra.mxu0 0.0
    %711 = vmatprep.subr.mxu0 0.0
    %712 = vmatpush1.msra.mxu0 0.0
    %713 = vmatprep.subr.mxu0 0.0
    %714 = vmatpush1.msra.mxu0 0.0
    %715 = vmatprep.subr.mxu0 0.0
    %716 = vmatpush1.msra.mxu0 0.0
    %717 = vmatprep.subr.mxu0 0.0
    %718 = vmatpush1.msra.mxu0 0.0
    %719 = vmatprep.subr.mxu0 0.0
    %720 = vmatpush1.msra.mxu0 0.0
    %721 = vmatprep.subr.mxu0 0.0
    %722 = vmatpush1.msra.mxu0 0.0
    %723 = vmatprep.subr.mxu0 0.0
    %724 = vmatpush1.msra.mxu0 0.0
    %725 = vmatprep.subr.mxu0 0.0
    %726 = vmatpush1.msra.mxu0 0.0
    %727 = vmatprep.subr.mxu0 0.0
    %728 = vmatpush1.msra.mxu0 0.0
    %729 = vmatprep.subr.mxu0 0.0
    %730 = vmatpush1.msra.mxu0 0.0
    %731 = vmatprep.subr.mxu0 0.0
    %732 = vmatpush1.msra.mxu0 0.0
    %733 = vmatprep.subr.mxu0 0.0
    %734 = vmatpush1.msra.mxu0 0.0
    %735 = vmatprep.subr.mxu0 0.0
    %736 = vmatpush1.msra.mxu0 0.0
    %737 = vmatprep.subr.mxu0 0.0
    %738 = vmatpush1.msra.mxu0 0.0
    %739 = vmatprep.subr.mxu0 0.0
    %740 = vmatpush1.msra.mxu0 0.0
    %741 = vmatprep.subr.mxu0 0.0
    %742 = vmatpush1.msra.mxu0 0.0
    %743 = vmatprep.subr.mxu0 0.0
    %744 = vmatpush1.msra.mxu0 0.0
    %745 = vmatprep.subr.mxu0 0.0
    %746 = vmatpush1.msra.mxu0 0.0
    %747 = vmatprep.mubr.f32.mxu0 0.0
    %748 = vmatmul.mubr.f32.gmra.mrb[0].mxu0 %v678
    %v749 = vpop.f32.mrb[0].mxu0
    %v750 = vadd.f32 0.0, %v749
    %v751 = vpop.f32.mrb[0].mxu0
    %752 = vmatprep.mubr.f32.mxu0 0.0
    %753 = vmatmul.mubr.f32.gmra.mrb[0].mxu0 %v681
    %v754 = vpop.f32.mrb[0].mxu0
    %v755 = vadd.f32 0.0, %v754
    %v756 = vpop.f32.mrb[0].mxu0
    %757 = vdwg.mxu0
    %v758 = vpack.c.bf16 %v755, %v750
    %759 = vrot.lane.b32.xlu0 %v538, 96
    %v760 = vpop.permute.xlu0 %759
    %761 = vrot.lane.b32.xlu0 %v540, 96
    %v762 = vpop.permute.xlu0 %761
    %v763 = vsel %vm558, %v760, 0
    %v765 = vsel %vm558, %v762, 0
    %767 = vmatprep.subr.mxu0 0.0
    %768 = vmatpush1.xpose.msra.mxu0 %v566
    %769 = vmatprep.subr.mxu0 0.0
    %770 = vmatpush1.xpose.msra.mxu0 %v569
    %771 = vmatprep.subr.mxu0 0.0
    %772 = vmatpush1.xpose.msra.mxu0 0.0
    %773 = vmatprep.subr.mxu0 0.0
    %774 = vmatpush1.xpose.msra.mxu0 0.0
    %775 = vmatprep.subr.mxu0 0.0
    %776 = vmatpush1.xpose.msra.mxu0 0.0
    %777 = vmatprep.subr.mxu0 0.0
    %778 = vmatpush1.xpose.msra.mxu0 0.0
    %779 = vmatprep.subr.mxu0 0.0
    %780 = vmatpush1.xpose.msra.mxu0 0.0
    %781 = vmatprep.subr.mxu0 0.0
    %782 = vmatpush1.xpose.msra.mxu0 0.0
    %783 = vmatprep.subr.mxu0 0.0
    %784 = vmatpush1.xpose.msra.mxu0 0.0
    %785 = vmatprep.subr.mxu0 0.0
    %786 = vmatpush1.xpose.msra.mxu0 0.0
    %787 = vmatprep.subr.mxu0 0.0
    %788 = vmatpush1.xpose.msra.mxu0 0.0
    %789 = vmatprep.subr.mxu0 0.0
    %790 = vmatpush1.xpose.msra.mxu0 0.0
    %791 = vmatprep.subr.mxu0 0.0
    %792 = vmatpush1.xpose.msra.mxu0 0.0
    %793 = vmatprep.subr.mxu0 0.0
    %794 = vmatpush1.xpose.msra.mxu0 0.0
    %795 = vmatprep.subr.mxu0 0.0
    %796 = vmatpush1.xpose.msra.mxu0 0.0
    %797 = vmatprep.subr.mxu0 0.0
    %798 = vmatpush1.xpose.msra.mxu0 0.0
    %799 = vmatprep.subr.mxu0 0.0
    %800 = vmatpush1.xpose.msra.mxu0 0.0
    %801 = vmatprep.subr.mxu0 0.0
    %802 = vmatpush1.xpose.msra.mxu0 0.0
    %803 = vmatprep.subr.mxu0 0.0
    %804 = vmatpush1.xpose.msra.mxu0 0.0
    %805 = vmatprep.subr.mxu0 0.0
    %806 = vmatpush1.xpose.msra.mxu0 0.0
    %807 = vmatprep.subr.mxu0 0.0
    %808 = vmatpush1.xpose.msra.mxu0 0.0
    %809 = vmatprep.subr.mxu0 0.0
    %810 = vmatpush1.xpose.msra.mxu0 0.0
    %811 = vmatprep.subr.mxu0 0.0
    %812 = vmatpush1.xpose.msra.mxu0 0.0
    %813 = vmatprep.subr.mxu0 0.0
    %814 = vmatpush1.xpose.msra.mxu0 0.0
    %815 = vmatprep.subr.mxu0 0.0
    %816 = vmatpush1.xpose.msra.mxu0 0.0
    %817 = vmatprep.subr.mxu0 0.0
    %818 = vmatpush1.xpose.msra.mxu0 0.0
    %819 = vmatprep.subr.mxu0 0.0
    %820 = vmatpush1.xpose.msra.mxu0 0.0
    %821 = vmatprep.subr.mxu0 0.0
    %822 = vmatpush1.xpose.msra.mxu0 0.0
    %823 = vmatprep.subr.mxu0 0.0
    %824 = vmatpush1.xpose.msra.mxu0 0.0
    %825 = vmatprep.subr.mxu0 0.0
    %826 = vmatpush1.xpose.msra.mxu0 0.0
    %827 = vmatprep.subr.mxu0 0.0
    %828 = vmatpush1.xpose.msra.mxu0 0.0
    %829 = vmatprep.subr.mxu0 0.0
    %830 = vmatpush1.xpose.msra.mxu0 0.0
    %831 = vmatprep.mubr.f32.mxu0 0.0
    %832 = vmatmul.mubr.f32.gmra.mrb[0].mxu0 %v763
    %v833 = vpop.f32.mrb[0].mxu0
    %v834 = vadd.f32 0.0, %v833
    %v835 = vpop.f32.mrb[0].mxu0
    %836 = vmatprep.mubr.f32.mxu0 0.0
    %837 = vmatmul.mubr.f32.gmra.mrb[0].mxu0 %v765
    %v838 = vpop.f32.mrb[0].mxu0
    %v839 = vadd.f32 0.0, %v838
    %v840 = vpop.f32.mrb[0].mxu0
    %841 = vdwg.mxu0
    %v842 = vsel %vm186, %v834, -inf
    %v843 = vsel %vm187, %v839, -inf
    %v844 = vsel %vm648, %v842, -inf
    %845 = vmax.xlane.f32.xlu0 %v844
    %v846 = vpop.xlane.xlu0 %845
    %v847 = vsel %vm648, %v843, -inf
    %848 = vmax.xlane.f32.xlu0 %v847
    %v849 = vpop.xlane.xlu0 %848
    %v850 = vsub.f32 %v842, %v846
    %v851 = vsub.f32 %v843, %v849
    %v852 = vmul.f32 %v850, 1.442695
    %v853 = vpow.pop %v852
    %v854 = vmul.f32 %v851, 1.442695
    %v855 = vpow.pop %v854
    %v856 = vsel %vm648, %v853, 0.0
    %857 = vadd.xlane.f32.xlu0 %v856
    %v858 = vpop.xlane.xlu0 %857
    %v859 = vsel %vm648, %v855, 0.0
    %860 = vadd.xlane.f32.xlu0 %v859
    %v861 = vpop.xlane.xlu0 %860
    %v862 = vrcp.pop %v858
    %v863 = vrcp.pop %v861
    %v864 = vmul.f32 %v853, %v862
    %v865 = vmul.f32 %v855, %v863
    %v867 = vsel %vm648, %v864, 0
    %v870 = vsel %vm648, %v865, 0
    %872 = vmatprep.subr.mxu0 0.0
    %873 = vmatpush1.msra.mxu0 %v672
    %874 = vmatprep.subr.mxu0 0.0
    %875 = vmatpush1.msra.mxu0 %v674
    %876 = vmatprep.subr.mxu0 0.0
    %877 = vmatpush1.msra.mxu0 0.0
    %878 = vmatprep.subr.mxu0 0.0
    %879 = vmatpush1.msra.mxu0 0.0
    %880 = vmatprep.subr.mxu0 0.0
    %881 = vmatpush1.msra.mxu0 0.0
    %882 = vmatprep.subr.mxu0 0.0
    %883 = vmatpush1.msra.mxu0 0.0
    %884 = vmatprep.subr.mxu0 0.0
    %885 = vmatpush1.msra.mxu0 0.0
    %886 = vmatprep.subr.mxu0 0.0
    %887 = vmatpush1.msra.mxu0 0.0
    %888 = vmatprep.subr.mxu0 0.0
    %889 = vmatpush1.msra.mxu0 0.0
    %890 = vmatprep.subr.mxu0 0.0
    %891 = vmatpush1.msra.mxu0 0.0
    %892 = vmatprep.subr.mxu0 0.0
    %893 = vmatpush1.msra.mxu0 0.0
    %894 = vmatprep.subr.mxu0 0.0
    %895 = vmatpush1.msra.mxu0 0.0
    %896 = vmatprep.subr.mxu0 0.0
    %897 = vmatpush1.msra.mxu0 0.0
    %898 = vmatprep.subr.mxu0 0.0
    %899 = vmatpush1.msra.mxu0 0.0
    %900 = vmatprep.subr.mxu0 0.0
    %901 = vmatpush1.msra.mxu0 0.0
    %902 = vmatprep.subr.mxu0 0.0
    %903 = vmatpush1.msra.mxu0 0.0
    %904 = vmatprep.subr.mxu0 0.0
    %905 = vmatpush1.msra.mxu0 0.0
    %906 = vmatprep.subr.mxu0 0.0
    %907 = vmatpush1.msra.mxu0 0.0
    %908 = vmatprep.subr.mxu0 0.0
    %909 = vmatpush1.msra.mxu0 0.0
    %910 = vmatprep.subr.mxu0 0.0
    %911 = vmatpush1.msra.mxu0 0.0
    %912 = vmatprep.subr.mxu0 0.0
    %913 = vmatpush1.msra.mxu0 0.0
    %914 = vmatprep.subr.mxu0 0.0
    %915 = vmatpush1.msra.mxu0 0.0
    %916 = vmatprep.subr.mxu0 0.0
    %917 = vmatpush1.msra.mxu0 0.0
    %918 = vmatprep.subr.mxu0 0.0
    %919 = vmatpush1.msra.mxu0 0.0
    %920 = vmatprep.subr.mxu0 0.0
    %921 = vmatpush1.msra.mxu0 0.0
    %922 = vmatprep.subr.mxu0 0.0
    %923 = vmatpush1.msra.mxu0 0.0
    %924 = vmatprep.subr.mxu0 0.0
    %925 = vmatpush1.msra.mxu0 0.0
    %926 = vmatprep.subr.mxu0 0.0
    %927 = vmatpush1.msra.mxu0 0.0
    %928 = vmatprep.subr.mxu0 0.0
    %929 = vmatpush1.msra.mxu0 0.0
    %930 = vmatprep.subr.mxu0 0.0
    %931 = vmatpush1.msra.mxu0 0.0
    %932 = vmatprep.subr.mxu0 0.0
    %933 = vmatpush1.msra.mxu0 0.0
    %934 = vmatprep.subr.mxu0 0.0
    %935 = vmatpush1.msra.mxu0 0.0
    %936 = vmatprep.mubr.f32.mxu0 0.0
    %937 = vmatmul.mubr.f32.gmra.mrb[0].mxu0 %v867
    %v938 = vpop.f32.mrb[0].mxu0
    %v939 = vadd.f32 0.0, %v938
    %v940 = vpop.f32.mrb[0].mxu0
    %941 = vmatprep.mubr.f32.mxu0 0.0
    %942 = vmatmul.mubr.f32.gmra.mrb[0].mxu0 %v870
    %v943 = vpop.f32.mrb[0].mxu0
    %v944 = vadd.f32 0.0, %v943
    %v945 = vpop.f32.mrb[0].mxu0
    %946 = vdwg.mxu0
    %v947 = vpack.c.bf16 %v944, %v939
    %v952 = vunpack.c.l.b16 %v546
    %v953 = vunpack.c.l.b16 %v547
    %v954 = vunpack.c.l.b16 %v548
    %v955 = vunpack.c.l.b16 %v549
    %v956 = vpack.c.b16 %v953, %v952
    %v957 = vpack.c.b16 %v955, %v954
    %v961 = vsel %vm558, %v947, 0
    %963 = vmatprep.subr.bf16.mxu0 0
    %964 = vmatpush1.bf16.msra.mxu0 %v956
    %965 = vmatprep.subr.bf16.mxu0 0
    %966 = vmatpush1.bf16.msra.mxu0 %v957
    %967 = vmatprep.subr.bf16.mxu0 0
    %968 = vmatpush1.bf16.msra.mxu0 0
    %969 = vmatprep.subr.bf16.mxu0 0
    %970 = vmatpush1.bf16.msra.mxu0 0
    %971 = vmatprep.subr.bf16.mxu0 0
    %972 = vmatpush1.bf16.msra.mxu0 0
    %973 = vmatprep.subr.bf16.mxu0 0
    %974 = vmatpush1.bf16.msra.mxu0 0
    %975 = vmatprep.subr.bf16.mxu0 0
    %976 = vmatpush1.bf16.msra.mxu0 0
    %977 = vmatprep.subr.bf16.mxu0 0
    %978 = vmatpush1.bf16.msra.mxu0 0
    %979 = vmatprep.subr.bf16.mxu0 0
    %980 = vmatpush1.bf16.msra.mxu0 0
    %981 = vmatprep.subr.bf16.mxu0 0
    %982 = vmatpush1.bf16.msra.mxu0 0
    %983 = vmatprep.subr.bf16.mxu0 0
    %984 = vmatpush1.bf16.msra.mxu0 0
    %985 = vmatprep.subr.bf16.mxu0 0
    %986 = vmatpush1.bf16.msra.mxu0 0
    %987 = vmatprep.subr.bf16.mxu0 0
    %988 = vmatpush1.bf16.msra.mxu0 0
    %989 = vmatprep.subr.bf16.mxu0 0
    %990 = vmatpush1.bf16.msra.mxu0 0
    %991 = vmatprep.subr.bf16.mxu0 0
    %992 = vmatpush1.bf16.msra.mxu0 0
    %993 = vmatprep.subr.bf16.mxu0 0
    %994 = vmatpush1.bf16.msra.mxu0 0
    %995 = vmatprep.mubr.bf16.mxu0 0
    %996 = vmatmul.mubr.bf16.gmra.mrb[0].mxu0 %v961
    %v997 = vpop.f32.mrb[0].mxu0
    %v998 = vadd.f32 0.0, %v997
    %v999 = vpop.f32.mrb[0].mxu0
    %v1000 = vpop.f32.mrb[0].mxu0
    %v1001 = vadd.f32 0.0, %v1000
    %v1002 = vpop.f32.mrb[0].mxu0
    %1003 = vdwg.mxu0
    %v1008 = vunpack.c.l.b16 %v542
    %v1009 = vunpack.c.l.b16 %v543
    %v1010 = vunpack.c.l.b16 %v544
    %v1011 = vunpack.c.l.b16 %v545
    %v1012 = vpack.c.b16 %v1009, %v1008
    %v1013 = vpack.c.b16 %v1011, %v1010
    %v1017 = vsel %vm558, %v758, 0
    %1019 = vmatprep.subr.bf16.mxu0 0
    %1020 = vmatpush1.bf16.msra.mxu0 %v1012
    %1021 = vmatprep.subr.bf16.mxu0 0
    %1022 = vmatpush1.bf16.msra.mxu0 %v1013
    %1023 = vmatprep.subr.bf16.mxu0 0
    %1024 = vmatpush1.bf16.msra.mxu0 0
    %1025 = vmatprep.subr.bf16.mxu0 0
    %1026 = vmatpush1.bf16.msra.mxu0 0
    %1027 = vmatprep.subr.bf16.mxu0 0
    %1028 = vmatpush1.bf16.msra.mxu0 0
    %1029 = vmatprep.subr.bf16.mxu0 0
    %1030 = vmatpush1.bf16.msra.mxu0 0
    %1031 = vmatprep.subr.bf16.mxu0 0
    %1032 = vmatpush1.bf16.msra.mxu0 0
    %1033 = vmatprep.subr.bf16.mxu0 0
    %1034 = vmatpush1.bf16.msra.mxu0 0
    %1035 = vmatprep.subr.bf16.mxu0 0
    %1036 = vmatpush1.bf16.msra.mxu0 0
    %1037 = vmatprep.subr.bf16.mxu0 0
    %1038 = vmatpush1.bf16.msra.mxu0 0
    %1039 = vmatprep.subr.bf16.mxu0 0
    %1040 = vmatpush1.bf16.msra.mxu0 0
    %1041 = vmatprep.subr.bf16.mxu0 0
    %1042 = vmatpush1.bf16.msra.mxu0 0
    %1043 = vmatprep.subr.bf16.mxu0 0
    %1044 = vmatpush1.bf16.msra.mxu0 0
    %1045 = vmatprep.subr.bf16.mxu0 0
    %1046 = vmatpush1.bf16.msra.mxu0 0
    %1047 = vmatprep.subr.bf16.mxu0 0
    %1048 = vmatpush1.bf16.msra.mxu0 0
    %1049 = vmatprep.subr.bf16.mxu0 0
    %1050 = vmatpush1.bf16.msra.mxu0 0
    %1051 = vmatprep.mubr.bf16.mxu0 0
    %1052 = vmatmul.mubr.bf16.gmra.mrb[0].mxu0 %v1017
    %v1053 = vpop.f32.mrb[0].mxu0
    %v1054 = vadd.f32 %v998, %v1053
    %v1055 = vpop.f32.mrb[0].mxu0
    %v1056 = vpop.f32.mrb[0].mxu0
    %v1057 = vadd.f32 %v1001, %v1056
    %v1058 = vpop.f32.mrb[0].mxu0
    %1059 = vdwg.mxu0
    %1060 = vrot.lane.b32.xlu0 %v538, 64
    %v1061 = vpop.permute.xlu0 %1060
    %1062 = vrot.lane.b32.xlu0 %v540, 64
    %v1063 = vpop.permute.xlu0 %1062
    %1064 = vrot.lane.b32.xlu0 %v539, 96
    %v1065 = vpop.permute.xlu0 %1064
    %1066 = vrot.lane.b32.xlu0 %v541, 96
    %v1067 = vpop.permute.xlu0 %1066
    %v1068 = vsel %vm558, %v1061, 0
    %v1070 = vsel %vm558, %v1063, 0
    %v1072 = vsel %vm558, %v1065, 0
    %v1074 = vsel %vm558, %v1067, 0
    %1076 = vmatprep.subr.mxu0 0.0
    %1077 = vmatpush1.xpose.msra.mxu0 %v1072
    %1078 = vmatprep.subr.mxu0 0.0
    %1079 = vmatpush1.xpose.msra.mxu0 %v1074
    %1080 = vmatprep.subr.mxu0 0.0
    %1081 = vmatpush1.xpose.msra.mxu0 0.0
    %1082 = vmatprep.subr.mxu0 0.0
    %1083 = vmatpush1.xpose.msra.mxu0 0.0
    %1084 = vmatprep.subr.mxu0 0.0
    %1085 = vmatpush1.xpose.msra.mxu0 0.0
    %1086 = vmatprep.subr.mxu0 0.0
    %1087 = vmatpush1.xpose.msra.mxu0 0.0
    %1088 = vmatprep.subr.mxu0 0.0
    %1089 = vmatpush1.xpose.msra.mxu0 0.0
    %1090 = vmatprep.subr.mxu0 0.0
    %1091 = vmatpush1.xpose.msra.mxu0 0.0
    %1092 = vmatprep.subr.mxu0 0.0
    %1093 = vmatpush1.xpose.msra.mxu0 0.0
    %1094 = vmatprep.subr.mxu0 0.0
    %1095 = vmatpush1.xpose.msra.mxu0 0.0
    %1096 = vmatprep.subr.mxu0 0.0
    %1097 = vmatpush1.xpose.msra.mxu0 0.0
    %1098 = vmatprep.subr.mxu0 0.0
    %1099 = vmatpush1.xpose.msra.mxu0 0.0
    %1100 = vmatprep.subr.mxu0 0.0
    %1101 = vmatpush1.xpose.msra.mxu0 0.0
    %1102 = vmatprep.subr.mxu0 0.0
    %1103 = vmatpush1.xpose.msra.mxu0 0.0
    %1104 = vmatprep.subr.mxu0 0.0
    %1105 = vmatpush1.xpose.msra.mxu0 0.0
    %1106 = vmatprep.subr.mxu0 0.0
    %1107 = vmatpush1.xpose.msra.mxu0 0.0
    %1108 = vmatprep.subr.mxu0 0.0
    %1109 = vmatpush1.xpose.msra.mxu0 0.0
    %1110 = vmatprep.subr.mxu0 0.0
    %1111 = vmatpush1.xpose.msra.mxu0 0.0
    %1112 = vmatprep.subr.mxu0 0.0
    %1113 = vmatpush1.xpose.msra.mxu0 0.0
    %1114 = vmatprep.subr.mxu0 0.0
    %1115 = vmatpush1.xpose.msra.mxu0 0.0
    %1116 = vmatprep.subr.mxu0 0.0
    %1117 = vmatpush1.xpose.msra.mxu0 0.0
    %1118 = vmatprep.subr.mxu0 0.0
    %1119 = vmatpush1.xpose.msra.mxu0 0.0
    %1120 = vmatprep.subr.mxu0 0.0
    %1121 = vmatpush1.xpose.msra.mxu0 0.0
    %1122 = vmatprep.subr.mxu0 0.0
    %1123 = vmatpush1.xpose.msra.mxu0 0.0
    %1124 = vmatprep.subr.mxu0 0.0
    %1125 = vmatpush1.xpose.msra.mxu0 0.0
    %1126 = vmatprep.subr.mxu0 0.0
    %1127 = vmatpush1.xpose.msra.mxu0 0.0
    %1128 = vmatprep.subr.mxu0 0.0
    %1129 = vmatpush1.xpose.msra.mxu0 0.0
    %1130 = vmatprep.subr.mxu0 0.0
    %1131 = vmatpush1.xpose.msra.mxu0 0.0
    %1132 = vmatprep.subr.mxu0 0.0
    %1133 = vmatpush1.xpose.msra.mxu0 0.0
    %1134 = vmatprep.subr.mxu0 0.0
    %1135 = vmatpush1.xpose.msra.mxu0 0.0
    %1136 = vmatprep.subr.mxu0 0.0
    %1137 = vmatpush1.xpose.msra.mxu0 0.0
    %1138 = vmatprep.subr.mxu0 0.0
    %1139 = vmatpush1.xpose.msra.mxu0 0.0
    %1140 = vmatprep.mubr.f32.mxu0 0.0
    %1141 = vmatmul.mubr.f32.gmra.mrb[0].mxu0 %v1068
    %v1142 = vpop.f32.mrb[0].mxu0
    %v1143 = vadd.f32 0.0, %v1142
    %v1144 = vpop.f32.mrb[0].mxu0
    %1145 = vmatprep.mubr.f32.mxu0 0.0
    %1146 = vmatmul.mubr.f32.gmra.mrb[0].mxu0 %v1070
    %v1147 = vpop.f32.mrb[0].mxu0
    %v1148 = vadd.f32 0.0, %v1147
    %v1149 = vpop.f32.mrb[0].mxu0
    %1150 = vdwg.mxu0
    %v1151 = vsel %vm186, %v1143, -inf
    %v1152 = vsel %vm187, %v1148, -inf
    %v1153 = vsel %vm648, %v1151, -inf
    %1154 = vmax.xlane.f32.xlu0 %v1153
    %v1155 = vpop.xlane.xlu0 %1154
    %v1156 = vsel %vm648, %v1152, -inf
    %1157 = vmax.xlane.f32.xlu0 %v1156
    %v1158 = vpop.xlane.xlu0 %1157
    %v1159 = vsub.f32 %v1151, %v1155
    %v1160 = vsub.f32 %v1152, %v1158
    %v1161 = vmul.f32 %v1159, 1.442695
    %v1162 = vpow.pop %v1161
    %v1163 = vmul.f32 %v1160, 1.442695
    %v1164 = vpow.pop %v1163
    %v1165 = vsel %vm648, %v1162, 0.0
    %1166 = vadd.xlane.f32.xlu0 %v1165
    %v1167 = vpop.xlane.xlu0 %1166
    %v1168 = vsel %vm648, %v1164, 0.0
    %1169 = vadd.xlane.f32.xlu0 %v1168
    %v1170 = vpop.xlane.xlu0 %1169
    %v1171 = vrcp.pop %v1167
    %v1172 = vrcp.pop %v1170
    %v1173 = vmul.f32 %v1162, %v1171
    %v1174 = vmul.f32 %v1164, %v1172
    %1175 = vrot.lane.b32.xlu0 %v539, 32
    %v1176 = vpop.permute.xlu0 %1175
    %1177 = vrot.lane.b32.xlu0 %v541, 32
    %v1178 = vpop.permute.xlu0 %1177
    %v1182 = vsel %vm648, %v1173, 0
    %v1185 = vsel %vm648, %v1174, 0
    %1187 = vmatprep.subr.mxu0 0.0
    %1188 = vmatpush1.msra.mxu0 %v1176
    %1189 = vmatprep.subr.mxu0 0.0
    %1190 = vmatpush1.msra.mxu0 %v1178
    %1191 = vmatprep.subr.mxu0 0.0
    %1192 = vmatpush1.msra.mxu0 0.0
    %1193 = vmatprep.subr.mxu0 0.0
    %1194 = vmatpush1.msra.mxu0 0.0
    %1195 = vmatprep.subr.mxu0 0.0
    %1196 = vmatpush1.msra.mxu0 0.0
    %1197 = vmatprep.subr.mxu0 0.0
    %1198 = vmatpush1.msra.mxu0 0.0
    %1199 = vmatprep.subr.mxu0 0.0
    %1200 = vmatpush1.msra.mxu0 0.0
    %1201 = vmatprep.subr.mxu0 0.0
    %1202 = vmatpush1.msra.mxu0 0.0
    %1203 = vmatprep.subr.mxu0 0.0
    %1204 = vmatpush1.msra.mxu0 0.0
    %1205 = vmatprep.subr.mxu0 0.0
    %1206 = vmatpush1.msra.mxu0 0.0
    %1207 = vmatprep.subr.mxu0 0.0
    %1208 = vmatpush1.msra.mxu0 0.0
    %1209 = vmatprep.subr.mxu0 0.0
    %1210 = vmatpush1.msra.mxu0 0.0
    %1211 = vmatprep.subr.mxu0 0.0
    %1212 = vmatpush1.msra.mxu0 0.0
    %1213 = vmatprep.subr.mxu0 0.0
    %1214 = vmatpush1.msra.mxu0 0.0
    %1215 = vmatprep.subr.mxu0 0.0
    %1216 = vmatpush1.msra.mxu0 0.0
    %1217 = vmatprep.subr.mxu0 0.0
    %1218 = vmatpush1.msra.mxu0 0.0
    %1219 = vmatprep.subr.mxu0 0.0
    %1220 = vmatpush1.msra.mxu0 0.0
    %1221 = vmatprep.subr.mxu0 0.0
    %1222 = vmatpush1.msra.mxu0 0.0
    %1223 = vmatprep.subr.mxu0 0.0
    %1224 = vmatpush1.msra.mxu0 0.0
    %1225 = vmatprep.subr.mxu0 0.0
    %1226 = vmatpush1.msra.mxu0 0.0
    %1227 = vmatprep.subr.mxu0 0.0
    %1228 = vmatpush1.msra.mxu0 0.0
    %1229 = vmatprep.subr.mxu0 0.0
    %1230 = vmatpush1.msra.mxu0 0.0
    %1231 = vmatprep.subr.mxu0 0.0
    %1232 = vmatpush1.msra.mxu0 0.0
    %1233 = vmatprep.subr.mxu0 0.0
    %1234 = vmatpush1.msra.mxu0 0.0
    %1235 = vmatprep.subr.mxu0 0.0
    %1236 = vmatpush1.msra.mxu0 0.0
    %1237 = vmatprep.subr.mxu0 0.0
    %1238 = vmatpush1.msra.mxu0 0.0
    %1239 = vmatprep.subr.mxu0 0.0
    %1240 = vmatpush1.msra.mxu0 0.0
    %1241 = vmatprep.subr.mxu0 0.0
    %1242 = vmatpush1.msra.mxu0 0.0
    %1243 = vmatprep.subr.mxu0 0.0
    %1244 = vmatpush1.msra.mxu0 0.0
    %1245 = vmatprep.subr.mxu0 0.0
    %1246 = vmatpush1.msra.mxu0 0.0
    %1247 = vmatprep.subr.mxu0 0.0
    %1248 = vmatpush1.msra.mxu0 0.0
    %1249 = vmatprep.subr.mxu0 0.0
    %1250 = vmatpush1.msra.mxu0 0.0
    %1251 = vmatprep.mubr.f32.mxu0 0.0
    %1252 = vmatmul.mubr.f32.gmra.mrb[0].mxu0 %v1182
    %v1253 = vpop.f32.mrb[0].mxu0
    %v1254 = vadd.f32 0.0, %v1253
    %v1255 = vpop.f32.mrb[0].mxu0
    %1256 = vmatprep.mubr.f32.mxu0 0.0
    %1257 = vmatmul.mubr.f32.gmra.mrb[0].mxu0 %v1185
    %v1258 = vpop.f32.mrb[0].mxu0
    %v1259 = vadd.f32 0.0, %v1258
    %v1260 = vpop.f32.mrb[0].mxu0
    %1261 = vdwg.mxu0
    %v1262 = vpack.c.bf16 %v1259, %v1254
    %v1267 = vunpack.c.l.b16 %v550
    %v1268 = vunpack.c.l.b16 %v551
    %v1269 = vunpack.c.l.b16 %v552
    %v1270 = vunpack.c.l.b16 %v553
    %v1271 = vpack.c.b16 %v1268, %v1267
    %v1272 = vpack.c.b16 %v1270, %v1269
    %v1276 = vsel %vm558, %v1262, 0
    %1278 = vmatprep.subr.bf16.mxu0 0
    %1279 = vmatpush1.bf16.msra.mxu0 %v1271
    %1280 = vmatprep.subr.bf16.mxu0 0
    %1281 = vmatpush1.bf16.msra.mxu0 %v1272
    %1282 = vmatprep.subr.bf16.mxu0 0
    %1283 = vmatpush1.bf16.msra.mxu0 0
    %1284 = vmatprep.subr.bf16.mxu0 0
    %1285 = vmatpush1.bf16.msra.mxu0 0
    %1286 = vmatprep.subr.bf16.mxu0 0
    %1287 = vmatpush1.bf16.msra.mxu0 0
    %1288 = vmatprep.subr.bf16.mxu0 0
    %1289 = vmatpush1.bf16.msra.mxu0 0
    %1290 = vmatprep.subr.bf16.mxu0 0
    %1291 = vmatpush1.bf16.msra.mxu0 0
    %1292 = vmatprep.subr.bf16.mxu0 0
    %1293 = vmatpush1.bf16.msra.mxu0 0
    %1294 = vmatprep.subr.bf16.mxu0 0
    %1295 = vmatpush1.bf16.msra.mxu0 0
    %1296 = vmatprep.subr.bf16.mxu0 0
    %1297 = vmatpush1.bf16.msra.mxu0 0
    %1298 = vmatprep.subr.bf16.mxu0 0
    %1299 = vmatpush1.bf16.msra.mxu0 0
    %1300 = vmatprep.subr.bf16.mxu0 0
    %1301 = vmatpush1.bf16.msra.mxu0 0
    %1302 = vmatprep.subr.bf16.mxu0 0
    %1303 = vmatpush1.bf16.msra.mxu0 0
    %1304 = vmatprep.subr.bf16.mxu0 0
    %1305 = vmatpush1.bf16.msra.mxu0 0
    %1306 = vmatprep.subr.bf16.mxu0 0
    %1307 = vmatpush1.bf16.msra.mxu0 0
    %1308 = vmatprep.subr.bf16.mxu0 0
    %1309 = vmatpush1.bf16.msra.mxu0 0
    %1310 = vmatprep.mubr.bf16.mxu0 0
    %1311 = vmatmul.mubr.bf16.gmra.mrb[0].mxu0 %v1276
    %v1312 = vpop.f32.mrb[0].mxu0
    %v1313 = vadd.f32 0.0, %v1312
    %v1314 = vpop.f32.mrb[0].mxu0
    %v1315 = vpop.f32.mrb[0].mxu0
    %v1316 = vadd.f32 0.0, %v1315
    %v1317 = vpop.f32.mrb[0].mxu0
    %1318 = vdwg.mxu0
    %v1319 = vadd.f32 %v1054, %v1313
    %v1320 = vadd.f32 %v1057, %v1316
    %1321 = vrot.lane.b32.xlu0 %v538, 32
    %v1322 = vpop.permute.xlu0 %1321
    %1323 = vrot.lane.b32.xlu0 %v540, 32
    %v1324 = vpop.permute.xlu0 %1323
    %v1325 = vsel %vm558, %v1322, 0
    %v1327 = vsel %vm558, %v1324, 0
    %1329 = vmatprep.subr.mxu0 0.0
    %1330 = vmatpush1.xpose.msra.mxu0 %v1072
    %1331 = vmatprep.subr.mxu0 0.0
    %1332 = vmatpush1.xpose.msra.mxu0 %v1074
    %1333 = vmatprep.subr.mxu0 0.0
    %1334 = vmatpush1.xpose.msra.mxu0 0.0
    %1335 = vmatprep.subr.mxu0 0.0
    %1336 = vmatpush1.xpose.msra.mxu0 0.0
    %1337 = vmatprep.subr.mxu0 0.0
    %1338 = vmatpush1.xpose.msra.mxu0 0.0
    %1339 = vmatprep.subr.mxu0 0.0
    %1340 = vmatpush1.xpose.msra.mxu0 0.0
    %1341 = vmatprep.subr.mxu0 0.0
    %1342 = vmatpush1.xpose.msra.mxu0 0.0
    %1343 = vmatprep.subr.mxu0 0.0
    %1344 = vmatpush1.xpose.msra.mxu0 0.0
    %1345 = vmatprep.subr.mxu0 0.0
    %1346 = vmatpush1.xpose.msra.mxu0 0.0
    %1347 = vmatprep.subr.mxu0 0.0
    %1348 = vmatpush1.xpose.msra.mxu0 0.0
    %1349 = vmatprep.subr.mxu0 0.0
    %1350 = vmatpush1.xpose.msra.mxu0 0.0
    %1351 = vmatprep.subr.mxu0 0.0
    %1352 = vmatpush1.xpose.msra.mxu0 0.0
    %1353 = vmatprep.subr.mxu0 0.0
    %1354 = vmatpush1.xpose.msra.mxu0 0.0
    %1355 = vmatprep.subr.mxu0 0.0
    %1356 = vmatpush1.xpose.msra.mxu0 0.0
    %1357 = vmatprep.subr.mxu0 0.0
    %1358 = vmatpush1.xpose.msra.mxu0 0.0
    %1359 = vmatprep.subr.mxu0 0.0
    %1360 = vmatpush1.xpose.msra.mxu0 0.0
    %1361 = vmatprep.subr.mxu0 0.0
    %1362 = vmatpush1.xpose.msra.mxu0 0.0
    %1363 = vmatprep.subr.mxu0 0.0
    %1364 = vmatpush1.xpose.msra.mxu0 0.0
    %1365 = vmatprep.subr.mxu0 0.0
    %1366 = vmatpush1.xpose.msra.mxu0 0.0
    %1367 = vmatprep.subr.mxu0 0.0
    %1368 = vmatpush1.xpose.msra.mxu0 0.0
    %1369 = vmatprep.subr.mxu0 0.0
    %1370 = vmatpush1.xpose.msra.mxu0 0.0
    %1371 = vmatprep.subr.mxu0 0.0
    %1372 = vmatpush1.xpose.msra.mxu0 0.0
    %1373 = vmatprep.subr.mxu0 0.0
    %1374 = vmatpush1.xpose.msra.mxu0 0.0
    %1375 = vmatprep.subr.mxu0 0.0
    %1376 = vmatpush1.xpose.msra.mxu0 0.0
    %1377 = vmatprep.subr.mxu0 0.0
    %1378 = vmatpush1.xpose.msra.mxu0 0.0
    %1379 = vmatprep.subr.mxu0 0.0
    %1380 = vmatpush1.xpose.msra.mxu0 0.0
    %1381 = vmatprep.subr.mxu0 0.0
    %1382 = vmatpush1.xpose.msra.mxu0 0.0
    %1383 = vmatprep.subr.mxu0 0.0
    %1384 = vmatpush1.xpose.msra.mxu0 0.0
    %1385 = vmatprep.subr.mxu0 0.0
    %1386 = vmatpush1.xpose.msra.mxu0 0.0
    %1387 = vmatprep.subr.mxu0 0.0
    %1388 = vmatpush1.xpose.msra.mxu0 0.0
    %1389 = vmatprep.subr.mxu0 0.0
    %1390 = vmatpush1.xpose.msra.mxu0 0.0
    %1391 = vmatprep.subr.mxu0 0.0
    %1392 = vmatpush1.xpose.msra.mxu0 0.0
    %1393 = vmatprep.mubr.f32.mxu0 0.0
    %1394 = vmatmul.mubr.f32.gmra.mrb[0].mxu0 %v1325
    %v1395 = vpop.f32.mrb[0].mxu0
    %v1396 = vadd.f32 0.0, %v1395
    %v1397 = vpop.f32.mrb[0].mxu0
    %1398 = vmatprep.mubr.f32.mxu0 0.0
    %1399 = vmatmul.mubr.f32.gmra.mrb[0].mxu0 %v1327
    %v1400 = vpop.f32.mrb[0].mxu0
    %v1401 = vadd.f32 0.0, %v1400
    %v1402 = vpop.f32.mrb[0].mxu0
    %1403 = vdwg.mxu0
    %v1404 = vsel %vm186, %v1396, -inf
    %v1405 = vsel %vm187, %v1401, -inf
    %v1406 = vsel %vm648, %v1404, -inf
    %1407 = vmax.xlane.f32.xlu0 %v1406
    %v1408 = vpop.xlane.xlu0 %1407
    %v1409 = vsel %vm648, %v1405, -inf
    %1410 = vmax.xlane.f32.xlu0 %v1409
    %v1411 = vpop.xlane.xlu0 %1410
    %v1412 = vsub.f32 %v1404, %v1408
    %v1413 = vsub.f32 %v1405, %v1411
    %v1414 = vmul.f32 %v1412, 1.442695
    %v1415 = vpow.pop %v1414
    %v1416 = vmul.f32 %v1413, 1.442695
    %v1417 = vpow.pop %v1416
    %v1418 = vsel %vm648, %v1415, 0.0
    %1419 = vadd.xlane.f32.xlu0 %v1418
    %v1420 = vpop.xlane.xlu0 %1419
    %v1421 = vsel %vm648, %v1417, 0.0
    %1422 = vadd.xlane.f32.xlu0 %v1421
    %v1423 = vpop.xlane.xlu0 %1422
    %v1424 = vrcp.pop %v1420
    %v1425 = vrcp.pop %v1423
    %v1426 = vmul.f32 %v1415, %v1424
    %v1427 = vmul.f32 %v1417, %v1425
    %v1429 = vsel %vm648, %v1426, 0
    %v1432 = vsel %vm648, %v1427, 0
    %1434 = vmatprep.subr.mxu0 0.0
    %1435 = vmatpush1.msra.mxu0 %v1176
    %1436 = vmatprep.subr.mxu0 0.0
    %1437 = vmatpush1.msra.mxu0 %v1178
    %1438 = vmatprep.subr.mxu0 0.0
    %1439 = vmatpush1.msra.mxu0 0.0
    %1440 = vmatprep.subr.mxu0 0.0
    %1441 = vmatpush1.msra.mxu0 0.0
    %1442 = vmatprep.subr.mxu0 0.0
    %1443 = vmatpush1.msra.mxu0 0.0
    %1444 = vmatprep.subr.mxu0 0.0
    %1445 = vmatpush1.msra.mxu0 0.0
    %1446 = vmatprep.subr.mxu0 0.0
    %1447 = vmatpush1.msra.mxu0 0.0
    %1448 = vmatprep.subr.mxu0 0.0
    %1449 = vmatpush1.msra.mxu0 0.0
    %1450 = vmatprep.subr.mxu0 0.0
    %1451 = vmatpush1.msra.mxu0 0.0
    %1452 = vmatprep.subr.mxu0 0.0
    %1453 = vmatpush1.msra.mxu0 0.0
    %1454 = vmatprep.subr.mxu0 0.0
    %1455 = vmatpush1.msra.mxu0 0.0
    %1456 = vmatprep.subr.mxu0 0.0
    %1457 = vmatpush1.msra.mxu0 0.0
    %1458 = vmatprep.subr.mxu0 0.0
    %1459 = vmatpush1.msra.mxu0 0.0
    %1460 = vmatprep.subr.mxu0 0.0
    %1461 = vmatpush1.msra.mxu0 0.0
    %1462 = vmatprep.subr.mxu0 0.0
    %1463 = vmatpush1.msra.mxu0 0.0
    %1464 = vmatprep.subr.mxu0 0.0
    %1465 = vmatpush1.msra.mxu0 0.0
    %1466 = vmatprep.subr.mxu0 0.0
    %1467 = vmatpush1.msra.mxu0 0.0
    %1468 = vmatprep.subr.mxu0 0.0
    %1469 = vmatpush1.msra.mxu0 0.0
    %1470 = vmatprep.subr.mxu0 0.0
    %1471 = vmatpush1.msra.mxu0 0.0
    %1472 = vmatprep.subr.mxu0 0.0
    %1473 = vmatpush1.msra.mxu0 0.0
    %1474 = vmatprep.subr.mxu0 0.0
    %1475 = vmatpush1.msra.mxu0 0.0
    %1476 = vmatprep.subr.mxu0 0.0
    %1477 = vmatpush1.msra.mxu0 0.0
    %1478 = vmatprep.subr.mxu0 0.0
    %1479 = vmatpush1.msra.mxu0 0.0
    %1480 = vmatprep.subr.mxu0 0.0
    %1481 = vmatpush1.msra.mxu0 0.0
    %1482 = vmatprep.subr.mxu0 0.0
    %1483 = vmatpush1.msra.mxu0 0.0
    %1484 = vmatprep.subr.mxu0 0.0
    %1485 = vmatpush1.msra.mxu0 0.0
    %1486 = vmatprep.subr.mxu0 0.0
    %1487 = vmatpush1.msra.mxu0 0.0
    %1488 = vmatprep.subr.mxu0 0.0
    %1489 = vmatpush1.msra.mxu0 0.0
    %1490 = vmatprep.subr.mxu0 0.0
    %1491 = vmatpush1.msra.mxu0 0.0
    %1492 = vmatprep.subr.mxu0 0.0
    %1493 = vmatpush1.msra.mxu0 0.0
    %1494 = vmatprep.subr.mxu0 0.0
    %1495 = vmatpush1.msra.mxu0 0.0
    %1496 = vmatprep.subr.mxu0 0.0
    %1497 = vmatpush1.msra.mxu0 0.0
    %1498 = vmatprep.mubr.f32.mxu0 0.0
    %1499 = vmatmul.mubr.f32.gmra.mrb[0].mxu0 %v1429
    %v1500 = vpop.f32.mrb[0].mxu0
    %v1501 = vadd.f32 0.0, %v1500
    %v1502 = vpop.f32.mrb[0].mxu0
    %1503 = vmatprep.mubr.f32.mxu0 0.0
    %1504 = vmatmul.mubr.f32.gmra.mrb[0].mxu0 %v1432
    %v1505 = vpop.f32.mrb[0].mxu0
    %v1506 = vadd.f32 0.0, %v1505
    %v1507 = vpop.f32.mrb[0].mxu0
    %1508 = vdwg.mxu0
    %v1509 = vpack.c.bf16 %v1506, %v1501
    %v1514 = vunpack.c.l.b16 %v554
    %v1515 = vunpack.c.l.b16 %v555
    %v1516 = vunpack.c.l.b16 %v556
    %v1517 = vunpack.c.l.b16 %v557
    %v1518 = vpack.c.b16 %v1515, %v1514
    %v1519 = vpack.c.b16 %v1517, %v1516
    %v1523 = vsel %vm558, %v1509, 0
    %1525 = vmatprep.subr.bf16.mxu0 0
    %1526 = vmatpush1.bf16.msra.mxu0 %v1518
    %1527 = vmatprep.subr.bf16.mxu0 0
    %1528 = vmatpush1.bf16.msra.mxu0 %v1519
    %1529 = vmatprep.subr.bf16.mxu0 0
    %1530 = vmatpush1.bf16.msra.mxu0 0
    %1531 = vmatprep.subr.bf16.mxu0 0
    %1532 = vmatpush1.bf16.msra.mxu0 0
    %1533 = vmatprep.subr.bf16.mxu0 0
    %1534 = vmatpush1.bf16.msra.mxu0 0
    %1535 = vmatprep.subr.bf16.mxu0 0
    %1536 = vmatpush1.bf16.msra.mxu0 0
    %1537 = vmatprep.subr.bf16.mxu0 0
    %1538 = vmatpush1.bf16.msra.mxu0 0
    %1539 = vmatprep.subr.bf16.mxu0 0
    %1540 = vmatpush1.bf16.msra.mxu0 0
    %1541 = vmatprep.subr.bf16.mxu0 0
    %1542 = vmatpush1.bf16.msra.mxu0 0
    %1543 = vmatprep.subr.bf16.mxu0 0
    %1544 = vmatpush1.bf16.msra.mxu0 0
    %1545 = vmatprep.subr.bf16.mxu0 0
    %1546 = vmatpush1.bf16.msra.mxu0 0
    %1547 = vmatprep.subr.bf16.mxu0 0
    %1548 = vmatpush1.bf16.msra.mxu0 0
    %1549 = vmatprep.subr.bf16.mxu0 0
    %1550 = vmatpush1.bf16.msra.mxu0 0
    %1551 = vmatprep.subr.bf16.mxu0 0
    %1552 = vmatpush1.bf16.msra.mxu0 0
    %1553 = vmatprep.subr.bf16.mxu0 0
    %1554 = vmatpush1.bf16.msra.mxu0 0
    %1555 = vmatprep.subr.bf16.mxu0 0
    %1556 = vmatpush1.bf16.msra.mxu0 0
    %1557 = vmatprep.mubr.bf16.mxu0 0
    %1558 = vmatmul.mubr.bf16.gmra.mrb[0].mxu0 %v1523
    %v1559 = vpop.f32.mrb[0].mxu0
    %v1560 = vadd.f32 0.0, %v1559
    %v1561 = vpop.f32.mrb[0].mxu0
    %v1562 = vpop.f32.mrb[0].mxu0
    %v1563 = vadd.f32 0.0, %v1562
    %v1564 = vpop.f32.mrb[0].mxu0
    %1565 = vdwg.mxu0
    %v1566 = vadd.f32 %v1319, %v1560
    %v1567 = vadd.f32 %v1320, %v1563
    %v1568 = vadd.f32 %v271, %v1566
    %v1569 = vadd.f32 %v274, %v1567
    %v1570 = vld [vmem:[%s9] sm:$0x1]
    %v1571 = vmul.f32 %v1568, %v1568
    %v1572 = vmul.f32 %v1569, %v1569
    %1573 = vadd.xlane.f32.xlu0 %v1571
    %v1574 = vpop.xlane.xlu0 %1573
    %1575 = vadd.xlane.f32.xlu0 %v1572
    %v1576 = vpop.xlane.xlu0 %1575
    %v1577 = vmul.f32 %v1574, %v284
    %v1578 = vmul.f32 %v1576, %v284
    %v1579 = vadd.f32 %v1577, 1e-06
    %v1580 = vadd.f32 %v1578, 1e-06
    %v1581 = vrsqrt.pop %v1579
    %v1582 = vrsqrt.pop %v1580
    %v1583 = vmul.f32 %v1568, %v1581
    %v1584 = vmul.f32 %v1569, %v1582
    %v1586 = vlaneseq
    %v1587 = vshrl.u32 %v1586, 7
    %v1588 = vsub.s32 0, %v1587
    %v1589 = vrot.slane %v1570, %v1588
    %v1591 = vmul.f32 %v1583, %v1589
    %v1592 = vmul.f32 %v1584, %v1589
    %v1593 = vpack.c.bf16 %v1592, %v1591
    %v1594 = vld [vmem:[%s10] sm:$0xff]
    %v1595 = vld [vmem:[%s10 + $0x8] sm:$0xff]
    %v1596 = vld [vmem:[%s10 + $0x10] sm:$0xff]
    %v1597 = vld [vmem:[%s10 + $0x18] sm:$0xff]
    %v1598 = vld [vmem:[%s10 + $0x20] sm:$0xff]
    %v1599 = vld [vmem:[%s10 + $0x28] sm:$0xff]
    %v1600 = vld [vmem:[%s10 + $0x30] sm:$0xff]
    %v1601 = vld [vmem:[%s10 + $0x38] sm:$0xff]
    %v1602 = vld [vmem:[%s10 + $0x40] sm:$0xff]
    %v1603 = vld [vmem:[%s10 + $0x48] sm:$0xff]
    %v1604 = vld [vmem:[%s10 + $0x50] sm:$0xff]
    %v1605 = vld [vmem:[%s10 + $0x58] sm:$0xff]
    %v1606 = vld [vmem:[%s10 + $0x60] sm:$0xff]
    %v1607 = vld [vmem:[%s10 + $0x68] sm:$0xff]
    %v1608 = vld [vmem:[%s10 + $0x70] sm:$0xff]
    %v1609 = vld [vmem:[%s10 + $0x78] sm:$0xff]
    %v1610 = vld [vmem:[%s10 + $0x80] sm:$0xff]
    %v1611 = vld [vmem:[%s10 + $0x88] sm:$0xff]
    %v1612 = vld [vmem:[%s10 + $0x90] sm:$0xff]
    %v1613 = vld [vmem:[%s10 + $0x98] sm:$0xff]
    %v1614 = vld [vmem:[%s10 + $0xa0] sm:$0xff]
    %v1615 = vld [vmem:[%s10 + $0xa8] sm:$0xff]
    %v1616 = vld [vmem:[%s10 + $0xb0] sm:$0xff]
    %v1617 = vld [vmem:[%s10 + $0xb8] sm:$0xff]
    %v1618 = vld [vmem:[%s10 + $0xc0] sm:$0xff]
    %v1619 = vld [vmem:[%s10 + $0xc8] sm:$0xff]
    %v1620 = vld [vmem:[%s10 + $0xd0] sm:$0xff]
    %v1621 = vld [vmem:[%s10 + $0xd8] sm:$0xff]
    %v1622 = vld [vmem:[%s10 + $0xe0] sm:$0xff]
    %v1623 = vld [vmem:[%s10 + $0xe8] sm:$0xff]
    %v1624 = vld [vmem:[%s10 + $0xf0] sm:$0xff]
    %v1625 = vld [vmem:[%s10 + $0xf8] sm:$0xff]
    %v1658 = vunpack.c.l.b16 %v1594
    %v1659 = vunpack.c.h.b16 %v1594
    %v1660 = vunpack.c.l.b16 %v1595
    %v1661 = vunpack.c.h.b16 %v1595
    %v1662 = vunpack.c.l.b16 %v1596
    %v1663 = vunpack.c.h.b16 %v1596
    %v1664 = vunpack.c.l.b16 %v1597
    %v1665 = vunpack.c.h.b16 %v1597
    %v1666 = vunpack.c.l.b16 %v1598
    %v1667 = vunpack.c.h.b16 %v1598
    %v1668 = vunpack.c.l.b16 %v1599
    %v1669 = vunpack.c.h.b16 %v1599
    %v1670 = vunpack.c.l.b16 %v1600
    %v1671 = vunpack.c.h.b16 %v1600
    %v1672 = vunpack.c.l.b16 %v1601
    %v1673 = vunpack.c.h.b16 %v1601
    %v1674 = vunpack.c.l.b16 %v1602
    %v1675 = vunpack.c.h.b16 %v1602
    %v1676 = vunpack.c.l.b16 %v1603
    %v1677 = vunpack.c.h.b16 %v1603
    %v1678 = vunpack.c.l.b16 %v1604
    %v1679 = vunpack.c.h.b16 %v1604
    %v1680 = vunpack.c.l.b16 %v1605
    %v1681 = vunpack.c.h.b16 %v1605
    %v1682 = vunpack.c.l.b16 %v1606
    %v1683 = vunpack.c.h.b16 %v1606
    %v1684 = vunpack.c.l.b16 %v1607
    %v1685 = vunpack.c.h.b16 %v1607
    %v1686 = vunpack.c.l.b16 %v1608
    %v1687 = vunpack.c.h.b16 %v1608
    %v1688 = vunpack.c.l.b16 %v1609
    %v1689 = vunpack.c.h.b16 %v1609
    %v1690 = vunpack.c.l.b16 %v1610
    %v1691 = vunpack.c.h.b16 %v1610
    %v1692 = vunpack.c.l.b16 %v1611
    %v1693 = vunpack.c.h.b16 %v1611
    %v1694 = vunpack.c.l.b16 %v1612
    %v1695 = vunpack.c.h.b16 %v1612
    %v1696 = vunpack.c.l.b16 %v1613
    %v1697 = vunpack.c.h.b16 %v1613
    %v1698 = vunpack.c.l.b16 %v1614
    %v1699 = vunpack.c.h.b16 %v1614
    %v1700 = vunpack.c.l.b16 %v1615
    %v1701 = vunpack.c.h.b16 %v1615
    %v1702 = vunpack.c.l.b16 %v1616
    %v1703 = vunpack.c.h.b16 %v1616
    %v1704 = vunpack.c.l.b16 %v1617
    %v1705 = vunpack.c.h.b16 %v1617
    %v1706 = vunpack.c.l.b16 %v1618
    %v1707 = vunpack.c.h.b16 %v1618
    %v1708 = vunpack.c.l.b16 %v1619
    %v1709 = vunpack.c.h.b16 %v1619
    %v1710 = vunpack.c.l.b16 %v1620
    %v1711 = vunpack.c.h.b16 %v1620
    %v1712 = vunpack.c.l.b16 %v1621
    %v1713 = vunpack.c.h.b16 %v1621
    %v1714 = vunpack.c.l.b16 %v1622
    %v1715 = vunpack.c.h.b16 %v1622
    %v1716 = vunpack.c.l.b16 %v1623
    %v1717 = vunpack.c.h.b16 %v1623
    %v1718 = vunpack.c.l.b16 %v1624
    %v1719 = vunpack.c.h.b16 %v1624
    %v1720 = vunpack.c.l.b16 %v1625
    %v1721 = vunpack.c.h.b16 %v1625
    %v1722 = vpack.c.b16 %v1662, %v1658
    %v1723 = vpack.c.b16 %v1663, %v1659
    %v1724 = vpack.c.b16 %v1664, %v1660
    %v1725 = vpack.c.b16 %v1665, %v1661
    %v1726 = vpack.c.b16 %v1670, %v1666
    %v1727 = vpack.c.b16 %v1671, %v1667
    %v1728 = vpack.c.b16 %v1672, %v1668
    %v1729 = vpack.c.b16 %v1673, %v1669
    %v1730 = vpack.c.b16 %v1678, %v1674
    %v1731 = vpack.c.b16 %v1679, %v1675
    %v1732 = vpack.c.b16 %v1680, %v1676
    %v1733 = vpack.c.b16 %v1681, %v1677
    %v1734 = vpack.c.b16 %v1686, %v1682
    %v1735 = vpack.c.b16 %v1687, %v1683
    %v1736 = vpack.c.b16 %v1688, %v1684
    %v1737 = vpack.c.b16 %v1689, %v1685
    %v1738 = vpack.c.b16 %v1694, %v1690
    %v1739 = vpack.c.b16 %v1695, %v1691
    %v1740 = vpack.c.b16 %v1696, %v1692
    %v1741 = vpack.c.b16 %v1697, %v1693
    %v1742 = vpack.c.b16 %v1702, %v1698
    %v1743 = vpack.c.b16 %v1703, %v1699
    %v1744 = vpack.c.b16 %v1704, %v1700
    %v1745 = vpack.c.b16 %v1705, %v1701
    %v1746 = vpack.c.b16 %v1710, %v1706
    %v1747 = vpack.c.b16 %v1711, %v1707
    %v1748 = vpack.c.b16 %v1712, %v1708
    %v1749 = vpack.c.b16 %v1713, %v1709
    %v1750 = vpack.c.b16 %v1718, %v1714
    %v1751 = vpack.c.b16 %v1719, %v1715
    %v1752 = vpack.c.b16 %v1720, %v1716
    %v1753 = vpack.c.b16 %v1721, %v1717
    %1786 = vmatprep.subr.bf16.mxu0 %v1723
    %1787 = vmatpush1.bf16.msra.mxu0 %v1722
    %1788 = vmatprep.subr.bf16.mxu0 %v1727
    %1789 = vmatpush1.bf16.msra.mxu0 %v1726
    %1790 = vmatprep.subr.bf16.mxu0 %v1731
    %1791 = vmatpush1.bf16.msra.mxu0 %v1730
    %1792 = vmatprep.subr.bf16.mxu0 %v1735
    %1793 = vmatpush1.bf16.msra.mxu0 %v1734
    %1794 = vmatprep.subr.bf16.mxu0 %v1739
    %1795 = vmatpush1.bf16.msra.mxu0 %v1738
    %1796 = vmatprep.subr.bf16.mxu0 %v1743
    %1797 = vmatpush1.bf16.msra.mxu0 %v1742
    %1798 = vmatprep.subr.bf16.mxu0 %v1747
    %1799 = vmatpush1.bf16.msra.mxu0 %v1746
    %1800 = vmatprep.subr.bf16.mxu0 %v1751
    %1801 = vmatpush1.bf16.msra.mxu0 %v1750
    %1802 = vmatprep.subr.bf16.mxu0 0
    %1803 = vmatpush1.bf16.msra.mxu0 0
    %1804 = vmatprep.subr.bf16.mxu0 0
    %1805 = vmatpush1.bf16.msra.mxu0 0
    %1806 = vmatprep.subr.bf16.mxu0 0
    %1807 = vmatpush1.bf16.msra.mxu0 0
    %1808 = vmatprep.subr.bf16.mxu0 0
    %1809 = vmatpush1.bf16.msra.mxu0 0
    %1810 = vmatprep.subr.bf16.mxu0 0
    %1811 = vmatpush1.bf16.msra.mxu0 0
    %1812 = vmatprep.subr.bf16.mxu0 0
    %1813 = vmatpush1.bf16.msra.mxu0 0
    %1814 = vmatprep.subr.bf16.mxu0 0
    %1815 = vmatpush1.bf16.msra.mxu0 0
    %1816 = vmatprep.subr.bf16.mxu0 0
    %1817 = vmatpush1.bf16.msra.mxu0 0
    %1818 = vmatprep.mubr.bf16.mxu0 0
    %1819 = vmatmul.mubr.bf16.gmra.mrb[0].mxu0 %v1593
    %v1820 = vpop.f32.mrb[0].mxu0
    %v1821 = vadd.f32 0.0, %v1820
    %v1822 = vpop.f32.mrb[0].mxu0
    %v1823 = vadd.f32 0.0, %v1822
    %v1824 = vpop.f32.mrb[0].mxu0
    %v1825 = vadd.f32 0.0, %v1824
    %v1826 = vpop.f32.mrb[0].mxu0
    %v1827 = vadd.f32 0.0, %v1826
    %1828 = vdwg.mxu0
    %1829 = vmatprep.subr.bf16.mxu0 %v1725
    %1830 = vmatpush1.bf16.msra.mxu0 %v1724
    %1831 = vmatprep.subr.bf16.mxu0 %v1729
    %1832 = vmatpush1.bf16.msra.mxu0 %v1728
    %1833 = vmatprep.subr.bf16.mxu0 %v1733
    %1834 = vmatpush1.bf16.msra.mxu0 %v1732
    %1835 = vmatprep.subr.bf16.mxu0 %v1737
    %1836 = vmatpush1.bf16.msra.mxu0 %v1736
    %1837 = vmatprep.subr.bf16.mxu0 %v1741
    %1838 = vmatpush1.bf16.msra.mxu0 %v1740
    %1839 = vmatprep.subr.bf16.mxu0 %v1745
    %1840 = vmatpush1.bf16.msra.mxu0 %v1744
    %1841 = vmatprep.subr.bf16.mxu0 %v1749
    %1842 = vmatpush1.bf16.msra.mxu0 %v1748
    %1843 = vmatprep.subr.bf16.mxu0 %v1753
    %1844 = vmatpush1.bf16.msra.mxu0 %v1752
    %1845 = vmatprep.subr.bf16.mxu0 0
    %1846 = vmatpush1.bf16.msra.mxu0 0
    %1847 = vmatprep.subr.bf16.mxu0 0
    %1848 = vmatpush1.bf16.msra.mxu0 0
    %1849 = vmatprep.subr.bf16.mxu0 0
    %1850 = vmatpush1.bf16.msra.mxu0 0
    %1851 = vmatprep.subr.bf16.mxu0 0
    %1852 = vmatpush1.bf16.msra.mxu0 0
    %1853 = vmatprep.subr.bf16.mxu0 0
    %1854 = vmatpush1.bf16.msra.mxu0 0
    %1855 = vmatprep.subr.bf16.mxu0 0
    %1856 = vmatpush1.bf16.msra.mxu0 0
    %1857 = vmatprep.subr.bf16.mxu0 0
    %1858 = vmatpush1.bf16.msra.mxu0 0
    %1859 = vmatprep.subr.bf16.mxu0 0
    %1860 = vmatpush1.bf16.msra.mxu0 0
    %1861 = vmatprep.mubr.bf16.mxu0 0
    %1862 = vmatmul.mubr.bf16.gmra.mrb[0].mxu0 %v1593
    %v1863 = vpop.f32.mrb[0].mxu0
    %v1864 = vadd.f32 0.0, %v1863
    %v1865 = vpop.f32.mrb[0].mxu0
    %v1866 = vadd.f32 0.0, %v1865
    %v1867 = vpop.f32.mrb[0].mxu0
    %v1868 = vadd.f32 0.0, %v1867
    %v1869 = vpop.f32.mrb[0].mxu0
    %v1870 = vadd.f32 0.0, %v1869
    %1871 = vdwg.mxu0
    %v1872 = vxor.u32 %v1821, 2147483648
    %v1873 = vxor.u32 %v1823, 2147483648
    %v1874 = vxor.u32 %v1825, 2147483648
    %v1875 = vxor.u32 %v1827, 2147483648
    %v1876 = vmul.f32 %v1872, 1.442695
    %v1877 = vpow.pop %v1876
    %v1878 = vmul.f32 %v1873, 1.442695
    %v1879 = vpow.pop %v1878
    %v1880 = vmul.f32 %v1874, 1.442695
    %v1881 = vpow.pop %v1880
    %v1882 = vmul.f32 %v1875, 1.442695
    %v1883 = vpow.pop %v1882
    %v1884 = vadd.f32 %v1877, 1.0
    %v1885 = vadd.f32 %v1879, 1.0
    %v1886 = vadd.f32 %v1881, 1.0
    %v1887 = vadd.f32 %v1883, 1.0
    %v1888 = vrcp.pop %v1884
    %v1889 = vmul.f32 1.0, %v1888
    %v1890 = vrcp.pop %v1885
    %v1891 = vmul.f32 1.0, %v1890
    %v1892 = vrcp.pop %v1886
    %v1893 = vmul.f32 1.0, %v1892
    %v1894 = vrcp.pop %v1887
    %v1895 = vmul.f32 1.0, %v1894
    %v1896 = vmul.f32 %v1821, %v1889
    %v1897 = vmul.f32 %v1823, %v1891
    %v1898 = vmul.f32 %v1825, %v1893
    %v1899 = vmul.f32 %v1827, %v1895
    %v1900 = vmul.f32 %v1896, %v1864
    %v1901 = vmul.f32 %v1897, %v1866
    %v1902 = vmul.f32 %v1898, %v1868
    %v1903 = vmul.f32 %v1899, %v1870
    %v1904 = vpack.c.bf16 %v1902, %v1900
    %v1905 = vpack.c.bf16 %v1903, %v1901
    %v1906 = vld [vmem:[%s11] sm:$0xf]
    %v1907 = vld [vmem:[%s11 + $0x4] sm:$0xf]
    %v1908 = vld [vmem:[%s11 + $0x8] sm:$0xf]
    %v1909 = vld [vmem:[%s11 + $0xc] sm:$0xf]
    %v1910 = vld [vmem:[%s11 + $0x10] sm:$0xf]
    %v1911 = vld [vmem:[%s11 + $0x14] sm:$0xf]
    %v1912 = vld [vmem:[%s11 + $0x18] sm:$0xf]
    %v1913 = vld [vmem:[%s11 + $0x1c] sm:$0xf]
    %v1914 = vld [vmem:[%s11 + $0x20] sm:$0xf]
    %v1915 = vld [vmem:[%s11 + $0x24] sm:$0xf]
    %v1916 = vld [vmem:[%s11 + $0x28] sm:$0xf]
    %v1917 = vld [vmem:[%s11 + $0x2c] sm:$0xf]
    %v1918 = vld [vmem:[%s11 + $0x30] sm:$0xf]
    %v1919 = vld [vmem:[%s11 + $0x34] sm:$0xf]
    %v1920 = vld [vmem:[%s11 + $0x38] sm:$0xf]
    %v1921 = vld [vmem:[%s11 + $0x3c] sm:$0xf]
    %v1922 = vld [vmem:[%s11 + $0x40] sm:$0xf]
    %v1923 = vld [vmem:[%s11 + $0x44] sm:$0xf]
    %v1924 = vld [vmem:[%s11 + $0x48] sm:$0xf]
    %v1925 = vld [vmem:[%s11 + $0x4c] sm:$0xf]
    %v1926 = vld [vmem:[%s11 + $0x50] sm:$0xf]
    %v1927 = vld [vmem:[%s11 + $0x54] sm:$0xf]
    %v1928 = vld [vmem:[%s11 + $0x58] sm:$0xf]
    %v1929 = vld [vmem:[%s11 + $0x5c] sm:$0xf]
    %v1930 = vld [vmem:[%s11 + $0x60] sm:$0xf]
    %v1931 = vld [vmem:[%s11 + $0x64] sm:$0xf]
    %v1932 = vld [vmem:[%s11 + $0x68] sm:$0xf]
    %v1933 = vld [vmem:[%s11 + $0x6c] sm:$0xf]
    %v1934 = vld [vmem:[%s11 + $0x70] sm:$0xf]
    %v1935 = vld [vmem:[%s11 + $0x74] sm:$0xf]
    %v1936 = vld [vmem:[%s11 + $0x78] sm:$0xf]
    %v1937 = vld [vmem:[%s11 + $0x7c] sm:$0xf]
    %v1970 = vunpack.c.l.b16 %v1906
    %v1971 = vunpack.c.l.b16 %v1907
    %v1972 = vunpack.c.l.b16 %v1908
    %v1973 = vunpack.c.l.b16 %v1909
    %v1974 = vunpack.c.l.b16 %v1910
    %v1975 = vunpack.c.l.b16 %v1911
    %v1976 = vunpack.c.l.b16 %v1912
    %v1977 = vunpack.c.l.b16 %v1913
    %v1978 = vunpack.c.l.b16 %v1914
    %v1979 = vunpack.c.l.b16 %v1915
    %v1980 = vunpack.c.l.b16 %v1916
    %v1981 = vunpack.c.l.b16 %v1917
    %v1982 = vunpack.c.l.b16 %v1918
    %v1983 = vunpack.c.l.b16 %v1919
    %v1984 = vunpack.c.l.b16 %v1920
    %v1985 = vunpack.c.l.b16 %v1921
    %v1986 = vunpack.c.l.b16 %v1922
    %v1987 = vunpack.c.l.b16 %v1923
    %v1988 = vunpack.c.l.b16 %v1924
    %v1989 = vunpack.c.l.b16 %v1925
    %v1990 = vunpack.c.l.b16 %v1926
    %v1991 = vunpack.c.l.b16 %v1927
    %v1992 = vunpack.c.l.b16 %v1928
    %v1993 = vunpack.c.l.b16 %v1929
    %v1994 = vunpack.c.l.b16 %v1930
    %v1995 = vunpack.c.l.b16 %v1931
    %v1996 = vunpack.c.l.b16 %v1932
    %v1997 = vunpack.c.l.b16 %v1933
    %v1998 = vunpack.c.l.b16 %v1934
    %v1999 = vunpack.c.l.b16 %v1935
    %v2000 = vunpack.c.l.b16 %v1936
    %v2001 = vunpack.c.l.b16 %v1937
    %v2002 = vpack.c.b16 %v1971, %v1970
    %v2003 = vpack.c.b16 %v1973, %v1972
    %v2004 = vpack.c.b16 %v1975, %v1974
    %v2005 = vpack.c.b16 %v1977, %v1976
    %v2006 = vpack.c.b16 %v1979, %v1978
    %v2007 = vpack.c.b16 %v1981, %v1980
    %v2008 = vpack.c.b16 %v1983, %v1982
    %v2009 = vpack.c.b16 %v1985, %v1984
    %v2010 = vpack.c.b16 %v1987, %v1986
    %v2011 = vpack.c.b16 %v1989, %v1988
    %v2012 = vpack.c.b16 %v1991, %v1990
    %v2013 = vpack.c.b16 %v1993, %v1992
    %v2014 = vpack.c.b16 %v1995, %v1994
    %v2015 = vpack.c.b16 %v1997, %v1996
    %v2016 = vpack.c.b16 %v1999, %v1998
    %v2017 = vpack.c.b16 %v2001, %v2000
    %2034 = vmatprep.subr.bf16.mxu0 0
    %2035 = vmatpush1.bf16.msra.mxu0 %v2002
    %2036 = vmatprep.subr.bf16.mxu0 0
    %2037 = vmatpush1.bf16.msra.mxu0 %v2003
    %2038 = vmatprep.subr.bf16.mxu0 0
    %2039 = vmatpush1.bf16.msra.mxu0 %v2004
    %2040 = vmatprep.subr.bf16.mxu0 0
    %2041 = vmatpush1.bf16.msra.mxu0 %v2005
    %2042 = vmatprep.subr.bf16.mxu0 0
    %2043 = vmatpush1.bf16.msra.mxu0 %v2006
    %2044 = vmatprep.subr.bf16.mxu0 0
    %2045 = vmatpush1.bf16.msra.mxu0 %v2007
    %2046 = vmatprep.subr.bf16.mxu0 0
    %2047 = vmatpush1.bf16.msra.mxu0 %v2008
    %2048 = vmatprep.subr.bf16.mxu0 0
    %2049 = vmatpush1.bf16.msra.mxu0 %v2009
    %2050 = vmatprep.subr.bf16.mxu0 0
    %2051 = vmatpush1.bf16.msra.mxu0 %v2010
    %2052 = vmatprep.subr.bf16.mxu0 0
    %2053 = vmatpush1.bf16.msra.mxu0 %v2011
    %2054 = vmatprep.subr.bf16.mxu0 0
    %2055 = vmatpush1.bf16.msra.mxu0 %v2012
    %2056 = vmatprep.subr.bf16.mxu0 0
    %2057 = vmatpush1.bf16.msra.mxu0 %v2013
    %2058 = vmatprep.subr.bf16.mxu0 0
    %2059 = vmatpush1.bf16.msra.mxu0 %v2014
    %2060 = vmatprep.subr.bf16.mxu0 0
    %2061 = vmatpush1.bf16.msra.mxu0 %v2015
    %2062 = vmatprep.subr.bf16.mxu0 0
    %2063 = vmatpush1.bf16.msra.mxu0 %v2016
    %2064 = vmatprep.subr.bf16.mxu0 0
    %2065 = vmatpush1.bf16.msra.mxu0 %v2017
    %2066 = vmatprep.mubr.bf16.mxu0 %v1905
    %2067 = vmatmul.mubr.bf16.gmra.mrb[0].mxu0 %v1904
    %v2068 = vpop.f32.mrb[0].mxu0
    %v2069 = vadd.f32 0.0, %v2068
    %v2070 = vpop.f32.mrb[0].mxu0
    %v2071 = vpop.f32.mrb[0].mxu0
    %v2072 = vadd.f32 0.0, %v2071
    %v2073 = vpop.f32.mrb[0].mxu0
    %2074 = vdwg.mxu0
    %v2075 = vadd.f32 %v1568, %v2069
    %v2076 = vadd.f32 %v1569, %v2072
    %s2077 = scalar_lea.vmem %s5, 1
    %v2078 = vld [vmem:[%s2077] sm:$0x1]
    %v2079 = vmul.f32 %v2075, %v2075
    %v2080 = vmul.f32 %v2076, %v2076
    %2081 = vadd.xlane.f32.xlu0 %v2079
    %v2082 = vpop.xlane.xlu0 %2081
    %2083 = vadd.xlane.f32.xlu0 %v2080
    %v2084 = vpop.xlane.xlu0 %2083
    %v2085 = vmul.f32 %v2082, %v284
    %v2086 = vmul.f32 %v2084, %v284
    %v2087 = vadd.f32 %v2085, 1e-06
    %v2088 = vadd.f32 %v2086, 1e-06
    %v2089 = vrsqrt.pop %v2087
    %v2090 = vrsqrt.pop %v2088
    %v2091 = vmul.f32 %v2075, %v2089
    %v2092 = vmul.f32 %v2076, %v2090
    %v2094 = vlaneseq
    %v2095 = vshrl.u32 %v2094, 7
    %v2096 = vsub.s32 0, %v2095
    %v2097 = vrot.slane %v2078, %v2096
    %v2099 = vmul.f32 %v2091, %v2097
    %v2100 = vmul.f32 %v2092, %v2097
    %v2101 = vpack.c.bf16 %v2100, %v2099
    %s2102 = scalar_lea.vmem %s6, 128
    %v2103 = vld [vmem:[%s2102] sm:$0xff]
    %v2104 = vld [vmem:[%s2102 + $0x8] sm:$0xff]
    %v2105 = vld [vmem:[%s2102 + $0x10] sm:$0xff]
    %v2106 = vld [vmem:[%s2102 + $0x18] sm:$0xff]
    %v2107 = vld [vmem:[%s2102 + $0x20] sm:$0xff]
    %v2108 = vld [vmem:[%s2102 + $0x28] sm:$0xff]
    %v2109 = vld [vmem:[%s2102 + $0x30] sm:$0xff]
    %v2110 = vld [vmem:[%s2102 + $0x38] sm:$0xff]
    %v2111 = vld [vmem:[%s2102 + $0x40] sm:$0xff]
    %v2112 = vld [vmem:[%s2102 + $0x48] sm:$0xff]
    %v2113 = vld [vmem:[%s2102 + $0x50] sm:$0xff]
    %v2114 = vld [vmem:[%s2102 + $0x58] sm:$0xff]
    %v2115 = vld [vmem:[%s2102 + $0x60] sm:$0xff]
    %v2116 = vld [vmem:[%s2102 + $0x68] sm:$0xff]
    %v2117 = vld [vmem:[%s2102 + $0x70] sm:$0xff]
    %v2118 = vld [vmem:[%s2102 + $0x78] sm:$0xff]
    %s2119 = scalar_lea.vmem %s7, 2
    %v2120 = vld [vmem:[%s2119] sm:$0x3]
    %v2122 = vlaneseq
    %v2123 = vshrl.u32 %v2122, 7
    %v2124 = vsub.s32 0, %v2123
    %v2125 = vrot.slane %v2120, %v2124
    %v2126 = vlaneseq
    %v2127 = vshrl.u32 %v2126, 7
    %v2128 = vsub.s32 1, %v2127
    %v2129 = vrot.slane %v2120, %v2128
    %v2148 = vunpack.c.l.b16 %v2103
    %v2149 = vunpack.c.h.b16 %v2103
    %v2150 = vunpack.c.l.b16 %v2104
    %v2151 = vunpack.c.h.b16 %v2104
    %v2152 = vunpack.c.l.b16 %v2105
    %v2153 = vunpack.c.h.b16 %v2105
    %v2154 = vunpack.c.l.b16 %v2106
    %v2155 = vunpack.c.h.b16 %v2106
    %v2156 = vunpack.c.l.b16 %v2107
    %v2157 = vunpack.c.h.b16 %v2107
    %v2158 = vunpack.c.l.b16 %v2108
    %v2159 = vunpack.c.h.b16 %v2108
    %v2160 = vunpack.c.l.b16 %v2109
    %v2161 = vunpack.c.h.b16 %v2109
    %v2162 = vunpack.c.l.b16 %v2110
    %v2163 = vunpack.c.h.b16 %v2110
    %v2164 = vunpack.c.l.b16 %v2111
    %v2165 = vunpack.c.h.b16 %v2111
    %v2166 = vunpack.c.l.b16 %v2112
    %v2167 = vunpack.c.h.b16 %v2112
    %v2168 = vunpack.c.l.b16 %v2113
    %v2169 = vunpack.c.h.b16 %v2113
    %v2170 = vunpack.c.l.b16 %v2114
    %v2171 = vunpack.c.h.b16 %v2114
    %v2172 = vunpack.c.l.b16 %v2115
    %v2173 = vunpack.c.h.b16 %v2115
    %v2174 = vunpack.c.l.b16 %v2116
    %v2175 = vunpack.c.h.b16 %v2116
    %v2176 = vunpack.c.l.b16 %v2117
    %v2177 = vunpack.c.h.b16 %v2117
    %v2178 = vunpack.c.l.b16 %v2118
    %v2179 = vunpack.c.h.b16 %v2118
    %v2180 = vpack.c.b16 %v2150, %v2148
    %v2181 = vpack.c.b16 %v2151, %v2149
    %v2182 = vpack.c.b16 %v2154, %v2152
    %v2183 = vpack.c.b16 %v2155, %v2153
    %v2184 = vpack.c.b16 %v2158, %v2156
    %v2185 = vpack.c.b16 %v2159, %v2157
    %v2186 = vpack.c.b16 %v2162, %v2160
    %v2187 = vpack.c.b16 %v2163, %v2161
    %v2188 = vpack.c.b16 %v2166, %v2164
    %v2189 = vpack.c.b16 %v2167, %v2165
    %v2190 = vpack.c.b16 %v2170, %v2168
    %v2191 = vpack.c.b16 %v2171, %v2169
    %v2192 = vpack.c.b16 %v2174, %v2172
    %v2193 = vpack.c.b16 %v2175, %v2173
    %v2194 = vpack.c.b16 %v2178, %v2176
    %v2195 = vpack.c.b16 %v2179, %v2177
    %2212 = vmatprep.subr.bf16.mxu0 %v2181
    %2213 = vmatpush1.bf16.msra.mxu0 %v2180
    %2214 = vmatprep.subr.bf16.mxu0 %v2183
    %2215 = vmatpush1.bf16.msra.mxu0 %v2182
    %2216 = vmatprep.subr.bf16.mxu0 %v2185
    %2217 = vmatpush1.bf16.msra.mxu0 %v2184
    %2218 = vmatprep.subr.bf16.mxu0 %v2187
    %2219 = vmatpush1.bf16.msra.mxu0 %v2186
    %2220 = vmatprep.subr.bf16.mxu0 %v2189
    %2221 = vmatpush1.bf16.msra.mxu0 %v2188
    %2222 = vmatprep.subr.bf16.mxu0 %v2191
    %2223 = vmatpush1.bf16.msra.mxu0 %v2190
    %2224 = vmatprep.subr.bf16.mxu0 %v2193
    %2225 = vmatpush1.bf16.msra.mxu0 %v2192
    %2226 = vmatprep.subr.bf16.mxu0 %v2195
    %2227 = vmatpush1.bf16.msra.mxu0 %v2194
    %2228 = vmatprep.subr.bf16.mxu0 0
    %2229 = vmatpush1.bf16.msra.mxu0 0
    %2230 = vmatprep.subr.bf16.mxu0 0
    %2231 = vmatpush1.bf16.msra.mxu0 0
    %2232 = vmatprep.subr.bf16.mxu0 0
    %2233 = vmatpush1.bf16.msra.mxu0 0
    %2234 = vmatprep.subr.bf16.mxu0 0
    %2235 = vmatpush1.bf16.msra.mxu0 0
    %2236 = vmatprep.subr.bf16.mxu0 0
    %2237 = vmatpush1.bf16.msra.mxu0 0
    %2238 = vmatprep.subr.bf16.mxu0 0
    %2239 = vmatpush1.bf16.msra.mxu0 0
    %2240 = vmatprep.subr.bf16.mxu0 0
    %2241 = vmatpush1.bf16.msra.mxu0 0
    %2242 = vmatprep.subr.bf16.mxu0 0
    %2243 = vmatpush1.bf16.msra.mxu0 0
    %2244 = vmatprep.mubr.bf16.mxu0 0
    %2245 = vmatmul.mubr.bf16.gmra.mrb[0].mxu0 %v2101
    %v2246 = vpop.f32.mrb[0].mxu0
    %v2247 = vadd.f32 %v2125, %v2246
    %v2248 = vpop.f32.mrb[0].mxu0
    %v2249 = vadd.f32 %v2129, %v2248
    %v2250 = vpop.f32.mrb[0].mxu0
    %v2251 = vadd.f32 %v2125, %v2250
    %v2252 = vpop.f32.mrb[0].mxu0
    %v2253 = vadd.f32 %v2129, %v2252
    %2254 = vdwg.mxu0
    %v2255 = vmul.f32 %v2247, %v79
    %v2256 = vmul.f32 %v2249, %v80
    %v2257 = vmul.f32 %v2251, %v81
    %v2258 = vmul.f32 %v2253, %v82
    %2259 = vmatprep.subr.mxu0 %v120
    %2260 = vmatpush1.msra.mxu0 %v119
    %2261 = vmatprep.subr.mxu0 %v122
    %2262 = vmatpush1.msra.mxu0 %v121
    %2263 = vmatprep.subr.mxu0 %v124
    %2264 = vmatpush1.msra.mxu0 %v123
    %2265 = vmatprep.subr.mxu0 %v126
    %2266 = vmatpush1.msra.mxu0 %v125
    %2267 = vmatprep.subr.mxu0 %v128
    %2268 = vmatpush1.msra.mxu0 %v127
    %2269 = vmatprep.subr.mxu0 %v130
    %2270 = vmatpush1.msra.mxu0 %v129
    %2271 = vmatprep.subr.mxu0 %v132
    %2272 = vmatpush1.msra.mxu0 %v131
    %2273 = vmatprep.subr.mxu0 %v134
    %2274 = vmatpush1.msra.mxu0 %v133
    %2275 = vmatprep.subr.mxu0 %v136
    %2276 = vmatpush1.msra.mxu0 %v135
    %2277 = vmatprep.subr.mxu0 %v138
    %2278 = vmatpush1.msra.mxu0 %v137
    %2279 = vmatprep.subr.mxu0 %v140
    %2280 = vmatpush1.msra.mxu0 %v139
    %2281 = vmatprep.subr.mxu0 %v142
    %2282 = vmatpush1.msra.mxu0 %v141
    %2283 = vmatprep.subr.mxu0 %v144
    %2284 = vmatpush1.msra.mxu0 %v143
    %2285 = vmatprep.subr.mxu0 %v146
    %2286 = vmatpush1.msra.mxu0 %v145
    %2287 = vmatprep.subr.mxu0 %v148
    %2288 = vmatpush1.msra.mxu0 %v147
    %2289 = vmatprep.subr.mxu0 %v150
    %2290 = vmatpush1.msra.mxu0 %v149
    %2291 = vmatprep.subr.mxu0 %v152
    %2292 = vmatpush1.msra.mxu0 %v151
    %2293 = vmatprep.subr.mxu0 %v154
    %2294 = vmatpush1.msra.mxu0 %v153
    %2295 = vmatprep.subr.mxu0 %v156
    %2296 = vmatpush1.msra.mxu0 %v155
    %2297 = vmatprep.subr.mxu0 %v158
    %2298 = vmatpush1.msra.mxu0 %v157
    %2299 = vmatprep.subr.mxu0 %v160
    %2300 = vmatpush1.msra.mxu0 %v159
    %2301 = vmatprep.subr.mxu0 %v162
    %2302 = vmatpush1.msra.mxu0 %v161
    %2303 = vmatprep.subr.mxu0 %v164
    %2304 = vmatpush1.msra.mxu0 %v163
    %2305 = vmatprep.subr.mxu0 %v166
    %2306 = vmatpush1.msra.mxu0 %v165
    %2307 = vmatprep.subr.mxu0 %v168
    %2308 = vmatpush1.msra.mxu0 %v167
    %2309 = vmatprep.subr.mxu0 %v170
    %2310 = vmatpush1.msra.mxu0 %v169
    %2311 = vmatprep.subr.mxu0 %v172
    %2312 = vmatpush1.msra.mxu0 %v171
    %2313 = vmatprep.subr.mxu0 %v174
    %2314 = vmatpush1.msra.mxu0 %v173
    %2315 = vmatprep.subr.mxu0 %v176
    %2316 = vmatpush1.msra.mxu0 %v175
    %2317 = vmatprep.subr.mxu0 %v178
    %2318 = vmatpush1.msra.mxu0 %v177
    %2319 = vmatprep.subr.mxu0 %v180
    %2320 = vmatpush1.msra.mxu0 %v179
    %2321 = vmatprep.subr.mxu0 %v182
    %2322 = vmatpush1.msra.mxu0 %v181
    %2323 = vmatprep.mubr.f32.mxu0 %v2249
    %2324 = vmatmul.mubr.f32.gmra.mrb[0].mxu0 %v2247
    %v2325 = vpop.f32.mrb[0].mxu0
    %v2326 = vadd.f32 0.0, %v2325
    %v2327 = vpop.f32.mrb[0].mxu0
    %v2328 = vadd.f32 0.0, %v2327
    %2329 = vmatprep.mubr.f32.mxu0 %v2253
    %2330 = vmatmul.mubr.f32.gmra.mrb[0].mxu0 %v2251
    %v2331 = vpop.f32.mrb[0].mxu0
    %v2332 = vadd.f32 0.0, %v2331
    %v2333 = vpop.f32.mrb[0].mxu0
    %v2334 = vadd.f32 0.0, %v2333
    %2335 = vdwg.mxu0
    %v2336 = vmul.f32 %v2326, %v83
    %v2337 = vmul.f32 %v2328, %v84
    %v2338 = vmul.f32 %v2332, %v85
    %v2339 = vmul.f32 %v2334, %v86
    %v2340 = vadd.f32 %v2255, %v2336
    %v2341 = vadd.f32 %v2256, %v2337
    %v2342 = vadd.f32 %v2257, %v2338
    %v2343 = vadd.f32 %v2258, %v2339
    %s2344 = scalar_lea.vmem %s8, 64
    %v2345 = vld [vmem:[%s2344] sm:$0xf]
    %v2346 = vld [vmem:[%s2344 + $0x4] sm:$0xf]
    %v2347 = vld [vmem:[%s2344 + $0x8] sm:$0xf]
    %v2348 = vld [vmem:[%s2344 + $0xc] sm:$0xf]
    %v2349 = vld [vmem:[%s2344 + $0x10] sm:$0xf]
    %v2350 = vld [vmem:[%s2344 + $0x14] sm:$0xf]
    %v2351 = vld [vmem:[%s2344 + $0x18] sm:$0xf]
    %v2352 = vld [vmem:[%s2344 + $0x1c] sm:$0xf]
    %v2353 = vld [vmem:[%s2344 + $0x20] sm:$0xf]
    %v2354 = vld [vmem:[%s2344 + $0x24] sm:$0xf]
    %v2355 = vld [vmem:[%s2344 + $0x28] sm:$0xf]
    %v2356 = vld [vmem:[%s2344 + $0x2c] sm:$0xf]
    %v2357 = vld [vmem:[%s2344 + $0x30] sm:$0xf]
    %v2358 = vld [vmem:[%s2344 + $0x34] sm:$0xf]
    %v2359 = vld [vmem:[%s2344 + $0x38] sm:$0xf]
    %v2360 = vld [vmem:[%s2344 + $0x3c] sm:$0xf]
    %v2362 = vsel %vm558, %v2340, 0
    %v2365 = vsel %vm558, %v2342, 0
    %v2368 = vsel %vm558, %v2341, 0
    %v2371 = vsel %vm558, %v2343, 0
    %2373 = vmatprep.subr.mxu0 0.0
    %2374 = vmatpush1.xpose.msra.mxu0 %v2368
    %2375 = vmatprep.subr.mxu0 0.0
    %2376 = vmatpush1.xpose.msra.mxu0 %v2371
    %2377 = vmatprep.subr.mxu0 0.0
    %2378 = vmatpush1.xpose.msra.mxu0 0.0
    %2379 = vmatprep.subr.mxu0 0.0
    %2380 = vmatpush1.xpose.msra.mxu0 0.0
    %2381 = vmatprep.subr.mxu0 0.0
    %2382 = vmatpush1.xpose.msra.mxu0 0.0
    %2383 = vmatprep.subr.mxu0 0.0
    %2384 = vmatpush1.xpose.msra.mxu0 0.0
    %2385 = vmatprep.subr.mxu0 0.0
    %2386 = vmatpush1.xpose.msra.mxu0 0.0
    %2387 = vmatprep.subr.mxu0 0.0
    %2388 = vmatpush1.xpose.msra.mxu0 0.0
    %2389 = vmatprep.subr.mxu0 0.0
    %2390 = vmatpush1.xpose.msra.mxu0 0.0
    %2391 = vmatprep.subr.mxu0 0.0
    %2392 = vmatpush1.xpose.msra.mxu0 0.0
    %2393 = vmatprep.subr.mxu0 0.0
    %2394 = vmatpush1.xpose.msra.mxu0 0.0
    %2395 = vmatprep.subr.mxu0 0.0
    %2396 = vmatpush1.xpose.msra.mxu0 0.0
    %2397 = vmatprep.subr.mxu0 0.0
    %2398 = vmatpush1.xpose.msra.mxu0 0.0
    %2399 = vmatprep.subr.mxu0 0.0
    %2400 = vmatpush1.xpose.msra.mxu0 0.0
    %2401 = vmatprep.subr.mxu0 0.0
    %2402 = vmatpush1.xpose.msra.mxu0 0.0
    %2403 = vmatprep.subr.mxu0 0.0
    %2404 = vmatpush1.xpose.msra.mxu0 0.0
    %2405 = vmatprep.subr.mxu0 0.0
    %2406 = vmatpush1.xpose.msra.mxu0 0.0
    %2407 = vmatprep.subr.mxu0 0.0
    %2408 = vmatpush1.xpose.msra.mxu0 0.0
    %2409 = vmatprep.subr.mxu0 0.0
    %2410 = vmatpush1.xpose.msra.mxu0 0.0
    %2411 = vmatprep.subr.mxu0 0.0
    %2412 = vmatpush1.xpose.msra.mxu0 0.0
    %2413 = vmatprep.subr.mxu0 0.0
    %2414 = vmatpush1.xpose.msra.mxu0 0.0
    %2415 = vmatprep.subr.mxu0 0.0
    %2416 = vmatpush1.xpose.msra.mxu0 0.0
    %2417 = vmatprep.subr.mxu0 0.0
    %2418 = vmatpush1.xpose.msra.mxu0 0.0
    %2419 = vmatprep.subr.mxu0 0.0
    %2420 = vmatpush1.xpose.msra.mxu0 0.0
    %2421 = vmatprep.subr.mxu0 0.0
    %2422 = vmatpush1.xpose.msra.mxu0 0.0
    %2423 = vmatprep.subr.mxu0 0.0
    %2424 = vmatpush1.xpose.msra.mxu0 0.0
    %2425 = vmatprep.subr.mxu0 0.0
    %2426 = vmatpush1.xpose.msra.mxu0 0.0
    %2427 = vmatprep.subr.mxu0 0.0
    %2428 = vmatpush1.xpose.msra.mxu0 0.0
    %2429 = vmatprep.subr.mxu0 0.0
    %2430 = vmatpush1.xpose.msra.mxu0 0.0
    %2431 = vmatprep.subr.mxu0 0.0
    %2432 = vmatpush1.xpose.msra.mxu0 0.0
    %2433 = vmatprep.subr.mxu0 0.0
    %2434 = vmatpush1.xpose.msra.mxu0 0.0
    %2435 = vmatprep.subr.mxu0 0.0
    %2436 = vmatpush1.xpose.msra.mxu0 0.0
    %2437 = vmatprep.mubr.f32.mxu0 0.0
    %2438 = vmatmul.mubr.f32.gmra.mrb[0].mxu0 %v2362
    %v2439 = vpop.f32.mrb[0].mxu0
    %v2440 = vadd.f32 0.0, %v2439
    %v2441 = vpop.f32.mrb[0].mxu0
    %2442 = vmatprep.mubr.f32.mxu0 0.0
    %2443 = vmatmul.mubr.f32.gmra.mrb[0].mxu0 %v2365
    %v2444 = vpop.f32.mrb[0].mxu0
    %v2445 = vadd.f32 0.0, %v2444
    %v2446 = vpop.f32.mrb[0].mxu0
    %2447 = vdwg.mxu0
    %v2448 = vsel %vm186, %v2440, -inf
    %v2449 = vsel %vm187, %v2445, -inf
    %v2450 = vsel %vm648, %v2448, -inf
    %2451 = vmax.xlane.f32.xlu0 %v2450
    %v2452 = vpop.xlane.xlu0 %2451
    %v2453 = vsel %vm648, %v2449, -inf
    %2454 = vmax.xlane.f32.xlu0 %v2453
    %v2455 = vpop.xlane.xlu0 %2454
    %v2456 = vsub.f32 %v2448, %v2452
    %v2457 = vsub.f32 %v2449, %v2455
    %v2458 = vmul.f32 %v2456, 1.442695
    %v2459 = vpow.pop %v2458
    %v2460 = vmul.f32 %v2457, 1.442695
    %v2461 = vpow.pop %v2460
    %v2462 = vsel %vm648, %v2459, 0.0
    %2463 = vadd.xlane.f32.xlu0 %v2462
    %v2464 = vpop.xlane.xlu0 %2463
    %v2465 = vsel %vm648, %v2461, 0.0
    %2466 = vadd.xlane.f32.xlu0 %v2465
    %v2467 = vpop.xlane.xlu0 %2466
    %v2468 = vrcp.pop %v2464
    %v2469 = vrcp.pop %v2467
    %v2470 = vmul.f32 %v2459, %v2468
    %v2471 = vmul.f32 %v2461, %v2469
    %2472 = vrot.lane.b32.xlu0 %v2341, 64
    %v2473 = vpop.permute.xlu0 %2472
    %2474 = vrot.lane.b32.xlu0 %v2343, 64
    %v2475 = vpop.permute.xlu0 %2474
    %v2479 = vsel %vm648, %v2470, 0
    %v2482 = vsel %vm648, %v2471, 0
    %2484 = vmatprep.subr.mxu0 0.0
    %2485 = vmatpush1.msra.mxu0 %v2473
    %2486 = vmatprep.subr.mxu0 0.0
    %2487 = vmatpush1.msra.mxu0 %v2475
    %2488 = vmatprep.subr.mxu0 0.0
    %2489 = vmatpush1.msra.mxu0 0.0
    %2490 = vmatprep.subr.mxu0 0.0
    %2491 = vmatpush1.msra.mxu0 0.0
    %2492 = vmatprep.subr.mxu0 0.0
    %2493 = vmatpush1.msra.mxu0 0.0
    %2494 = vmatprep.subr.mxu0 0.0
    %2495 = vmatpush1.msra.mxu0 0.0
    %2496 = vmatprep.subr.mxu0 0.0
    %2497 = vmatpush1.msra.mxu0 0.0
    %2498 = vmatprep.subr.mxu0 0.0
    %2499 = vmatpush1.msra.mxu0 0.0
    %2500 = vmatprep.subr.mxu0 0.0
    %2501 = vmatpush1.msra.mxu0 0.0
    %2502 = vmatprep.subr.mxu0 0.0
    %2503 = vmatpush1.msra.mxu0 0.0
    %2504 = vmatprep.subr.mxu0 0.0
    %2505 = vmatpush1.msra.mxu0 0.0
    %2506 = vmatprep.subr.mxu0 0.0
    %2507 = vmatpush1.msra.mxu0 0.0
    %2508 = vmatprep.subr.mxu0 0.0
    %2509 = vmatpush1.msra.mxu0 0.0
    %2510 = vmatprep.subr.mxu0 0.0
    %2511 = vmatpush1.msra.mxu0 0.0
    %2512 = vmatprep.subr.mxu0 0.0
    %2513 = vmatpush1.msra.mxu0 0.0
    %2514 = vmatprep.subr.mxu0 0.0
    %2515 = vmatpush1.msra.mxu0 0.0
    %2516 = vmatprep.subr.mxu0 0.0
    %2517 = vmatpush1.msra.mxu0 0.0
    %2518 = vmatprep.subr.mxu0 0.0
    %2519 = vmatpush1.msra.mxu0 0.0
    %2520 = vmatprep.subr.mxu0 0.0
    %2521 = vmatpush1.msra.mxu0 0.0
    %2522 = vmatprep.subr.mxu0 0.0
    %2523 = vmatpush1.msra.mxu0 0.0
    %2524 = vmatprep.subr.mxu0 0.0
    %2525 = vmatpush1.msra.mxu0 0.0
    %2526 = vmatprep.subr.mxu0 0.0
    %2527 = vmatpush1.msra.mxu0 0.0
    %2528 = vmatprep.subr.mxu0 0.0
    %2529 = vmatpush1.msra.mxu0 0.0
    %2530 = vmatprep.subr.mxu0 0.0
    %2531 = vmatpush1.msra.mxu0 0.0
    %2532 = vmatprep.subr.mxu0 0.0
    %2533 = vmatpush1.msra.mxu0 0.0
    %2534 = vmatprep.subr.mxu0 0.0
    %2535 = vmatpush1.msra.mxu0 0.0
    %2536 = vmatprep.subr.mxu0 0.0
    %2537 = vmatpush1.msra.mxu0 0.0
    %2538 = vmatprep.subr.mxu0 0.0
    %2539 = vmatpush1.msra.mxu0 0.0
    %2540 = vmatprep.subr.mxu0 0.0
    %2541 = vmatpush1.msra.mxu0 0.0
    %2542 = vmatprep.subr.mxu0 0.0
    %2543 = vmatpush1.msra.mxu0 0.0
    %2544 = vmatprep.subr.mxu0 0.0
    %2545 = vmatpush1.msra.mxu0 0.0
    %2546 = vmatprep.subr.mxu0 0.0
    %2547 = vmatpush1.msra.mxu0 0.0
    %2548 = vmatprep.mubr.f32.mxu0 0.0
    %2549 = vmatmul.mubr.f32.gmra.mrb[0].mxu0 %v2479
    %v2550 = vpop.f32.mrb[0].mxu0
    %v2551 = vadd.f32 0.0, %v2550
    %v2552 = vpop.f32.mrb[0].mxu0
    %2553 = vmatprep.mubr.f32.mxu0 0.0
    %2554 = vmatmul.mubr.f32.gmra.mrb[0].mxu0 %v2482
    %v2555 = vpop.f32.mrb[0].mxu0
    %v2556 = vadd.f32 0.0, %v2555
    %v2557 = vpop.f32.mrb[0].mxu0
    %2558 = vdwg.mxu0
    %v2559 = vpack.c.bf16 %v2556, %v2551
    %2560 = vrot.lane.b32.xlu0 %v2340, 96
    %v2561 = vpop.permute.xlu0 %2560
    %2562 = vrot.lane.b32.xlu0 %v2342, 96
    %v2563 = vpop.permute.xlu0 %2562
    %v2564 = vsel %vm558, %v2561, 0
    %v2566 = vsel %vm558, %v2563, 0
    %2568 = vmatprep.subr.mxu0 0.0
    %2569 = vmatpush1.xpose.msra.mxu0 %v2368
    %2570 = vmatprep.subr.mxu0 0.0
    %2571 = vmatpush1.xpose.msra.mxu0 %v2371
    %2572 = vmatprep.subr.mxu0 0.0
    %2573 = vmatpush1.xpose.msra.mxu0 0.0
    %2574 = vmatprep.subr.mxu0 0.0
    %2575 = vmatpush1.xpose.msra.mxu0 0.0
    %2576 = vmatprep.subr.mxu0 0.0
    %2577 = vmatpush1.xpose.msra.mxu0 0.0
    %2578 = vmatprep.subr.mxu0 0.0
    %2579 = vmatpush1.xpose.msra.mxu0 0.0
    %2580 = vmatprep.subr.mxu0 0.0
    %2581 = vmatpush1.xpose.msra.mxu0 0.0
    %2582 = vmatprep.subr.mxu0 0.0
    %2583 = vmatpush1.xpose.msra.mxu0 0.0
    %2584 = vmatprep.subr.mxu0 0.0
    %2585 = vmatpush1.xpose.msra.mxu0 0.0
    %2586 = vmatprep.subr.mxu0 0.0
    %2587 = vmatpush1.xpose.msra.mxu0 0.0
    %2588 = vmatprep.subr.mxu0 0.0
    %2589 = vmatpush1.xpose.msra.mxu0 0.0
    %2590 = vmatprep.subr.mxu0 0.0
    %2591 = vmatpush1.xpose.msra.mxu0 0.0
    %2592 = vmatprep.subr.mxu0 0.0
    %2593 = vmatpush1.xpose.msra.mxu0 0.0
    %2594 = vmatprep.subr.mxu0 0.0
    %2595 = vmatpush1.xpose.msra.mxu0 0.0
    %2596 = vmatprep.subr.mxu0 0.0
    %2597 = vmatpush1.xpose.msra.mxu0 0.0
    %2598 = vmatprep.subr.mxu0 0.0
    %2599 = vmatpush1.xpose.msra.mxu0 0.0
    %2600 = vmatprep.subr.mxu0 0.0
    %2601 = vmatpush1.xpose.msra.mxu0 0.0
    %2602 = vmatprep.subr.mxu0 0.0
    %2603 = vmatpush1.xpose.msra.mxu0 0.0
    %2604 = vmatprep.subr.mxu0 0.0
    %2605 = vmatpush1.xpose.msra.mxu0 0.0
    %2606 = vmatprep.subr.mxu0 0.0
    %2607 = vmatpush1.xpose.msra.mxu0 0.0
    %2608 = vmatprep.subr.mxu0 0.0
    %2609 = vmatpush1.xpose.msra.mxu0 0.0
    %2610 = vmatprep.subr.mxu0 0.0
    %2611 = vmatpush1.xpose.msra.mxu0 0.0
    %2612 = vmatprep.subr.mxu0 0.0
    %2613 = vmatpush1.xpose.msra.mxu0 0.0
    %2614 = vmatprep.subr.mxu0 0.0
    %2615 = vmatpush1.xpose.msra.mxu0 0.0
    %2616 = vmatprep.subr.mxu0 0.0
    %2617 = vmatpush1.xpose.msra.mxu0 0.0
    %2618 = vmatprep.subr.mxu0 0.0
    %2619 = vmatpush1.xpose.msra.mxu0 0.0
    %2620 = vmatprep.subr.mxu0 0.0
    %2621 = vmatpush1.xpose.msra.mxu0 0.0
    %2622 = vmatprep.subr.mxu0 0.0
    %2623 = vmatpush1.xpose.msra.mxu0 0.0
    %2624 = vmatprep.subr.mxu0 0.0
    %2625 = vmatpush1.xpose.msra.mxu0 0.0
    %2626 = vmatprep.subr.mxu0 0.0
    %2627 = vmatpush1.xpose.msra.mxu0 0.0
    %2628 = vmatprep.subr.mxu0 0.0
    %2629 = vmatpush1.xpose.msra.mxu0 0.0
    %2630 = vmatprep.subr.mxu0 0.0
    %2631 = vmatpush1.xpose.msra.mxu0 0.0
    %2632 = vmatprep.mubr.f32.mxu0 0.0
    %2633 = vmatmul.mubr.f32.gmra.mrb[0].mxu0 %v2564
    %v2634 = vpop.f32.mrb[0].mxu0
    %v2635 = vadd.f32 0.0, %v2634
    %v2636 = vpop.f32.mrb[0].mxu0
    %2637 = vmatprep.mubr.f32.mxu0 0.0
    %2638 = vmatmul.mubr.f32.gmra.mrb[0].mxu0 %v2566
    %v2639 = vpop.f32.mrb[0].mxu0
    %v2640 = vadd.f32 0.0, %v2639
    %v2641 = vpop.f32.mrb[0].mxu0
    %2642 = vdwg.mxu0
    %v2643 = vsel %vm186, %v2635, -inf
    %v2644 = vsel %vm187, %v2640, -inf
    %v2645 = vsel %vm648, %v2643, -inf
    %2646 = vmax.xlane.f32.xlu0 %v2645
    %v2647 = vpop.xlane.xlu0 %2646
    %v2648 = vsel %vm648, %v2644, -inf
    %2649 = vmax.xlane.f32.xlu0 %v2648
    %v2650 = vpop.xlane.xlu0 %2649
    %v2651 = vsub.f32 %v2643, %v2647
    %v2652 = vsub.f32 %v2644, %v2650
    %v2653 = vmul.f32 %v2651, 1.442695
    %v2654 = vpow.pop %v2653
    %v2655 = vmul.f32 %v2652, 1.442695
    %v2656 = vpow.pop %v2655
    %v2657 = vsel %vm648, %v2654, 0.0
    %2658 = vadd.xlane.f32.xlu0 %v2657
    %v2659 = vpop.xlane.xlu0 %2658
    %v2660 = vsel %vm648, %v2656, 0.0
    %2661 = vadd.xlane.f32.xlu0 %v2660
    %v2662 = vpop.xlane.xlu0 %2661
    %v2663 = vrcp.pop %v2659
    %v2664 = vrcp.pop %v2662
    %v2665 = vmul.f32 %v2654, %v2663
    %v2666 = vmul.f32 %v2656, %v2664
    %v2668 = vsel %vm648, %v2665, 0
    %v2671 = vsel %vm648, %v2666, 0
    %2673 = vmatprep.subr.mxu0 0.0
    %2674 = vmatpush1.msra.mxu0 %v2473
    %2675 = vmatprep.subr.mxu0 0.0
    %2676 = vmatpush1.msra.mxu0 %v2475
    %2677 = vmatprep.subr.mxu0 0.0
    %2678 = vmatpush1.msra.mxu0 0.0
    %2679 = vmatprep.subr.mxu0 0.0
    %2680 = vmatpush1.msra.mxu0 0.0
    %2681 = vmatprep.subr.mxu0 0.0
    %2682 = vmatpush1.msra.mxu0 0.0
    %2683 = vmatprep.subr.mxu0 0.0
    %2684 = vmatpush1.msra.mxu0 0.0
    %2685 = vmatprep.subr.mxu0 0.0
    %2686 = vmatpush1.msra.mxu0 0.0
    %2687 = vmatprep.subr.mxu0 0.0
    %2688 = vmatpush1.msra.mxu0 0.0
    %2689 = vmatprep.subr.mxu0 0.0
    %2690 = vmatpush1.msra.mxu0 0.0
    %2691 = vmatprep.subr.mxu0 0.0
    %2692 = vmatpush1.msra.mxu0 0.0
    %2693 = vmatprep.subr.mxu0 0.0
    %2694 = vmatpush1.msra.mxu0 0.0
    %2695 = vmatprep.subr.mxu0 0.0
    %2696 = vmatpush1.msra.mxu0 0.0
    %2697 = vmatprep.subr.mxu0 0.0
    %2698 = vmatpush1.msra.mxu0 0.0
    %2699 = vmatprep.subr.mxu0 0.0
    %2700 = vmatpush1.msra.mxu0 0.0
    %2701 = vmatprep.subr.mxu0 0.0
    %2702 = vmatpush1.msra.mxu0 0.0
    %2703 = vmatprep.subr.mxu0 0.0
    %2704 = vmatpush1.msra.mxu0 0.0
    %2705 = vmatprep.subr.mxu0 0.0
    %2706 = vmatpush1.msra.mxu0 0.0
    %2707 = vmatprep.subr.mxu0 0.0
    %2708 = vmatpush1.msra.mxu0 0.0
    %2709 = vmatprep.subr.mxu0 0.0
    %2710 = vmatpush1.msra.mxu0 0.0
    %2711 = vmatprep.subr.mxu0 0.0
    %2712 = vmatpush1.msra.mxu0 0.0
    %2713 = vmatprep.subr.mxu0 0.0
    %2714 = vmatpush1.msra.mxu0 0.0
    %2715 = vmatprep.subr.mxu0 0.0
    %2716 = vmatpush1.msra.mxu0 0.0
    %2717 = vmatprep.subr.mxu0 0.0
    %2718 = vmatpush1.msra.mxu0 0.0
    %2719 = vmatprep.subr.mxu0 0.0
    %2720 = vmatpush1.msra.mxu0 0.0
    %2721 = vmatprep.subr.mxu0 0.0
    %2722 = vmatpush1.msra.mxu0 0.0
    %2723 = vmatprep.subr.mxu0 0.0
    %2724 = vmatpush1.msra.mxu0 0.0
    %2725 = vmatprep.subr.mxu0 0.0
    %2726 = vmatpush1.msra.mxu0 0.0
    %2727 = vmatprep.subr.mxu0 0.0
    %2728 = vmatpush1.msra.mxu0 0.0
    %2729 = vmatprep.subr.mxu0 0.0
    %2730 = vmatpush1.msra.mxu0 0.0
    %2731 = vmatprep.subr.mxu0 0.0
    %2732 = vmatpush1.msra.mxu0 0.0
    %2733 = vmatprep.subr.mxu0 0.0
    %2734 = vmatpush1.msra.mxu0 0.0
    %2735 = vmatprep.subr.mxu0 0.0
    %2736 = vmatpush1.msra.mxu0 0.0
    %2737 = vmatprep.mubr.f32.mxu0 0.0
    %2738 = vmatmul.mubr.f32.gmra.mrb[0].mxu0 %v2668
    %v2739 = vpop.f32.mrb[0].mxu0
    %v2740 = vadd.f32 0.0, %v2739
    %v2741 = vpop.f32.mrb[0].mxu0
    %2742 = vmatprep.mubr.f32.mxu0 0.0
    %2743 = vmatmul.mubr.f32.gmra.mrb[0].mxu0 %v2671
    %v2744 = vpop.f32.mrb[0].mxu0
    %v2745 = vadd.f32 0.0, %v2744
    %v2746 = vpop.f32.mrb[0].mxu0
    %2747 = vdwg.mxu0
    %v2748 = vpack.c.bf16 %v2745, %v2740
    %v2753 = vunpack.c.l.b16 %v2349
    %v2754 = vunpack.c.l.b16 %v2350
    %v2755 = vunpack.c.l.b16 %v2351
    %v2756 = vunpack.c.l.b16 %v2352
    %v2757 = vpack.c.b16 %v2754, %v2753
    %v2758 = vpack.c.b16 %v2756, %v2755
    %v2762 = vsel %vm558, %v2748, 0
    %2764 = vmatprep.subr.bf16.mxu0 0
    %2765 = vmatpush1.bf16.msra.mxu0 %v2757
    %2766 = vmatprep.subr.bf16.mxu0 0
    %2767 = vmatpush1.bf16.msra.mxu0 %v2758
    %2768 = vmatprep.subr.bf16.mxu0 0
    %2769 = vmatpush1.bf16.msra.mxu0 0
    %2770 = vmatprep.subr.bf16.mxu0 0
    %2771 = vmatpush1.bf16.msra.mxu0 0
    %2772 = vmatprep.subr.bf16.mxu0 0
    %2773 = vmatpush1.bf16.msra.mxu0 0
    %2774 = vmatprep.subr.bf16.mxu0 0
    %2775 = vmatpush1.bf16.msra.mxu0 0
    %2776 = vmatprep.subr.bf16.mxu0 0
    %2777 = vmatpush1.bf16.msra.mxu0 0
    %2778 = vmatprep.subr.bf16.mxu0 0
    %2779 = vmatpush1.bf16.msra.mxu0 0
    %2780 = vmatprep.subr.bf16.mxu0 0
    %2781 = vmatpush1.bf16.msra.mxu0 0
    %2782 = vmatprep.subr.bf16.mxu0 0
    %2783 = vmatpush1.bf16.msra.mxu0 0
    %2784 = vmatprep.subr.bf16.mxu0 0
    %2785 = vmatpush1.bf16.msra.mxu0 0
    %2786 = vmatprep.subr.bf16.mxu0 0
    %2787 = vmatpush1.bf16.msra.mxu0 0
    %2788 = vmatprep.subr.bf16.mxu0 0
    %2789 = vmatpush1.bf16.msra.mxu0 0
    %2790 = vmatprep.subr.bf16.mxu0 0
    %2791 = vmatpush1.bf16.msra.mxu0 0
    %2792 = vmatprep.subr.bf16.mxu0 0
    %2793 = vmatpush1.bf16.msra.mxu0 0
    %2794 = vmatprep.subr.bf16.mxu0 0
    %2795 = vmatpush1.bf16.msra.mxu0 0
    %2796 = vmatprep.mubr.bf16.mxu0 0
    %2797 = vmatmul.mubr.bf16.gmra.mrb[0].mxu0 %v2762
    %v2798 = vpop.f32.mrb[0].mxu0
    %v2799 = vadd.f32 0.0, %v2798
    %v2800 = vpop.f32.mrb[0].mxu0
    %v2801 = vpop.f32.mrb[0].mxu0
    %v2802 = vadd.f32 0.0, %v2801
    %v2803 = vpop.f32.mrb[0].mxu0
    %2804 = vdwg.mxu0
    %v2809 = vunpack.c.l.b16 %v2345
    %v2810 = vunpack.c.l.b16 %v2346
    %v2811 = vunpack.c.l.b16 %v2347
    %v2812 = vunpack.c.l.b16 %v2348
    %v2813 = vpack.c.b16 %v2810, %v2809
    %v2814 = vpack.c.b16 %v2812, %v2811
    %v2818 = vsel %vm558, %v2559, 0
    %2820 = vmatprep.subr.bf16.mxu0 0
    %2821 = vmatpush1.bf16.msra.mxu0 %v2813
    %2822 = vmatprep.subr.bf16.mxu0 0
    %2823 = vmatpush1.bf16.msra.mxu0 %v2814
    %2824 = vmatprep.subr.bf16.mxu0 0
    %2825 = vmatpush1.bf16.msra.mxu0 0
    %2826 = vmatprep.subr.bf16.mxu0 0
    %2827 = vmatpush1.bf16.msra.mxu0 0
    %2828 = vmatprep.subr.bf16.mxu0 0
    %2829 = vmatpush1.bf16.msra.mxu0 0
    %2830 = vmatprep.subr.bf16.mxu0 0
    %2831 = vmatpush1.bf16.msra.mxu0 0
    %2832 = vmatprep.subr.bf16.mxu0 0
    %2833 = vmatpush1.bf16.msra.mxu0 0
    %2834 = vmatprep.subr.bf16.mxu0 0
    %2835 = vmatpush1.bf16.msra.mxu0 0
    %2836 = vmatprep.subr.bf16.mxu0 0
    %2837 = vmatpush1.bf16.msra.mxu0 0
    %2838 = vmatprep.subr.bf16.mxu0 0
    %2839 = vmatpush1.bf16.msra.mxu0 0
    %2840 = vmatprep.subr.bf16.mxu0 0
    %2841 = vmatpush1.bf16.msra.mxu0 0
    %2842 = vmatprep.subr.bf16.mxu0 0
    %2843 = vmatpush1.bf16.msra.mxu0 0
    %2844 = vmatprep.subr.bf16.mxu0 0
    %2845 = vmatpush1.bf16.msra.mxu0 0
    %2846 = vmatprep.subr.bf16.mxu0 0
    %2847 = vmatpush1.bf16.msra.mxu0 0
    %2848 = vmatprep.subr.bf16.mxu0 0
    %2849 = vmatpush1.bf16.msra.mxu0 0
    %2850 = vmatprep.subr.bf16.mxu0 0
    %2851 = vmatpush1.bf16.msra.mxu0 0
    %2852 = vmatprep.mubr.bf16.mxu0 0
    %2853 = vmatmul.mubr.bf16.gmra.mrb[0].mxu0 %v2818
    %v2854 = vpop.f32.mrb[0].mxu0
    %v2855 = vadd.f32 %v2799, %v2854
    %v2856 = vpop.f32.mrb[0].mxu0
    %v2857 = vpop.f32.mrb[0].mxu0
    %v2858 = vadd.f32 %v2802, %v2857
    %v2859 = vpop.f32.mrb[0].mxu0
    %2860 = vdwg.mxu0
    %2861 = vrot.lane.b32.xlu0 %v2340, 64
    %v2862 = vpop.permute.xlu0 %2861
    %2863 = vrot.lane.b32.xlu0 %v2342, 64
    %v2864 = vpop.permute.xlu0 %2863
    %2865 = vrot.lane.b32.xlu0 %v2341, 96
    %v2866 = vpop.permute.xlu0 %2865
    %2867 = vrot.lane.b32.xlu0 %v2343, 96
    %v2868 = vpop.permute.xlu0 %2867
    %v2869 = vsel %vm558, %v2862, 0
    %v2871 = vsel %vm558, %v2864, 0
    %v2873 = vsel %vm558, %v2866, 0
    %v2875 = vsel %vm558, %v2868, 0
    %2877 = vmatprep.subr.mxu0 0.0
    %2878 = vmatpush1.xpose.msra.mxu0 %v2873
    %2879 = vmatprep.subr.mxu0 0.0
    %2880 = vmatpush1.xpose.msra.mxu0 %v2875
    %2881 = vmatprep.subr.mxu0 0.0
    %2882 = vmatpush1.xpose.msra.mxu0 0.0
    %2883 = vmatprep.subr.mxu0 0.0
    %2884 = vmatpush1.xpose.msra.mxu0 0.0
    %2885 = vmatprep.subr.mxu0 0.0
    %2886 = vmatpush1.xpose.msra.mxu0 0.0
    %2887 = vmatprep.subr.mxu0 0.0
    %2888 = vmatpush1.xpose.msra.mxu0 0.0
    %2889 = vmatprep.subr.mxu0 0.0
    %2890 = vmatpush1.xpose.msra.mxu0 0.0
    %2891 = vmatprep.subr.mxu0 0.0
    %2892 = vmatpush1.xpose.msra.mxu0 0.0
    %2893 = vmatprep.subr.mxu0 0.0
    %2894 = vmatpush1.xpose.msra.mxu0 0.0
    %2895 = vmatprep.subr.mxu0 0.0
    %2896 = vmatpush1.xpose.msra.mxu0 0.0
    %2897 = vmatprep.subr.mxu0 0.0
    %2898 = vmatpush1.xpose.msra.mxu0 0.0
    %2899 = vmatprep.subr.mxu0 0.0
    %2900 = vmatpush1.xpose.msra.mxu0 0.0
    %2901 = vmatprep.subr.mxu0 0.0
    %2902 = vmatpush1.xpose.msra.mxu0 0.0
    %2903 = vmatprep.subr.mxu0 0.0
    %2904 = vmatpush1.xpose.msra.mxu0 0.0
    %2905 = vmatprep.subr.mxu0 0.0
    %2906 = vmatpush1.xpose.msra.mxu0 0.0
    %2907 = vmatprep.subr.mxu0 0.0
    %2908 = vmatpush1.xpose.msra.mxu0 0.0
    %2909 = vmatprep.subr.mxu0 0.0
    %2910 = vmatpush1.xpose.msra.mxu0 0.0
    %2911 = vmatprep.subr.mxu0 0.0
    %2912 = vmatpush1.xpose.msra.mxu0 0.0
    %2913 = vmatprep.subr.mxu0 0.0
    %2914 = vmatpush1.xpose.msra.mxu0 0.0
    %2915 = vmatprep.subr.mxu0 0.0
    %2916 = vmatpush1.xpose.msra.mxu0 0.0
    %2917 = vmatprep.subr.mxu0 0.0
    %2918 = vmatpush1.xpose.msra.mxu0 0.0
    %2919 = vmatprep.subr.mxu0 0.0
    %2920 = vmatpush1.xpose.msra.mxu0 0.0
    %2921 = vmatprep.subr.mxu0 0.0
    %2922 = vmatpush1.xpose.msra.mxu0 0.0
    %2923 = vmatprep.subr.mxu0 0.0
    %2924 = vmatpush1.xpose.msra.mxu0 0.0
    %2925 = vmatprep.subr.mxu0 0.0
    %2926 = vmatpush1.xpose.msra.mxu0 0.0
    %2927 = vmatprep.subr.mxu0 0.0
    %2928 = vmatpush1.xpose.msra.mxu0 0.0
    %2929 = vmatprep.subr.mxu0 0.0
    %2930 = vmatpush1.xpose.msra.mxu0 0.0
    %2931 = vmatprep.subr.mxu0 0.0
    %2932 = vmatpush1.xpose.msra.mxu0 0.0
    %2933 = vmatprep.subr.mxu0 0.0
    %2934 = vmatpush1.xpose.msra.mxu0 0.0
    %2935 = vmatprep.subr.mxu0 0.0
    %2936 = vmatpush1.xpose.msra.mxu0 0.0
    %2937 = vmatprep.subr.mxu0 0.0
    %2938 = vmatpush1.xpose.msra.mxu0 0.0
    %2939 = vmatprep.subr.mxu0 0.0
    %2940 = vmatpush1.xpose.msra.mxu0 0.0
    %2941 = vmatprep.mubr.f32.mxu0 0.0
    %2942 = vmatmul.mubr.f32.gmra.mrb[0].mxu0 %v2869
    %v2943 = vpop.f32.mrb[0].mxu0
    %v2944 = vadd.f32 0.0, %v2943
    %v2945 = vpop.f32.mrb[0].mxu0
    %2946 = vmatprep.mubr.f32.mxu0 0.0
    %2947 = vmatmul.mubr.f32.gmra.mrb[0].mxu0 %v2871
    %v2948 = vpop.f32.mrb[0].mxu0
    %v2949 = vadd.f32 0.0, %v2948
    %v2950 = vpop.f32.mrb[0].mxu0
    %2951 = vdwg.mxu0
    %v2952 = vsel %vm186, %v2944, -inf
    %v2953 = vsel %vm187, %v2949, -inf
    %v2954 = vsel %vm648, %v2952, -inf
    %2955 = vmax.xlane.f32.xlu0 %v2954
    %v2956 = vpop.xlane.xlu0 %2955
    %v2957 = vsel %vm648, %v2953, -inf
    %2958 = vmax.xlane.f32.xlu0 %v2957
    %v2959 = vpop.xlane.xlu0 %2958
    %v2960 = vsub.f32 %v2952, %v2956
    %v2961 = vsub.f32 %v2953, %v2959
    %v2962 = vmul.f32 %v2960, 1.442695
    %v2963 = vpow.pop %v2962
    %v2964 = vmul.f32 %v2961, 1.442695
    %v2965 = vpow.pop %v2964
    %v2966 = vsel %vm648, %v2963, 0.0
    %2967 = vadd.xlane.f32.xlu0 %v2966
    %v2968 = vpop.xlane.xlu0 %2967
    %v2969 = vsel %vm648, %v2965, 0.0
    %2970 = vadd.xlane.f32.xlu0 %v2969
    %v2971 = vpop.xlane.xlu0 %2970
    %v2972 = vrcp.pop %v2968
    %v2973 = vrcp.pop %v2971
    %v2974 = vmul.f32 %v2963, %v2972
    %v2975 = vmul.f32 %v2965, %v2973
    %2976 = vrot.lane.b32.xlu0 %v2341, 32
    %v2977 = vpop.permute.xlu0 %2976
    %2978 = vrot.lane.b32.xlu0 %v2343, 32
    %v2979 = vpop.permute.xlu0 %2978
    %v2983 = vsel %vm648, %v2974, 0
    %v2986 = vsel %vm648, %v2975, 0
    %2988 = vmatprep.subr.mxu0 0.0
    %2989 = vmatpush1.msra.mxu0 %v2977
    %2990 = vmatprep.subr.mxu0 0.0
    %2991 = vmatpush1.msra.mxu0 %v2979
    %2992 = vmatprep.subr.mxu0 0.0
    %2993 = vmatpush1.msra.mxu0 0.0
    %2994 = vmatprep.subr.mxu0 0.0
    %2995 = vmatpush1.msra.mxu0 0.0
    %2996 = vmatprep.subr.mxu0 0.0
    %2997 = vmatpush1.msra.mxu0 0.0
    %2998 = vmatprep.subr.mxu0 0.0
    %2999 = vmatpush1.msra.mxu0 0.0
    %3000 = vmatprep.subr.mxu0 0.0
    %3001 = vmatpush1.msra.mxu0 0.0
    %3002 = vmatprep.subr.mxu0 0.0
    %3003 = vmatpush1.msra.mxu0 0.0
    %3004 = vmatprep.subr.mxu0 0.0
    %3005 = vmatpush1.msra.mxu0 0.0
    %3006 = vmatprep.subr.mxu0 0.0
    %3007 = vmatpush1.msra.mxu0 0.0
    %3008 = vmatprep.subr.mxu0 0.0
    %3009 = vmatpush1.msra.mxu0 0.0
    %3010 = vmatprep.subr.mxu0 0.0
    %3011 = vmatpush1.msra.mxu0 0.0
    %3012 = vmatprep.subr.mxu0 0.0
    %3013 = vmatpush1.msra.mxu0 0.0
    %3014 = vmatprep.subr.mxu0 0.0
    %3015 = vmatpush1.msra.mxu0 0.0
    %3016 = vmatprep.subr.mxu0 0.0
    %3017 = vmatpush1.msra.mxu0 0.0
    %3018 = vmatprep.subr.mxu0 0.0
    %3019 = vmatpush1.msra.mxu0 0.0
    %3020 = vmatprep.subr.mxu0 0.0
    %3021 = vmatpush1.msra.mxu0 0.0
    %3022 = vmatprep.subr.mxu0 0.0
    %3023 = vmatpush1.msra.mxu0 0.0
    %3024 = vmatprep.subr.mxu0 0.0
    %3025 = vmatpush1.msra.mxu0 0.0
    %3026 = vmatprep.subr.mxu0 0.0
    %3027 = vmatpush1.msra.mxu0 0.0
    %3028 = vmatprep.subr.mxu0 0.0
    %3029 = vmatpush1.msra.mxu0 0.0
    %3030 = vmatprep.subr.mxu0 0.0
    %3031 = vmatpush1.msra.mxu0 0.0
    %3032 = vmatprep.subr.mxu0 0.0
    %3033 = vmatpush1.msra.mxu0 0.0
    %3034 = vmatprep.subr.mxu0 0.0
    %3035 = vmatpush1.msra.mxu0 0.0
    %3036 = vmatprep.subr.mxu0 0.0
    %3037 = vmatpush1.msra.mxu0 0.0
    %3038 = vmatprep.subr.mxu0 0.0
    %3039 = vmatpush1.msra.mxu0 0.0
    %3040 = vmatprep.subr.mxu0 0.0
    %3041 = vmatpush1.msra.mxu0 0.0
    %3042 = vmatprep.subr.mxu0 0.0
    %3043 = vmatpush1.msra.mxu0 0.0
    %3044 = vmatprep.subr.mxu0 0.0
    %3045 = vmatpush1.msra.mxu0 0.0
    %3046 = vmatprep.subr.mxu0 0.0
    %3047 = vmatpush1.msra.mxu0 0.0
    %3048 = vmatprep.subr.mxu0 0.0
    %3049 = vmatpush1.msra.mxu0 0.0
    %3050 = vmatprep.subr.mxu0 0.0
    %3051 = vmatpush1.msra.mxu0 0.0
    %3052 = vmatprep.mubr.f32.mxu0 0.0
    %3053 = vmatmul.mubr.f32.gmra.mrb[0].mxu0 %v2983
    %v3054 = vpop.f32.mrb[0].mxu0
    %v3055 = vadd.f32 0.0, %v3054
    %v3056 = vpop.f32.mrb[0].mxu0
    %3057 = vmatprep.mubr.f32.mxu0 0.0
    %3058 = vmatmul.mubr.f32.gmra.mrb[0].mxu0 %v2986
    %v3059 = vpop.f32.mrb[0].mxu0
    %v3060 = vadd.f32 0.0, %v3059
    %v3061 = vpop.f32.mrb[0].mxu0
    %3062 = vdwg.mxu0
    %v3063 = vpack.c.bf16 %v3060, %v3055
    %v3068 = vunpack.c.l.b16 %v2353
    %v3069 = vunpack.c.l.b16 %v2354
    %v3070 = vunpack.c.l.b16 %v2355
    %v3071 = vunpack.c.l.b16 %v2356
    %v3072 = vpack.c.b16 %v3069, %v3068
    %v3073 = vpack.c.b16 %v3071, %v3070
    %v3077 = vsel %vm558, %v3063, 0
    %3079 = vmatprep.subr.bf16.mxu0 0
    %3080 = vmatpush1.bf16.msra.mxu0 %v3072
    %3081 = vmatprep.subr.bf16.mxu0 0
    %3082 = vmatpush1.bf16.msra.mxu0 %v3073
    %3083 = vmatprep.subr.bf16.mxu0 0
    %3084 = vmatpush1.bf16.msra.mxu0 0
    %3085 = vmatprep.subr.bf16.mxu0 0
    %3086 = vmatpush1.bf16.msra.mxu0 0
    %3087 = vmatprep.subr.bf16.mxu0 0
    %3088 = vmatpush1.bf16.msra.mxu0 0
    %3089 = vmatprep.subr.bf16.mxu0 0
    %3090 = vmatpush1.bf16.msra.mxu0 0
    %3091 = vmatprep.subr.bf16.mxu0 0
    %3092 = vmatpush1.bf16.msra.mxu0 0
    %3093 = vmatprep.subr.bf16.mxu0 0
    %3094 = vmatpush1.bf16.msra.mxu0 0
    %3095 = vmatprep.subr.bf16.mxu0 0
    %3096 = vmatpush1.bf16.msra.mxu0 0
    %3097 = vmatprep.subr.bf16.mxu0 0
    %3098 = vmatpush1.bf16.msra.mxu0 0
    %3099 = vmatprep.subr.bf16.mxu0 0
    %3100 = vmatpush1.bf16.msra.mxu0 0
    %3101 = vmatprep.subr.bf16.mxu0 0
    %3102 = vmatpush1.bf16.msra.mxu0 0
    %3103 = vmatprep.subr.bf16.mxu0 0
    %3104 = vmatpush1.bf16.msra.mxu0 0
    %3105 = vmatprep.subr.bf16.mxu0 0
    %3106 = vmatpush1.bf16.msra.mxu0 0
    %3107 = vmatprep.subr.bf16.mxu0 0
    %3108 = vmatpush1.bf16.msra.mxu0 0
    %3109 = vmatprep.subr.bf16.mxu0 0
    %3110 = vmatpush1.bf16.msra.mxu0 0
    %3111 = vmatprep.mubr.bf16.mxu0 0
    %3112 = vmatmul.mubr.bf16.gmra.mrb[0].mxu0 %v3077
    %v3113 = vpop.f32.mrb[0].mxu0
    %v3114 = vadd.f32 0.0, %v3113
    %v3115 = vpop.f32.mrb[0].mxu0
    %v3116 = vpop.f32.mrb[0].mxu0
    %v3117 = vadd.f32 0.0, %v3116
    %v3118 = vpop.f32.mrb[0].mxu0
    %3119 = vdwg.mxu0
    %v3120 = vadd.f32 %v2855, %v3114
    %v3121 = vadd.f32 %v2858, %v3117
    %3122 = vrot.lane.b32.xlu0 %v2340, 32
    %v3123 = vpop.permute.xlu0 %3122
    %3124 = vrot.lane.b32.xlu0 %v2342, 32
    %v3125 = vpop.permute.xlu0 %3124
    %v3126 = vsel %vm558, %v3123, 0
    %v3128 = vsel %vm558, %v3125, 0
    %3130 = vmatprep.subr.mxu0 0.0
    %3131 = vmatpush1.xpose.msra.mxu0 %v2873
    %3132 = vmatprep.subr.mxu0 0.0
    %3133 = vmatpush1.xpose.msra.mxu0 %v2875
    %3134 = vmatprep.subr.mxu0 0.0
    %3135 = vmatpush1.xpose.msra.mxu0 0.0
    %3136 = vmatprep.subr.mxu0 0.0
    %3137 = vmatpush1.xpose.msra.mxu0 0.0
    %3138 = vmatprep.subr.mxu0 0.0
    %3139 = vmatpush1.xpose.msra.mxu0 0.0
    %3140 = vmatprep.subr.mxu0 0.0
    %3141 = vmatpush1.xpose.msra.mxu0 0.0
    %3142 = vmatprep.subr.mxu0 0.0
    %3143 = vmatpush1.xpose.msra.mxu0 0.0
    %3144 = vmatprep.subr.mxu0 0.0
    %3145 = vmatpush1.xpose.msra.mxu0 0.0
    %3146 = vmatprep.subr.mxu0 0.0
    %3147 = vmatpush1.xpose.msra.mxu0 0.0
    %3148 = vmatprep.subr.mxu0 0.0
    %3149 = vmatpush1.xpose.msra.mxu0 0.0
    %3150 = vmatprep.subr.mxu0 0.0
    %3151 = vmatpush1.xpose.msra.mxu0 0.0
    %3152 = vmatprep.subr.mxu0 0.0
    %3153 = vmatpush1.xpose.msra.mxu0 0.0
    %3154 = vmatprep.subr.mxu0 0.0
    %3155 = vmatpush1.xpose.msra.mxu0 0.0
    %3156 = vmatprep.subr.mxu0 0.0
    %3157 = vmatpush1.xpose.msra.mxu0 0.0
    %3158 = vmatprep.subr.mxu0 0.0
    %3159 = vmatpush1.xpose.msra.mxu0 0.0
    %3160 = vmatprep.subr.mxu0 0.0
    %3161 = vmatpush1.xpose.msra.mxu0 0.0
    %3162 = vmatprep.subr.mxu0 0.0
    %3163 = vmatpush1.xpose.msra.mxu0 0.0
    %3164 = vmatprep.subr.mxu0 0.0
    %3165 = vmatpush1.xpose.msra.mxu0 0.0
    %3166 = vmatprep.subr.mxu0 0.0
    %3167 = vmatpush1.xpose.msra.mxu0 0.0
    %3168 = vmatprep.subr.mxu0 0.0
    %3169 = vmatpush1.xpose.msra.mxu0 0.0
    %3170 = vmatprep.subr.mxu0 0.0
    %3171 = vmatpush1.xpose.msra.mxu0 0.0
    %3172 = vmatprep.subr.mxu0 0.0
    %3173 = vmatpush1.xpose.msra.mxu0 0.0
    %3174 = vmatprep.subr.mxu0 0.0
    %3175 = vmatpush1.xpose.msra.mxu0 0.0
    %3176 = vmatprep.subr.mxu0 0.0
    %3177 = vmatpush1.xpose.msra.mxu0 0.0
    %3178 = vmatprep.subr.mxu0 0.0
    %3179 = vmatpush1.xpose.msra.mxu0 0.0
    %3180 = vmatprep.subr.mxu0 0.0
    %3181 = vmatpush1.xpose.msra.mxu0 0.0
    %3182 = vmatprep.subr.mxu0 0.0
    %3183 = vmatpush1.xpose.msra.mxu0 0.0
    %3184 = vmatprep.subr.mxu0 0.0
    %3185 = vmatpush1.xpose.msra.mxu0 0.0
    %3186 = vmatprep.subr.mxu0 0.0
    %3187 = vmatpush1.xpose.msra.mxu0 0.0
    %3188 = vmatprep.subr.mxu0 0.0
    %3189 = vmatpush1.xpose.msra.mxu0 0.0
    %3190 = vmatprep.subr.mxu0 0.0
    %3191 = vmatpush1.xpose.msra.mxu0 0.0
    %3192 = vmatprep.subr.mxu0 0.0
    %3193 = vmatpush1.xpose.msra.mxu0 0.0
    %3194 = vmatprep.mubr.f32.mxu0 0.0
    %3195 = vmatmul.mubr.f32.gmra.mrb[0].mxu0 %v3126
    %v3196 = vpop.f32.mrb[0].mxu0
    %v3197 = vadd.f32 0.0, %v3196
    %v3198 = vpop.f32.mrb[0].mxu0
    %3199 = vmatprep.mubr.f32.mxu0 0.0
    %3200 = vmatmul.mubr.f32.gmra.mrb[0].mxu0 %v3128
    %v3201 = vpop.f32.mrb[0].mxu0
    %v3202 = vadd.f32 0.0, %v3201
    %v3203 = vpop.f32.mrb[0].mxu0
    %3204 = vdwg.mxu0
    %v3205 = vsel %vm186, %v3197, -inf
    %v3206 = vsel %vm187, %v3202, -inf
    %v3207 = vsel %vm648, %v3205, -inf
    %3208 = vmax.xlane.f32.xlu0 %v3207
    %v3209 = vpop.xlane.xlu0 %3208
    %v3210 = vsel %vm648, %v3206, -inf
    %3211 = vmax.xlane.f32.xlu0 %v3210
    %v3212 = vpop.xlane.xlu0 %3211
    %v3213 = vsub.f32 %v3205, %v3209
    %v3214 = vsub.f32 %v3206, %v3212
    %v3215 = vmul.f32 %v3213, 1.442695
    %v3216 = vpow.pop %v3215
    %v3217 = vmul.f32 %v3214, 1.442695
    %v3218 = vpow.pop %v3217
    %v3219 = vsel %vm648, %v3216, 0.0
    %3220 = vadd.xlane.f32.xlu0 %v3219
    %v3221 = vpop.xlane.xlu0 %3220
    %v3222 = vsel %vm648, %v3218, 0.0
    %3223 = vadd.xlane.f32.xlu0 %v3222
    %v3224 = vpop.xlane.xlu0 %3223
    %v3225 = vrcp.pop %v3221
    %v3226 = vrcp.pop %v3224
    %v3227 = vmul.f32 %v3216, %v3225
    %v3228 = vmul.f32 %v3218, %v3226
    %v3230 = vsel %vm648, %v3227, 0
    %v3233 = vsel %vm648, %v3228, 0
    %3235 = vmatprep.subr.mxu0 0.0
    %3236 = vmatpush1.msra.mxu0 %v2977
    %3237 = vmatprep.subr.mxu0 0.0
    %3238 = vmatpush1.msra.mxu0 %v2979
    %3239 = vmatprep.subr.mxu0 0.0
    %3240 = vmatpush1.msra.mxu0 0.0
    %3241 = vmatprep.subr.mxu0 0.0
    %3242 = vmatpush1.msra.mxu0 0.0
    %3243 = vmatprep.subr.mxu0 0.0
    %3244 = vmatpush1.msra.mxu0 0.0
    %3245 = vmatprep.subr.mxu0 0.0
    %3246 = vmatpush1.msra.mxu0 0.0
    %3247 = vmatprep.subr.mxu0 0.0
    %3248 = vmatpush1.msra.mxu0 0.0
    %3249 = vmatprep.subr.mxu0 0.0
    %3250 = vmatpush1.msra.mxu0 0.0
    %3251 = vmatprep.subr.mxu0 0.0
    %3252 = vmatpush1.msra.mxu0 0.0
    %3253 = vmatprep.subr.mxu0 0.0
    %3254 = vmatpush1.msra.mxu0 0.0
    %3255 = vmatprep.subr.mxu0 0.0
    %3256 = vmatpush1.msra.mxu0 0.0
    %3257 = vmatprep.subr.mxu0 0.0
    %3258 = vmatpush1.msra.mxu0 0.0
    %3259 = vmatprep.subr.mxu0 0.0
    %3260 = vmatpush1.msra.mxu0 0.0
    %3261 = vmatprep.subr.mxu0 0.0
    %3262 = vmatpush1.msra.mxu0 0.0
    %3263 = vmatprep.subr.mxu0 0.0
    %3264 = vmatpush1.msra.mxu0 0.0
    %3265 = vmatprep.subr.mxu0 0.0
    %3266 = vmatpush1.msra.mxu0 0.0
    %3267 = vmatprep.subr.mxu0 0.0
    %3268 = vmatpush1.msra.mxu0 0.0
    %3269 = vmatprep.subr.mxu0 0.0
    %3270 = vmatpush1.msra.mxu0 0.0
    %3271 = vmatprep.subr.mxu0 0.0
    %3272 = vmatpush1.msra.mxu0 0.0
    %3273 = vmatprep.subr.mxu0 0.0
    %3274 = vmatpush1.msra.mxu0 0.0
    %3275 = vmatprep.subr.mxu0 0.0
    %3276 = vmatpush1.msra.mxu0 0.0
    %3277 = vmatprep.subr.mxu0 0.0
    %3278 = vmatpush1.msra.mxu0 0.0
    %3279 = vmatprep.subr.mxu0 0.0
    %3280 = vmatpush1.msra.mxu0 0.0
    %3281 = vmatprep.subr.mxu0 0.0
    %3282 = vmatpush1.msra.mxu0 0.0
    %3283 = vmatprep.subr.mxu0 0.0
    %3284 = vmatpush1.msra.mxu0 0.0
    %3285 = vmatprep.subr.mxu0 0.0
    %3286 = vmatpush1.msra.mxu0 0.0
    %3287 = vmatprep.subr.mxu0 0.0
    %3288 = vmatpush1.msra.mxu0 0.0
    %3289 = vmatprep.subr.mxu0 0.0
    %3290 = vmatpush1.msra.mxu0 0.0
    %3291 = vmatprep.subr.mxu0 0.0
    %3292 = vmatpush1.msra.mxu0 0.0
    %3293 = vmatprep.subr.mxu0 0.0
    %3294 = vmatpush1.msra.mxu0 0.0
    %3295 = vmatprep.subr.mxu0 0.0
    %3296 = vmatpush1.msra.mxu0 0.0
    %3297 = vmatprep.subr.mxu0 0.0
    %3298 = vmatpush1.msra.mxu0 0.0
    %3299 = vmatprep.mubr.f32.mxu0 0.0
    %3300 = vmatmul.mubr.f32.gmra.mrb[0].mxu0 %v3230
    %v3301 = vpop.f32.mrb[0].mxu0
    %v3302 = vadd.f32 0.0, %v3301
    %v3303 = vpop.f32.mrb[0].mxu0
    %3304 = vmatprep.mubr.f32.mxu0 0.0
    %3305 = vmatmul.mubr.f32.gmra.mrb[0].mxu0 %v3233
    %v3306 = vpop.f32.mrb[0].mxu0
    %v3307 = vadd.f32 0.0, %v3306
    %v3308 = vpop.f32.mrb[0].mxu0
    %3309 = vdwg.mxu0
    %v3310 = vpack.c.bf16 %v3307, %v3302
    %v3315 = vunpack.c.l.b16 %v2357
    %v3316 = vunpack.c.l.b16 %v2358
    %v3317 = vunpack.c.l.b16 %v2359
    %v3318 = vunpack.c.l.b16 %v2360
    %v3319 = vpack.c.b16 %v3316, %v3315
    %v3320 = vpack.c.b16 %v3318, %v3317
    %v3324 = vsel %vm558, %v3310, 0
    %3326 = vmatprep.subr.bf16.mxu0 0
    %3327 = vmatpush1.bf16.msra.mxu0 %v3319
    %3328 = vmatprep.subr.bf16.mxu0 0
    %3329 = vmatpush1.bf16.msra.mxu0 %v3320
    %3330 = vmatprep.subr.bf16.mxu0 0
    %3331 = vmatpush1.bf16.msra.mxu0 0
    %3332 = vmatprep.subr.bf16.mxu0 0
    %3333 = vmatpush1.bf16.msra.mxu0 0
    %3334 = vmatprep.subr.bf16.mxu0 0
    %3335 = vmatpush1.bf16.msra.mxu0 0
    %3336 = vmatprep.subr.bf16.mxu0 0
    %3337 = vmatpush1.bf16.msra.mxu0 0
    %3338 = vmatprep.subr.bf16.mxu0 0
    %3339 = vmatpush1.bf16.msra.mxu0 0
    %3340 = vmatprep.subr.bf16.mxu0 0
    %3341 = vmatpush1.bf16.msra.mxu0 0
    %3342 = vmatprep.subr.bf16.mxu0 0
    %3343 = vmatpush1.bf16.msra.mxu0 0
    %3344 = vmatprep.subr.bf16.mxu0 0
    %3345 = vmatpush1.bf16.msra.mxu0 0
    %3346 = vmatprep.subr.bf16.mxu0 0
    %3347 = vmatpush1.bf16.msra.mxu0 0
    %3348 = vmatprep.subr.bf16.mxu0 0
    %3349 = vmatpush1.bf16.msra.mxu0 0
    %3350 = vmatprep.subr.bf16.mxu0 0
    %3351 = vmatpush1.bf16.msra.mxu0 0
    %3352 = vmatprep.subr.bf16.mxu0 0
    %3353 = vmatpush1.bf16.msra.mxu0 0
    %3354 = vmatprep.subr.bf16.mxu0 0
    %3355 = vmatpush1.bf16.msra.mxu0 0
    %3356 = vmatprep.subr.bf16.mxu0 0
    %3357 = vmatpush1.bf16.msra.mxu0 0
    %3358 = vmatprep.mubr.bf16.mxu0 0
    %3359 = vmatmul.mubr.bf16.gmra.mrb[0].mxu0 %v3324
    %v3360 = vpop.f32.mrb[0].mxu0
    %v3361 = vadd.f32 0.0, %v3360
    %v3362 = vpop.f32.mrb[0].mxu0
    %v3363 = vpop.f32.mrb[0].mxu0
    %v3364 = vadd.f32 0.0, %v3363
    %v3365 = vpop.f32.mrb[0].mxu0
    %3366 = vdwg.mxu0
    %v3367 = vadd.f32 %v3120, %v3361
    %v3368 = vadd.f32 %v3121, %v3364
    %v3369 = vadd.f32 %v2075, %v3367
    %v3370 = vadd.f32 %v2076, %v3368
    %s3371 = scalar_lea.vmem %s9, 1
    %v3372 = vld [vmem:[%s3371] sm:$0x1]
    %v3373 = vmul.f32 %v3369, %v3369
    %v3374 = vmul.f32 %v3370, %v3370
    %3375 = vadd.xlane.f32.xlu0 %v3373
    %v3376 = vpop.xlane.xlu0 %3375
    %3377 = vadd.xlane.f32.xlu0 %v3374
    %v3378 = vpop.xlane.xlu0 %3377
    %v3379 = vmul.f32 %v3376, %v284
    %v3380 = vmul.f32 %v3378, %v284
    %v3381 = vadd.f32 %v3379, 1e-06
    %v3382 = vadd.f32 %v3380, 1e-06
    %v3383 = vrsqrt.pop %v3381
    %v3384 = vrsqrt.pop %v3382
    %v3385 = vmul.f32 %v3369, %v3383
    %v3386 = vmul.f32 %v3370, %v3384
    %v3388 = vlaneseq
    %v3389 = vshrl.u32 %v3388, 7
    %v3390 = vsub.s32 0, %v3389
    %v3391 = vrot.slane %v3372, %v3390
    %v3393 = vmul.f32 %v3385, %v3391
    %v3394 = vmul.f32 %v3386, %v3391
    %v3395 = vpack.c.bf16 %v3394, %v3393
    %s3396 = scalar_lea.vmem %s10, 256
    %v3397 = vld [vmem:[%s3396] sm:$0xff]
    %v3398 = vld [vmem:[%s3396 + $0x8] sm:$0xff]
    %v3399 = vld [vmem:[%s3396 + $0x10] sm:$0xff]
    %v3400 = vld [vmem:[%s3396 + $0x18] sm:$0xff]
    %v3401 = vld [vmem:[%s3396 + $0x20] sm:$0xff]
    %v3402 = vld [vmem:[%s3396 + $0x28] sm:$0xff]
    %v3403 = vld [vmem:[%s3396 + $0x30] sm:$0xff]
    %v3404 = vld [vmem:[%s3396 + $0x38] sm:$0xff]
    %v3405 = vld [vmem:[%s3396 + $0x40] sm:$0xff]
    %v3406 = vld [vmem:[%s3396 + $0x48] sm:$0xff]
    %v3407 = vld [vmem:[%s3396 + $0x50] sm:$0xff]
    %v3408 = vld [vmem:[%s3396 + $0x58] sm:$0xff]
    %v3409 = vld [vmem:[%s3396 + $0x60] sm:$0xff]
    %v3410 = vld [vmem:[%s3396 + $0x68] sm:$0xff]
    %v3411 = vld [vmem:[%s3396 + $0x70] sm:$0xff]
    %v3412 = vld [vmem:[%s3396 + $0x78] sm:$0xff]
    %v3413 = vld [vmem:[%s3396 + $0x80] sm:$0xff]
    %v3414 = vld [vmem:[%s3396 + $0x88] sm:$0xff]
    %v3415 = vld [vmem:[%s3396 + $0x90] sm:$0xff]
    %v3416 = vld [vmem:[%s3396 + $0x98] sm:$0xff]
    %v3417 = vld [vmem:[%s3396 + $0xa0] sm:$0xff]
    %v3418 = vld [vmem:[%s3396 + $0xa8] sm:$0xff]
    %v3419 = vld [vmem:[%s3396 + $0xb0] sm:$0xff]
    %v3420 = vld [vmem:[%s3396 + $0xb8] sm:$0xff]
    %v3421 = vld [vmem:[%s3396 + $0xc0] sm:$0xff]
    %v3422 = vld [vmem:[%s3396 + $0xc8] sm:$0xff]
    %v3423 = vld [vmem:[%s3396 + $0xd0] sm:$0xff]
    %v3424 = vld [vmem:[%s3396 + $0xd8] sm:$0xff]
    %v3425 = vld [vmem:[%s3396 + $0xe0] sm:$0xff]
    %v3426 = vld [vmem:[%s3396 + $0xe8] sm:$0xff]
    %v3427 = vld [vmem:[%s3396 + $0xf0] sm:$0xff]
    %v3428 = vld [vmem:[%s3396 + $0xf8] sm:$0xff]
    %v3461 = vunpack.c.l.b16 %v3397
    %v3462 = vunpack.c.h.b16 %v3397
    %v3463 = vunpack.c.l.b16 %v3398
    %v3464 = vunpack.c.h.b16 %v3398
    %v3465 = vunpack.c.l.b16 %v3399
    %v3466 = vunpack.c.h.b16 %v3399
    %v3467 = vunpack.c.l.b16 %v3400
    %v3468 = vunpack.c.h.b16 %v3400
    %v3469 = vunpack.c.l.b16 %v3401
    %v3470 = vunpack.c.h.b16 %v3401
    %v3471 = vunpack.c.l.b16 %v3402
    %v3472 = vunpack.c.h.b16 %v3402
    %v3473 = vunpack.c.l.b16 %v3403
    %v3474 = vunpack.c.h.b16 %v3403
    %v3475 = vunpack.c.l.b16 %v3404
    %v3476 = vunpack.c.h.b16 %v3404
    %v3477 = vunpack.c.l.b16 %v3405
    %v3478 = vunpack.c.h.b16 %v3405
    %v3479 = vunpack.c.l.b16 %v3406
    %v3480 = vunpack.c.h.b16 %v3406
    %v3481 = vunpack.c.l.b16 %v3407
    %v3482 = vunpack.c.h.b16 %v3407
    %v3483 = vunpack.c.l.b16 %v3408
    %v3484 = vunpack.c.h.b16 %v3408
    %v3485 = vunpack.c.l.b16 %v3409
    %v3486 = vunpack.c.h.b16 %v3409
    %v3487 = vunpack.c.l.b16 %v3410
    %v3488 = vunpack.c.h.b16 %v3410
    %v3489 = vunpack.c.l.b16 %v3411
    %v3490 = vunpack.c.h.b16 %v3411
    %v3491 = vunpack.c.l.b16 %v3412
    %v3492 = vunpack.c.h.b16 %v3412
    %v3493 = vunpack.c.l.b16 %v3413
    %v3494 = vunpack.c.h.b16 %v3413
    %v3495 = vunpack.c.l.b16 %v3414
    %v3496 = vunpack.c.h.b16 %v3414
    %v3497 = vunpack.c.l.b16 %v3415
    %v3498 = vunpack.c.h.b16 %v3415
    %v3499 = vunpack.c.l.b16 %v3416
    %v3500 = vunpack.c.h.b16 %v3416
    %v3501 = vunpack.c.l.b16 %v3417
    %v3502 = vunpack.c.h.b16 %v3417
    %v3503 = vunpack.c.l.b16 %v3418
    %v3504 = vunpack.c.h.b16 %v3418
    %v3505 = vunpack.c.l.b16 %v3419
    %v3506 = vunpack.c.h.b16 %v3419
    %v3507 = vunpack.c.l.b16 %v3420
    %v3508 = vunpack.c.h.b16 %v3420
    %v3509 = vunpack.c.l.b16 %v3421
    %v3510 = vunpack.c.h.b16 %v3421
    %v3511 = vunpack.c.l.b16 %v3422
    %v3512 = vunpack.c.h.b16 %v3422
    %v3513 = vunpack.c.l.b16 %v3423
    %v3514 = vunpack.c.h.b16 %v3423
    %v3515 = vunpack.c.l.b16 %v3424
    %v3516 = vunpack.c.h.b16 %v3424
    %v3517 = vunpack.c.l.b16 %v3425
    %v3518 = vunpack.c.h.b16 %v3425
    %v3519 = vunpack.c.l.b16 %v3426
    %v3520 = vunpack.c.h.b16 %v3426
    %v3521 = vunpack.c.l.b16 %v3427
    %v3522 = vunpack.c.h.b16 %v3427
    %v3523 = vunpack.c.l.b16 %v3428
    %v3524 = vunpack.c.h.b16 %v3428
    %v3525 = vpack.c.b16 %v3465, %v3461
    %v3526 = vpack.c.b16 %v3466, %v3462
    %v3527 = vpack.c.b16 %v3467, %v3463
    %v3528 = vpack.c.b16 %v3468, %v3464
    %v3529 = vpack.c.b16 %v3473, %v3469
    %v3530 = vpack.c.b16 %v3474, %v3470
    %v3531 = vpack.c.b16 %v3475, %v3471
    %v3532 = vpack.c.b16 %v3476, %v3472
    %v3533 = vpack.c.b16 %v3481, %v3477
    %v3534 = vpack.c.b16 %v3482, %v3478
    %v3535 = vpack.c.b16 %v3483, %v3479
    %v3536 = vpack.c.b16 %v3484, %v3480
    %v3537 = vpack.c.b16 %v3489, %v3485
    %v3538 = vpack.c.b16 %v3490, %v3486
    %v3539 = vpack.c.b16 %v3491, %v3487
    %v3540 = vpack.c.b16 %v3492, %v3488
    %v3541 = vpack.c.b16 %v3497, %v3493
    %v3542 = vpack.c.b16 %v3498, %v3494
    %v3543 = vpack.c.b16 %v3499, %v3495
    %v3544 = vpack.c.b16 %v3500, %v3496
    %v3545 = vpack.c.b16 %v3505, %v3501
    %v3546 = vpack.c.b16 %v3506, %v3502
    %v3547 = vpack.c.b16 %v3507, %v3503
    %v3548 = vpack.c.b16 %v3508, %v3504
    %v3549 = vpack.c.b16 %v3513, %v3509
    %v3550 = vpack.c.b16 %v3514, %v3510
    %v3551 = vpack.c.b16 %v3515, %v3511
    %v3552 = vpack.c.b16 %v3516, %v3512
    %v3553 = vpack.c.b16 %v3521, %v3517
    %v3554 = vpack.c.b16 %v3522, %v3518
    %v3555 = vpack.c.b16 %v3523, %v3519
    %v3556 = vpack.c.b16 %v3524, %v3520
    %3589 = vmatprep.subr.bf16.mxu0 %v3526
    %3590 = vmatpush1.bf16.msra.mxu0 %v3525
    %3591 = vmatprep.subr.bf16.mxu0 %v3530
    %3592 = vmatpush1.bf16.msra.mxu0 %v3529
    %3593 = vmatprep.subr.bf16.mxu0 %v3534
    %3594 = vmatpush1.bf16.msra.mxu0 %v3533
    %3595 = vmatprep.subr.bf16.mxu0 %v3538
    %3596 = vmatpush1.bf16.msra.mxu0 %v3537
    %3597 = vmatprep.subr.bf16.mxu0 %v3542
    %3598 = vmatpush1.bf16.msra.mxu0 %v3541
    %3599 = vmatprep.subr.bf16.mxu0 %v3546
    %3600 = vmatpush1.bf16.msra.mxu0 %v3545
    %3601 = vmatprep.subr.bf16.mxu0 %v3550
    %3602 = vmatpush1.bf16.msra.mxu0 %v3549
    %3603 = vmatprep.subr.bf16.mxu0 %v3554
    %3604 = vmatpush1.bf16.msra.mxu0 %v3553
    %3605 = vmatprep.subr.bf16.mxu0 0
    %3606 = vmatpush1.bf16.msra.mxu0 0
    %3607 = vmatprep.subr.bf16.mxu0 0
    %3608 = vmatpush1.bf16.msra.mxu0 0
    %3609 = vmatprep.subr.bf16.mxu0 0
    %3610 = vmatpush1.bf16.msra.mxu0 0
    %3611 = vmatprep.subr.bf16.mxu0 0
    %3612 = vmatpush1.bf16.msra.mxu0 0
    %3613 = vmatprep.subr.bf16.mxu0 0
    %3614 = vmatpush1.bf16.msra.mxu0 0
    %3615 = vmatprep.subr.bf16.mxu0 0
    %3616 = vmatpush1.bf16.msra.mxu0 0
    %3617 = vmatprep.subr.bf16.mxu0 0
    %3618 = vmatpush1.bf16.msra.mxu0 0
    %3619 = vmatprep.subr.bf16.mxu0 0
    %3620 = vmatpush1.bf16.msra.mxu0 0
    %3621 = vmatprep.mubr.bf16.mxu0 0
    %3622 = vmatmul.mubr.bf16.gmra.mrb[0].mxu0 %v3395
    %v3623 = vpop.f32.mrb[0].mxu0
    %v3624 = vadd.f32 0.0, %v3623
    %v3625 = vpop.f32.mrb[0].mxu0
    %v3626 = vadd.f32 0.0, %v3625
    %v3627 = vpop.f32.mrb[0].mxu0
    %v3628 = vadd.f32 0.0, %v3627
    %v3629 = vpop.f32.mrb[0].mxu0
    %v3630 = vadd.f32 0.0, %v3629
    %3631 = vdwg.mxu0
    %3632 = vmatprep.subr.bf16.mxu0 %v3528
    %3633 = vmatpush1.bf16.msra.mxu0 %v3527
    %3634 = vmatprep.subr.bf16.mxu0 %v3532
    %3635 = vmatpush1.bf16.msra.mxu0 %v3531
    %3636 = vmatprep.subr.bf16.mxu0 %v3536
    %3637 = vmatpush1.bf16.msra.mxu0 %v3535
    %3638 = vmatprep.subr.bf16.mxu0 %v3540
    %3639 = vmatpush1.bf16.msra.mxu0 %v3539
    %3640 = vmatprep.subr.bf16.mxu0 %v3544
    %3641 = vmatpush1.bf16.msra.mxu0 %v3543
    %3642 = vmatprep.subr.bf16.mxu0 %v3548
    %3643 = vmatpush1.bf16.msra.mxu0 %v3547
    %3644 = vmatprep.subr.bf16.mxu0 %v3552
    %3645 = vmatpush1.bf16.msra.mxu0 %v3551
    %3646 = vmatprep.subr.bf16.mxu0 %v3556
    %3647 = vmatpush1.bf16.msra.mxu0 %v3555
    %3648 = vmatprep.subr.bf16.mxu0 0
    %3649 = vmatpush1.bf16.msra.mxu0 0
    %3650 = vmatprep.subr.bf16.mxu0 0
    %3651 = vmatpush1.bf16.msra.mxu0 0
    %3652 = vmatprep.subr.bf16.mxu0 0
    %3653 = vmatpush1.bf16.msra.mxu0 0
    %3654 = vmatprep.subr.bf16.mxu0 0
    %3655 = vmatpush1.bf16.msra.mxu0 0
    %3656 = vmatprep.subr.bf16.mxu0 0
    %3657 = vmatpush1.bf16.msra.mxu0 0
    %3658 = vmatprep.subr.bf16.mxu0 0
    %3659 = vmatpush1.bf16.msra.mxu0 0
    %3660 = vmatprep.subr.bf16.mxu0 0
    %3661 = vmatpush1.bf16.msra.mxu0 0
    %3662 = vmatprep.subr.bf16.mxu0 0
    %3663 = vmatpush1.bf16.msra.mxu0 0
    %3664 = vmatprep.mubr.bf16.mxu0 0
    %3665 = vmatmul.mubr.bf16.gmra.mrb[0].mxu0 %v3395
    %v3666 = vpop.f32.mrb[0].mxu0
    %v3667 = vadd.f32 0.0, %v3666
    %v3668 = vpop.f32.mrb[0].mxu0
    %v3669 = vadd.f32 0.0, %v3668
    %v3670 = vpop.f32.mrb[0].mxu0
    %v3671 = vadd.f32 0.0, %v3670
    %v3672 = vpop.f32.mrb[0].mxu0
    %v3673 = vadd.f32 0.0, %v3672
    %3674 = vdwg.mxu0
    %v3675 = vxor.u32 %v3624, 2147483648
    %v3676 = vxor.u32 %v3626, 2147483648
    %v3677 = vxor.u32 %v3628, 2147483648
    %v3678 = vxor.u32 %v3630, 2147483648
    %v3679 = vmul.f32 %v3675, 1.442695
    %v3680 = vpow.pop %v3679
    %v3681 = vmul.f32 %v3676, 1.442695
    %v3682 = vpow.pop %v3681
    %v3683 = vmul.f32 %v3677, 1.442695
    %v3684 = vpow.pop %v3683
    %v3685 = vmul.f32 %v3678, 1.442695
    %v3686 = vpow.pop %v3685
    %v3687 = vadd.f32 %v3680, 1.0
    %v3688 = vadd.f32 %v3682, 1.0
    %v3689 = vadd.f32 %v3684, 1.0
    %v3690 = vadd.f32 %v3686, 1.0
    %v3691 = vrcp.pop %v3687
    %v3692 = vmul.f32 1.0, %v3691
    %v3693 = vrcp.pop %v3688
    %v3694 = vmul.f32 1.0, %v3693
    %v3695 = vrcp.pop %v3689
    %v3696 = vmul.f32 1.0, %v3695
    %v3697 = vrcp.pop %v3690
    %v3698 = vmul.f32 1.0, %v3697
    %v3699 = vmul.f32 %v3624, %v3692
    %v3700 = vmul.f32 %v3626, %v3694
    %v3701 = vmul.f32 %v3628, %v3696
    %v3702 = vmul.f32 %v3630, %v3698
    %v3703 = vmul.f32 %v3699, %v3667
    %v3704 = vmul.f32 %v3700, %v3669
    %v3705 = vmul.f32 %v3701, %v3671
    %v3706 = vmul.f32 %v3702, %v3673
    %v3707 = vpack.c.bf16 %v3705, %v3703
    %v3708 = vpack.c.bf16 %v3706, %v3704
    %s3709 = scalar_lea.vmem %s11, 128
    %v3710 = vld [vmem:[%s3709] sm:$0xf]
    %v3711 = vld [vmem:[%s3709 + $0x4] sm:$0xf]
    %v3712 = vld [vmem:[%s3709 + $0x8] sm:$0xf]
    %v3713 = vld [vmem:[%s3709 + $0xc] sm:$0xf]
    %v3714 = vld [vmem:[%s3709 + $0x10] sm:$0xf]
    %v3715 = vld [vmem:[%s3709 + $0x14] sm:$0xf]
    %v3716 = vld [vmem:[%s3709 + $0x18] sm:$0xf]
    %v3717 = vld [vmem:[%s3709 + $0x1c] sm:$0xf]
    %v3718 = vld [vmem:[%s3709 + $0x20] sm:$0xf]
    %v3719 = vld [vmem:[%s3709 + $0x24] sm:$0xf]
    %v3720 = vld [vmem:[%s3709 + $0x28] sm:$0xf]
    %v3721 = vld [vmem:[%s3709 + $0x2c] sm:$0xf]
    %v3722 = vld [vmem:[%s3709 + $0x30] sm:$0xf]
    %v3723 = vld [vmem:[%s3709 + $0x34] sm:$0xf]
    %v3724 = vld [vmem:[%s3709 + $0x38] sm:$0xf]
    %v3725 = vld [vmem:[%s3709 + $0x3c] sm:$0xf]
    %v3726 = vld [vmem:[%s3709 + $0x40] sm:$0xf]
    %v3727 = vld [vmem:[%s3709 + $0x44] sm:$0xf]
    %v3728 = vld [vmem:[%s3709 + $0x48] sm:$0xf]
    %v3729 = vld [vmem:[%s3709 + $0x4c] sm:$0xf]
    %v3730 = vld [vmem:[%s3709 + $0x50] sm:$0xf]
    %v3731 = vld [vmem:[%s3709 + $0x54] sm:$0xf]
    %v3732 = vld [vmem:[%s3709 + $0x58] sm:$0xf]
    %v3733 = vld [vmem:[%s3709 + $0x5c] sm:$0xf]
    %v3734 = vld [vmem:[%s3709 + $0x60] sm:$0xf]
    %v3735 = vld [vmem:[%s3709 + $0x64] sm:$0xf]
    %v3736 = vld [vmem:[%s3709 + $0x68] sm:$0xf]
    %v3737 = vld [vmem:[%s3709 + $0x6c] sm:$0xf]
    %v3738 = vld [vmem:[%s3709 + $0x70] sm:$0xf]
    %v3739 = vld [vmem:[%s3709 + $0x74] sm:$0xf]
    %v3740 = vld [vmem:[%s3709 + $0x78] sm:$0xf]
    %v3741 = vld [vmem:[%s3709 + $0x7c] sm:$0xf]
    %v3774 = vunpack.c.l.b16 %v3710
    %v3775 = vunpack.c.l.b16 %v3711
    %v3776 = vunpack.c.l.b16 %v3712
    %v3777 = vunpack.c.l.b16 %v3713
    %v3778 = vunpack.c.l.b16 %v3714
    %v3779 = vunpack.c.l.b16 %v3715
    %v3780 = vunpack.c.l.b16 %v3716
    %v3781 = vunpack.c.l.b16 %v3717
    %v3782 = vunpack.c.l.b16 %v3718
    %v3783 = vunpack.c.l.b16 %v3719
    %v3784 = vunpack.c.l.b16 %v3720
    %v3785 = vunpack.c.l.b16 %v3721
    %v3786 = vunpack.c.l.b16 %v3722
    %v3787 = vunpack.c.l.b16 %v3723
    %v3788 = vunpack.c.l.b16 %v3724
    %v3789 = vunpack.c.l.b16 %v3725
    %v3790 = vunpack.c.l.b16 %v3726
    %v3791 = vunpack.c.l.b16 %v3727
    %v3792 = vunpack.c.l.b16 %v3728
    %v3793 = vunpack.c.l.b16 %v3729
    %v3794 = vunpack.c.l.b16 %v3730
    %v3795 = vunpack.c.l.b16 %v3731
    %v3796 = vunpack.c.l.b16 %v3732
    %v3797 = vunpack.c.l.b16 %v3733
    %v3798 = vunpack.c.l.b16 %v3734
    %v3799 = vunpack.c.l.b16 %v3735
    %v3800 = vunpack.c.l.b16 %v3736
    %v3801 = vunpack.c.l.b16 %v3737
    %v3802 = vunpack.c.l.b16 %v3738
    %v3803 = vunpack.c.l.b16 %v3739
    %v3804 = vunpack.c.l.b16 %v3740
    %v3805 = vunpack.c.l.b16 %v3741
    %v3806 = vpack.c.b16 %v3775, %v3774
    %v3807 = vpack.c.b16 %v3777, %v3776
    %v3808 = vpack.c.b16 %v3779, %v3778
    %v3809 = vpack.c.b16 %v3781, %v3780
    %v3810 = vpack.c.b16 %v3783, %v3782
    %v3811 = vpack.c.b16 %v3785, %v3784
    %v3812 = vpack.c.b16 %v3787, %v3786
    %v3813 = vpack.c.b16 %v3789, %v3788
    %v3814 = vpack.c.b16 %v3791, %v3790
    %v3815 = vpack.c.b16 %v3793, %v3792
    %v3816 = vpack.c.b16 %v3795, %v3794
    %v3817 = vpack.c.b16 %v3797, %v3796
    %v3818 = vpack.c.b16 %v3799, %v3798
    %v3819 = vpack.c.b16 %v3801, %v3800
    %v3820 = vpack.c.b16 %v3803, %v3802
    %v3821 = vpack.c.b16 %v3805, %v3804
    %3838 = vmatprep.subr.bf16.mxu0 0
    %3839 = vmatpush1.bf16.msra.mxu0 %v3806
    %3840 = vmatprep.subr.bf16.mxu0 0
    %3841 = vmatpush1.bf16.msra.mxu0 %v3807
    %3842 = vmatprep.subr.bf16.mxu0 0
    %3843 = vmatpush1.bf16.msra.mxu0 %v3808
    %3844 = vmatprep.subr.bf16.mxu0 0
    %3845 = vmatpush1.bf16.msra.mxu0 %v3809
    %3846 = vmatprep.subr.bf16.mxu0 0
    %3847 = vmatpush1.bf16.msra.mxu0 %v3810
    %3848 = vmatprep.subr.bf16.mxu0 0
    %3849 = vmatpush1.bf16.msra.mxu0 %v3811
    %3850 = vmatprep.subr.bf16.mxu0 0
    %3851 = vmatpush1.bf16.msra.mxu0 %v3812
    %3852 = vmatprep.subr.bf16.mxu0 0
    %3853 = vmatpush1.bf16.msra.mxu0 %v3813
    %3854 = vmatprep.subr.bf16.mxu0 0
    %3855 = vmatpush1.bf16.msra.mxu0 %v3814
    %3856 = vmatprep.subr.bf16.mxu0 0
    %3857 = vmatpush1.bf16.msra.mxu0 %v3815
    %3858 = vmatprep.subr.bf16.mxu0 0
    %3859 = vmatpush1.bf16.msra.mxu0 %v3816
    %3860 = vmatprep.subr.bf16.mxu0 0
    %3861 = vmatpush1.bf16.msra.mxu0 %v3817
    %3862 = vmatprep.subr.bf16.mxu0 0
    %3863 = vmatpush1.bf16.msra.mxu0 %v3818
    %3864 = vmatprep.subr.bf16.mxu0 0
    %3865 = vmatpush1.bf16.msra.mxu0 %v3819
    %3866 = vmatprep.subr.bf16.mxu0 0
    %3867 = vmatpush1.bf16.msra.mxu0 %v3820
    %3868 = vmatprep.subr.bf16.mxu0 0
    %3869 = vmatpush1.bf16.msra.mxu0 %v3821
    %3870 = vmatprep.mubr.bf16.mxu0 %v3708
    %3871 = vmatmul.mubr.bf16.gmra.mrb[0].mxu0 %v3707
    %v3872 = vpop.f32.mrb[0].mxu0
    %v3873 = vadd.f32 %v3369, %v3872
    %v3874 = vpop.f32.mrb[0].mxu0
    %v3875 = vpop.f32.mrb[0].mxu0
    %v3876 = vadd.f32 %v3370, %v3875
    %v3877 = vpop.f32.mrb[0].mxu0
    %3878 = vdwg.mxu0
    %v3879 = vld [vmem:[%s12] sm:$0x1]
    %v3880 = vmul.f32 %v3873, %v3873
    %v3881 = vmul.f32 %v3876, %v3876
    %3882 = vadd.xlane.f32.xlu0 %v3880
    %v3883 = vpop.xlane.xlu0 %3882
    %3884 = vadd.xlane.f32.xlu0 %v3881
    %v3885 = vpop.xlane.xlu0 %3884
    %v3886 = vmul.f32 %v3883, %v284
    %v3887 = vmul.f32 %v3885, %v284
    %v3888 = vadd.f32 %v3886, 1e-06
    %v3889 = vadd.f32 %v3887, 1e-06
    %v3890 = vrsqrt.pop %v3888
    %v3891 = vrsqrt.pop %v3889
    %v3892 = vmul.f32 %v3873, %v3890
    %v3893 = vmul.f32 %v3876, %v3891
    %v3895 = vlaneseq
    %v3896 = vshrl.u32 %v3895, 7
    %v3897 = vsub.s32 0, %v3896
    %v3898 = vrot.slane %v3879, %v3897
    %v3900 = vmul.f32 %v3892, %v3898
    %v3901 = vmul.f32 %v3893, %v3898
    %3902 = vst [vmem:[#allocation2] sm:$0xff] %v3900
    %3903 = vst [vmem:[#allocation2 + $0x8] sm:$0xff] %v3901
    // Predicated region
    $region54: #{model_forward.1} parent=1 // pred_check
      _
    $region55: #{model_forward.1} parent=1 // pred_check_branch
      %3905 = sbr.rel (0) target = $region57
    $region56: #{model_forward.1} parent=1 // pred_region
      %s3907 = ssub.s32 256, 256
      %3908 = vsyncadd [#allocation3], %s3907
      %s3909 = sshll.u32 [#allocation2], 4
      %s3910 = int_to_ptr.vmem [resolvable:$true] %s3909
      %3915 = dma.vmem_to_hbm [thread:$0]  %s3910, 256, %s13, [#allocation3], 128, 128, 8
    $region57: #{model_forward.1} parent=1 // pred_fallthru
      _
    // Predicated region
    $region58: #{model_forward.1} parent=1 // pred_check
      _
    $region59: #{model_forward.1} parent=1 // pred_check_branch
      %3917 = sbr.rel (0) target = $region61
    $region60: #{model_forward.1} parent=1 // pred_region
      %3918 = dma.done [#allocation3], 256
    $region61: #{model_forward.1} parent=1 // pred_fallthru
      _
    %3919 = vsyncpa [#allocation3], 1

</llo_original>
